<compile_context>
chip_gen: v6e
topology: v6e:2x2x1
jax: 0.10.0
libtpu: 0.0.40
codegen_flags: <defaults>
</compile_context>

<pallas_src>
import math

import jax
import jax.numpy as jnp
from jax import lax
from jax.experimental import pallas as pl
from jax.experimental.pallas import tpu as pltpu

_LN_EPS = 1e-5


def _layer_norm(x, gamma, beta):
    # x: (rows, D) f32; gamma/beta: (1, D) f32
    mean = jnp.mean(x, axis=-1, keepdims=True)
    centered = x - mean
    var = jnp.mean(centered * centered, axis=-1, keepdims=True)
    inv = lax.rsqrt(var + _LN_EPS)
    return centered * inv * gamma + beta


def _block_kernel(heads, head_dim, bt, n_tok, d, mlp_dim, mlp_chunk):
    def kernel(x_ref, ln1_g_ref, ln1_b_ref, wqkv_ref, bqkv_ref, wo_ref, bo_ref,
               ln2_g_ref, ln2_b_ref, w1_ref, b1_ref, w2_ref, b2_ref, o_ref):
        rows = bt * n_tok
        x = x_ref[...].reshape(rows, d)               # f32 residual stream

        # ---- LayerNorm 1 + fused QKV projection (one (rows,D)x(D,3D) MXU op).
        # 1/sqrt(head_dim) is pre-folded into the q columns of wqkv/bqkv.
        xn = _layer_norm(x, ln1_g_ref[...], ln1_b_ref[...])
        qkv = jnp.dot(xn.astype(jnp.bfloat16), wqkv_ref[...],
                      preferred_element_type=jnp.float32) + bqkv_ref[...]
        q_bf = qkv[:, 0:d].astype(jnp.bfloat16)
        k_bf = qkv[:, d:2 * d].astype(jnp.bfloat16)
        v_bf = qkv[:, 2 * d:3 * d].astype(jnp.bfloat16)

        # ---- Multi-head attention.  Head outputs are written back into the
        # contiguous (rows, D) concat layout so the output projection is a
        # single K=D matmul (full MXU contraction depth).
        # TODO(synk): at real ViT scale (N,D ~ 1024) batch the heads and add
        # flash-style KV tiling so scores never materialize fully per head.
        head_outs = []
        for h in range(heads):
            lo = h * head_dim
            q_h = q_bf[:, lo:lo + head_dim].reshape(bt, n_tok, head_dim)
            k_h = k_bf[:, lo:lo + head_dim].reshape(bt, n_tok, head_dim)
            v_h = v_bf[:, lo:lo + head_dim].reshape(bt, n_tok, head_dim)

            s = jnp.einsum("bqd,bkd->bqk", q_h, k_h,
                           preferred_element_type=jnp.float32)      # (Bt,N,N) f32
            s_max = jnp.max(s, axis=-1, keepdims=True)
            p = jnp.exp(s - s_max)
            p = p * pl.reciprocal(jnp.sum(p, axis=-1, keepdims=True), approx=True)

            o_h = jnp.einsum("bqk,bkd->bqd", p.astype(jnp.bfloat16), v_h,
                             preferred_element_type=jnp.float32)    # (Bt,N,hd)
            head_outs.append(o_h.reshape(rows, head_dim))

        attn = jnp.concatenate(head_outs, axis=-1).astype(jnp.bfloat16)  # (rows,D)
        resid1 = x + jnp.dot(attn, wo_ref[...],
                             preferred_element_type=jnp.float32) + bo_ref[...]

        # ---- LayerNorm 2 + MLP (dropout = identity in eval mode).  Hidden
        # activation is computed in mlp_chunk-wide slices so the full
        # (rows, mlp_dim) f32 intermediate never lives in VMEM.
        yn = _layer_norm(resid1, ln2_g_ref[...], ln2_b_ref[...])
        yn_bf = yn.astype(jnp.bfloat16)
        mlp = jnp.zeros((rows, d), jnp.float32)
        for c0 in range(0, mlp_dim, mlp_chunk):
            c1 = min(c0 + mlp_chunk, mlp_dim)
            h1 = jnp.dot(yn_bf, w1_ref[:, c0:c1],
                         preferred_element_type=jnp.float32) + b1_ref[:, c0:c1]
            h1 = jnp.maximum(h1, 0.0)                                # ReLU
            mlp = mlp + jnp.dot(h1.astype(jnp.bfloat16), w2_ref[c0:c1, :],
                                preferred_element_type=jnp.float32)

        out = resid1 + mlp + b2_ref[...]
        o_ref[...] = out.reshape(bt, n_tok, d).astype(o_ref.dtype)

    return kernel


def _mem_config():
    """Generation-aware VMEM budget / tile policy.

    v5e / v6e: 128 MiB VMEM -> raise the scoped limit and use big row tiles.
    v7x-class (64 MiB per TensorCore) or unknown chip -> conservative limits.
    """
    try:
        vmem_cap = int(pltpu.get_tpu_info().vmem_capacity_bytes)
    except Exception:
        vmem_cap = 0  # unknown -> be conservative
    if vmem_cap >= 128 * 1024 * 1024:
        return dict(vmem_limit=96 * 1024 * 1024, max_rows=2048, mlp_chunk=1024)
    return dict(vmem_limit=44 * 1024 * 1024, max_rows=512, mlp_chunk=512)


def _choose_batch_tile(B, N, max_rows, target_rows=512, min_steps=2):
    """Largest divisor Bt of B with Bt*N <= max_rows (prefer >= target_rows),
    while keeping at least `min_steps` grid steps when B allows it so the
    'parallel' grid axis can shard across v7x's two TensorCores."""
    cap = max(1, max_rows // max(N, 1))
    if B >= min_steps:
        cap = min(cap, B // min_steps)
    best = 1
    for cand in range(1, B + 1):
        if B % cand == 0 and cand <= cap:
            best = cand
            if cand * N >= target_rows:
                break
    return best


_WEIGHT_SINGLE_BUFFER = True  # flipped off if this Pallas build rejects Buffered(1)


def _weight_spec(shape, single_buffer):
    ndim = len(shape)
    index_map = lambda i: (0,) * ndim
    if single_buffer:
        # Constant-index input: a single VMEM buffer is enough (no re-DMA per
        # step), halving the weight VMEM footprint vs. default double-buffering.
        return pl.BlockSpec(shape, index_map, pipeline_mode=pl.Buffered(1))
    return pl.BlockSpec(shape, index_map)


def transformer_block_forward(x, p, heads):
    """One TransformerBlock as a single pallas_call.  `p` must come from
    prepare_layer_params (bf16 matmul weights, q-scale pre-folded)."""
    global _WEIGHT_SINGLE_BUFFER
    B, N, D = x.shape
    head_dim = D // heads
    assert head_dim * heads == D
    mlp_dim = p["w1"].shape[1]

    cfg = _mem_config()
    bt = _choose_batch_tile(B, N, cfg["max_rows"])
    mlp_chunk = min(mlp_dim, cfg["mlp_chunk"])

    kernel = _block_kernel(heads, head_dim, bt, N, D, mlp_dim, mlp_chunk)
    weight_args = (p["ln1_g"], p["ln1_b"], p["wqkv"], p["bqkv"], p["wo"], p["bo"],
                   p["ln2_g"], p["ln2_b"], p["w1"], p["b1"], p["w2"], p["b2"])

    def build(single_buffer):
        return pl.pallas_call(
            kernel,
            out_shape=jax.ShapeDtypeStruct((B, N, D), x.dtype),
            grid_spec=pltpu.PrefetchScalarGridSpec(
                num_scalar_prefetch=0,
                grid=(B // bt,),
                in_specs=[pl.BlockSpec((bt, N, D), lambda i: (i, 0, 0))] +
                         [_weight_spec(a.shape, single_buffer) for a in weight_args],
                out_specs=pl.BlockSpec((bt, N, D), lambda i: (i, 0, 0)),
            ),
            compiler_params=pltpu.CompilerParams(
                dimension_semantics=("parallel",),
                vmem_limit_bytes=cfg["vmem_limit"],
            ),
        )

    if _WEIGHT_SINGLE_BUFFER:
        try:
            return build(True)(x, *weight_args)
        except Exception:
            # Older Pallas builds may reject Buffered(1); fall back once and
            # keep the (still correct) default double-buffered weight specs.
            _WEIGHT_SINGLE_BUFFER = False
    return build(False)(x, *weight_args)


def transformer_forward(x, prepared_params, heads):
    # TODO(synk): on v5e, hide each layer's weight reload behind the previous
    # layer's compute (cross-call DMA future / fuse two blocks per pallas_call).
    for p in prepared_params:
        x = transformer_block_forward(x, p, heads)
    return x


def prepare_layer_params(raw, heads):
    """One-time host-side weight prep: fold 1/sqrt(head_dim) into the q columns
    of the fused QKV projection and cast matmul weights to bf16 (biases and
    LayerNorm params stay f32)."""
    d = raw["wo"].shape[0]
    head_dim = d // heads
    scale = 1.0 / math.sqrt(head_dim)
    scale_vec = jnp.concatenate([jnp.full((d,), scale, jnp.float32),
                                 jnp.ones((2 * d,), jnp.float32)])[None, :]
    return dict(
        ln1_g=raw["ln1_g"], ln1_b=raw["ln1_b"],
        wqkv=(raw["wqkv"] * scale_vec).astype(jnp.bfloat16),
        bqkv=raw["bqkv"] * scale_vec,
        wo=raw["wo"].astype(jnp.bfloat16), bo=raw["bo"],
        ln2_g=raw["ln2_g"], ln2_b=raw["ln2_b"],
        w1=raw["w1"].astype(jnp.bfloat16), b1=raw["b1"],
        w2=raw["w2"].astype(jnp.bfloat16), b2=raw["b2"],
    )


def init_layer_params(key, embed_dim, mlp_dim):
    """Raw f32 weights, stored pre-transposed as (D_in, D_out), biases (1, D_out)."""
    keys = jax.random.split(key, 16)
    lim_d = 1.0 / math.sqrt(embed_dim)
    lim_m = 1.0 / math.sqrt(mlp_dim)

    def lin(kw, kb, din, dout, lim):
        w = jax.random.uniform(kw, (din, dout), jnp.float32, -lim, lim)
        b = jax.random.uniform(kb, (1, dout), jnp.float32, -lim, lim)
        return w, b

    wq, bq = lin(keys[0], keys[1], embed_dim, embed_dim, lim_d)
    wk, bk = lin(keys[2], keys[3], embed_dim, embed_dim, lim_d)
    wv, bv = lin(keys[4], keys[5], embed_dim, embed_dim, lim_d)
    wo, bo = lin(keys[6], keys[7], embed_dim, embed_dim, lim_d)
    w1, b1 = lin(keys[8], keys[9], embed_dim, mlp_dim, lim_d)
    w2, b2 = lin(keys[10], keys[11], mlp_dim, embed_dim, lim_m)

    # Non-trivial LayerNorm affine params for a stronger correctness test.
    ln1_g = 1.0 + 0.1 * jax.random.uniform(keys[12], (1, embed_dim), jnp.float32)
    ln1_b = 0.1 * jax.random.uniform(keys[13], (1, embed_dim), jnp.float32)
    ln2_g = 1.0 + 0.1 * jax.random.uniform(keys[14], (1, embed_dim), jnp.float32)
    ln2_b = 0.1 * jax.random.uniform(keys[15], (1, embed_dim), jnp.float32)

    return dict(
        ln1_g=ln1_g, ln1_b=ln1_b,
        wqkv=jnp.concatenate([wq, wk, wv], axis=1),      # (D, 3D) fused QKV
        bqkv=jnp.concatenate([bq, bk, bv], axis=1),      # (1, 3D)
        wo=wo, bo=bo,
        ln2_g=ln2_g, ln2_b=ln2_b,
        w1=w1, b1=b1, w2=w2, b2=b2,
    )


def reference_forward(x, layer_params, heads):
    """Pure-JAX f32 reference matching the PyTorch Transformer (eval mode)."""
    B, N, D = x.shape
    hd = D // heads

    def layer_norm(z, g, b):
        mean = z.mean(-1, keepdims=True)
        var = ((z - mean) ** 2).mean(-1, keepdims=True)
        return (z - mean) / jnp.sqrt(var + _LN_EPS) * g + b

    for p in layer_params:
        xn = layer_norm(x, p["ln1_g"], p["ln1_b"])
        qkv = xn @ p["wqkv"] + p["bqkv"]
        q, k, v = qkv[..., :D], qkv[..., D:2 * D], qkv[..., 2 * D:]
        q = q.reshape(B, N, heads, hd).transpose(0, 2, 1, 3)
        k = k.reshape(B, N, heads, hd).transpose(0, 2, 1, 3)
        v = v.reshape(B, N, heads, hd).transpose(0, 2, 1, 3)
        s = jnp.einsum("bhqd,bhkd->bhqk", q, k) / math.sqrt(hd)
        a = jax.nn.softmax(s, axis=-1)
        o = jnp.einsum("bhqk,bhkd->bhqd", a, v).transpose(0, 2, 1, 3).reshape(B, N, D)
        x = x + o @ p["wo"] + p["bo"]
        yn = layer_norm(x, p["ln2_g"], p["ln2_b"])
        h = jnp.maximum(yn @ p["w1"] + p["b1"], 0.0)
        x = x + h @ p["w2"] + p["b2"]
    return x


if __name__ == "__main__":
    B, N, D, MLP_DIM, HEADS, LAYERS = 2, 8, 32, 64, 4, 2

    key = jax.random.PRNGKey(0)
    k_x, k_p = jax.random.split(key)
    x = jax.random.normal(k_x, (B, N, D), jnp.float32)
    raw_params = [init_layer_params(k, D, MLP_DIM)
                  for k in jax.random.split(k_p, LAYERS)]
    prepared = [prepare_layer_params(p, HEADS) for p in raw_params]

    out = transformer_forward(x, prepared, HEADS)
    out = jax.block_until_ready(out)

    ref = reference_forward(x, raw_params, HEADS)
    assert out.shape == (B, N, D)
    max_err = float(jnp.max(jnp.abs(out - ref)))
    # bf16 MXU inputs (f32 accumulation) -> loosened tolerance vs f32 reference.
    assert jnp.allclose(out, ref, atol=5e-2, rtol=5e-2), \
        f"mismatch vs reference: max_abs_err={max_err}"

    print("KERNEL_OK")
</pallas_src>

<mosaic_0001>
module attributes {stable_mosaic.version = 11 : i64} {
  func.func @kernel(%arg0: i32, %arg1: memref<1x8x32xf32, #tpu.memory_space<vmem>>, %arg2: memref<1x32xf32, #tpu.memory_space<vmem>>, %arg3: memref<1x32xf32, #tpu.memory_space<vmem>>, %arg4: memref<32x96xbf16, #tpu.memory_space<vmem>>, %arg5: memref<1x96xf32, #tpu.memory_space<vmem>>, %arg6: memref<32x32xbf16, #tpu.memory_space<vmem>>, %arg7: memref<1x32xf32, #tpu.memory_space<vmem>>, %arg8: memref<1x32xf32, #tpu.memory_space<vmem>>, %arg9: memref<1x32xf32, #tpu.memory_space<vmem>>, %arg10: memref<32x64xbf16, #tpu.memory_space<vmem>>, %arg11: memref<1x64xf32, #tpu.memory_space<vmem>>, %arg12: memref<64x32xbf16, #tpu.memory_space<vmem>>, %arg13: memref<1x32xf32, #tpu.memory_space<vmem>>, %arg14: memref<1x8x32xf32, #tpu.memory_space<vmem>>) attributes {dimension_semantics = [#tpu.dimension_semantics<parallel>], iteration_bounds = array<i64: 2>, scalar_prefetch = 0 : i64, scratch_operands = 0 : i64, tpu.core_type = #tpu.core_type<tc>, window_params = [{transform_indices = @transform_0, window_bounds = array<i64: 1, 8, 32>}, {pipeline_mode = #tpu.pipeline_mode<synchronous>, transform_indices = @transform_1, window_bounds = array<i64: 1, 32>}, {pipeline_mode = #tpu.pipeline_mode<synchronous>, transform_indices = @transform_2, window_bounds = array<i64: 1, 32>}, {pipeline_mode = #tpu.pipeline_mode<synchronous>, transform_indices = @transform_3, window_bounds = array<i64: 32, 96>}, {pipeline_mode = #tpu.pipeline_mode<synchronous>, transform_indices = @transform_4, window_bounds = array<i64: 1, 96>}, {pipeline_mode = #tpu.pipeline_mode<synchronous>, transform_indices = @transform_5, window_bounds = array<i64: 32, 32>}, {pipeline_mode = #tpu.pipeline_mode<synchronous>, transform_indices = @transform_6, window_bounds = array<i64: 1, 32>}, {pipeline_mode = #tpu.pipeline_mode<synchronous>, transform_indices = @transform_7, window_bounds = array<i64: 1, 32>}, {pipeline_mode = #tpu.pipeline_mode<synchronous>, transform_indices = @transform_8, window_bounds = array<i64: 1, 32>}, {pipeline_mode = #tpu.pipeline_mode<synchronous>, transform_indices = @transform_9, window_bounds = array<i64: 32, 64>}, {pipeline_mode = #tpu.pipeline_mode<synchronous>, transform_indices = @transform_10, window_bounds = array<i64: 1, 64>}, {pipeline_mode = #tpu.pipeline_mode<synchronous>, transform_indices = @transform_11, window_bounds = array<i64: 64, 32>}, {pipeline_mode = #tpu.pipeline_mode<synchronous>, transform_indices = @transform_12, window_bounds = array<i64: 1, 32>}, {transform_indices = @transform_13, window_bounds = array<i64: 1, 8, 32>}]} {
    %c0 = arith.constant 0 : index
    %c0_0 = arith.constant 0 : index
    %c0_1 = arith.constant 0 : index
    %0 = vector.load %arg1[%c0, %c0_0, %c0_1] : memref<1x8x32xf32, #tpu.memory_space<vmem>>, vector<1x8x32xf32>
    %1 = vector.shape_cast %0 : vector<1x8x32xf32> to vector<8x32xf32>
    %c0_2 = arith.constant 0 : index
    %c0_3 = arith.constant 0 : index
    %2 = vector.load %arg2[%c0_2, %c0_3] : memref<1x32xf32, #tpu.memory_space<vmem>>, vector<1x32xf32>
    %c0_4 = arith.constant 0 : index
    %c0_5 = arith.constant 0 : index
    %3 = vector.load %arg3[%c0_4, %c0_5] : memref<1x32xf32, #tpu.memory_space<vmem>>, vector<1x32xf32>
    %cst = arith.constant dense<0.000000e+00> : vector<8xf32>
    %4 = vector.multi_reduction <add>, %1, %cst [1] : vector<8x32xf32> to vector<8xf32>
    %5 = vector.shape_cast %4 : vector<8xf32> to vector<8x1xf32>
    %cst_6 = arith.constant 3.200000e+01 : f32
    %6 = vector.broadcast %cst_6 : f32 to vector<8x1xf32>
    %7 = arith.divf %5, %6 : vector<8x1xf32>
    %8 = vector.broadcast %7 : vector<8x1xf32> to vector<8x32xf32>
    %9 = arith.subf %1, %8 : vector<8x32xf32>
    %10 = arith.mulf %9, %9 : vector<8x32xf32>
    %cst_7 = arith.constant dense<0.000000e+00> : vector<8xf32>
    %11 = vector.multi_reduction <add>, %10, %cst_7 [1] : vector<8x32xf32> to vector<8xf32>
    %12 = vector.shape_cast %11 : vector<8xf32> to vector<8x1xf32>
    %cst_8 = arith.constant 3.200000e+01 : f32
    %13 = vector.broadcast %cst_8 : f32 to vector<8x1xf32>
    %14 = arith.divf %12, %13 : vector<8x1xf32>
    %cst_9 = arith.constant 9.99999974E-6 : f32
    %15 = vector.broadcast %cst_9 : f32 to vector<8x1xf32>
    %16 = arith.addf %14, %15 : vector<8x1xf32>
    %17 = math.rsqrt %16 : vector<8x1xf32>
    %18 = vector.broadcast %17 : vector<8x1xf32> to vector<8x32xf32>
    %19 = arith.mulf %9, %18 : vector<8x32xf32>
    %20 = vector.broadcast %2 : vector<1x32xf32> to vector<8x32xf32>
    %21 = arith.mulf %19, %20 : vector<8x32xf32>
    %22 = vector.broadcast %3 : vector<1x32xf32> to vector<8x32xf32>
    %23 = arith.addf %21, %22 : vector<8x32xf32>
    %24 = arith.truncf %23 : vector<8x32xf32> to vector<8x32xbf16>
    %c0_10 = arith.constant 0 : index
    %c0_11 = arith.constant 0 : index
    %25 = vector.load %arg4[%c0_10, %c0_11] : memref<32x96xbf16, #tpu.memory_space<vmem>>, vector<32x96xbf16>
    %cst_12 = arith.constant dense<0.000000e+00> : vector<8x96xf32>
    %26 = tpu.matmul %24, %25, %cst_12 {dimension_numbers = #tpu.dot_dimension_numbers<[1], [0], [0], [1], [0, 0, 1, 1], [], []>} : vector<8x32xbf16>, vector<32x96xbf16>, vector<8x96xf32> -> vector<8x96xf32>
    %c0_13 = arith.constant 0 : index
    %c0_14 = arith.constant 0 : index
    %27 = vector.load %arg5[%c0_13, %c0_14] : memref<1x96xf32, #tpu.memory_space<vmem>>, vector<1x96xf32>
    %28 = vector.broadcast %27 : vector<1x96xf32> to vector<8x96xf32>
    %29 = arith.addf %26, %28 : vector<8x96xf32>
    %30 = vector.extract_strided_slice %29 {offsets = [0, 0], sizes = [8, 32], strides = [1, 1]} : vector<8x96xf32> to vector<8x32xf32>
    %31 = arith.truncf %30 : vector<8x32xf32> to vector<8x32xbf16>
    %32 = vector.extract_strided_slice %29 {offsets = [0, 32], sizes = [8, 32], strides = [1, 1]} : vector<8x96xf32> to vector<8x32xf32>
    %33 = arith.truncf %32 : vector<8x32xf32> to vector<8x32xbf16>
    %34 = vector.extract_strided_slice %29 {offsets = [0, 64], sizes = [8, 32], strides = [1, 1]} : vector<8x96xf32> to vector<8x32xf32>
    %35 = arith.truncf %34 : vector<8x32xf32> to vector<8x32xbf16>
    %36 = vector.extract_strided_slice %31 {offsets = [0, 0], sizes = [8, 8], strides = [1, 1]} : vector<8x32xbf16> to vector<8x8xbf16>
    %37 = vector.shape_cast %36 : vector<8x8xbf16> to vector<1x8x8xbf16>
    %38 = vector.extract_strided_slice %33 {offsets = [0, 0], sizes = [8, 8], strides = [1, 1]} : vector<8x32xbf16> to vector<8x8xbf16>
    %39 = vector.shape_cast %38 : vector<8x8xbf16> to vector<1x8x8xbf16>
    %40 = vector.extract_strided_slice %35 {offsets = [0, 0], sizes = [8, 8], strides = [1, 1]} : vector<8x32xbf16> to vector<8x8xbf16>
    %41 = vector.shape_cast %40 : vector<8x8xbf16> to vector<1x8x8xbf16>
    "tpu.trace_start"() <{level = 10 : i32, message = "bqd,bkd->bqk"}> : () -> ()
    %cst_15 = arith.constant dense<0.000000e+00> : vector<1x8x8xf32>
    %42 = tpu.matmul %37, %39, %cst_15 {dimension_numbers = #tpu.dot_dimension_numbers<[2], [2], [1], [1], [0, 0, 0, 1, 1, 1], [0], [0]>} : vector<1x8x8xbf16>, vector<1x8x8xbf16>, vector<1x8x8xf32> -> vector<1x8x8xf32>
    "tpu.trace_stop"() : () -> ()
    %cst_16 = arith.constant dense<0xFF800000> : vector<1x8xf32>
    %43 = vector.multi_reduction <maximumf>, %42, %cst_16 [2] : vector<1x8x8xf32> to vector<1x8xf32>
    %44 = vector.shape_cast %43 : vector<1x8xf32> to vector<1x8x1xf32>
    %45 = vector.broadcast %44 : vector<1x8x1xf32> to vector<1x8x8xf32>
    %46 = arith.subf %42, %45 : vector<1x8x8xf32>
    %47 = math.exp %46 : vector<1x8x8xf32>
    %cst_17 = arith.constant dense<0.000000e+00> : vector<1x8xf32>
    %48 = vector.multi_reduction <add>, %47, %cst_17 [2] : vector<1x8x8xf32> to vector<1x8xf32>
    %49 = vector.shape_cast %48 : vector<1x8xf32> to vector<1x8x1xf32>
    %50 = tpu.reciprocal %49 {approx = true} : vector<1x8x1xf32> -> vector<1x8x1xf32>
    %51 = vector.broadcast %50 : vector<1x8x1xf32> to vector<1x8x8xf32>
    %52 = arith.mulf %47, %51 : vector<1x8x8xf32>
    %53 = arith.truncf %52 : vector<1x8x8xf32> to vector<1x8x8xbf16>
    "tpu.trace_start"() <{level = 10 : i32, message = "bqk,bkd->bqd"}> : () -> ()
    %cst_18 = arith.constant dense<0.000000e+00> : vector<1x8x8xf32>
    %54 = tpu.matmul %53, %41, %cst_18 {dimension_numbers = #tpu.dot_dimension_numbers<[2], [1], [1], [2], [0, 0, 0, 1, 1, 2], [0], [0]>} : vector<1x8x8xbf16>, vector<1x8x8xbf16>, vector<1x8x8xf32> -> vector<1x8x8xf32>
    "tpu.trace_stop"() : () -> ()
    %55 = vector.shape_cast %54 : vector<1x8x8xf32> to vector<8x8xf32>
    %56 = vector.extract_strided_slice %31 {offsets = [0, 8], sizes = [8, 8], strides = [1, 1]} : vector<8x32xbf16> to vector<8x8xbf16>
    %57 = vector.shape_cast %56 : vector<8x8xbf16> to vector<1x8x8xbf16>
    %58 = vector.extract_strided_slice %33 {offsets = [0, 8], sizes = [8, 8], strides = [1, 1]} : vector<8x32xbf16> to vector<8x8xbf16>
    %59 = vector.shape_cast %58 : vector<8x8xbf16> to vector<1x8x8xbf16>
    %60 = vector.extract_strided_slice %35 {offsets = [0, 8], sizes = [8, 8], strides = [1, 1]} : vector<8x32xbf16> to vector<8x8xbf16>
    %61 = vector.shape_cast %60 : vector<8x8xbf16> to vector<1x8x8xbf16>
    "tpu.trace_start"() <{level = 10 : i32, message = "bqd,bkd->bqk"}> : () -> ()
    %cst_19 = arith.constant dense<0.000000e+00> : vector<1x8x8xf32>
    %62 = tpu.matmul %57, %59, %cst_19 {dimension_numbers = #tpu.dot_dimension_numbers<[2], [2], [1], [1], [0, 0, 0, 1, 1, 1], [0], [0]>} : vector<1x8x8xbf16>, vector<1x8x8xbf16>, vector<1x8x8xf32> -> vector<1x8x8xf32>
    "tpu.trace_stop"() : () -> ()
    %cst_20 = arith.constant dense<0xFF800000> : vector<1x8xf32>
    %63 = vector.multi_reduction <maximumf>, %62, %cst_20 [2] : vector<1x8x8xf32> to vector<1x8xf32>
    %64 = vector.shape_cast %63 : vector<1x8xf32> to vector<1x8x1xf32>
    %65 = vector.broadcast %64 : vector<1x8x1xf32> to vector<1x8x8xf32>
    %66 = arith.subf %62, %65 : vector<1x8x8xf32>
    %67 = math.exp %66 : vector<1x8x8xf32>
    %cst_21 = arith.constant dense<0.000000e+00> : vector<1x8xf32>
    %68 = vector.multi_reduction <add>, %67, %cst_21 [2] : vector<1x8x8xf32> to vector<1x8xf32>
    %69 = vector.shape_cast %68 : vector<1x8xf32> to vector<1x8x1xf32>
    %70 = tpu.reciprocal %69 {approx = true} : vector<1x8x1xf32> -> vector<1x8x1xf32>
    %71 = vector.broadcast %70 : vector<1x8x1xf32> to vector<1x8x8xf32>
    %72 = arith.mulf %67, %71 : vector<1x8x8xf32>
    %73 = arith.truncf %72 : vector<1x8x8xf32> to vector<1x8x8xbf16>
    "tpu.trace_start"() <{level = 10 : i32, message = "bqk,bkd->bqd"}> : () -> ()
    %cst_22 = arith.constant dense<0.000000e+00> : vector<1x8x8xf32>
    %74 = tpu.matmul %73, %61, %cst_22 {dimension_numbers = #tpu.dot_dimension_numbers<[2], [1], [1], [2], [0, 0, 0, 1, 1, 2], [0], [0]>} : vector<1x8x8xbf16>, vector<1x8x8xbf16>, vector<1x8x8xf32> -> vector<1x8x8xf32>
    "tpu.trace_stop"() : () -> ()
    %75 = vector.shape_cast %74 : vector<1x8x8xf32> to vector<8x8xf32>
    %76 = vector.extract_strided_slice %31 {offsets = [0, 16], sizes = [8, 8], strides = [1, 1]} : vector<8x32xbf16> to vector<8x8xbf16>
    %77 = vector.shape_cast %76 : vector<8x8xbf16> to vector<1x8x8xbf16>
    %78 = vector.extract_strided_slice %33 {offsets = [0, 16], sizes = [8, 8], strides = [1, 1]} : vector<8x32xbf16> to vector<8x8xbf16>
    %79 = vector.shape_cast %78 : vector<8x8xbf16> to vector<1x8x8xbf16>
    %80 = vector.extract_strided_slice %35 {offsets = [0, 16], sizes = [8, 8], strides = [1, 1]} : vector<8x32xbf16> to vector<8x8xbf16>
    %81 = vector.shape_cast %80 : vector<8x8xbf16> to vector<1x8x8xbf16>
    "tpu.trace_start"() <{level = 10 : i32, message = "bqd,bkd->bqk"}> : () -> ()
    %cst_23 = arith.constant dense<0.000000e+00> : vector<1x8x8xf32>
    %82 = tpu.matmul %77, %79, %cst_23 {dimension_numbers = #tpu.dot_dimension_numbers<[2], [2], [1], [1], [0, 0, 0, 1, 1, 1], [0], [0]>} : vector<1x8x8xbf16>, vector<1x8x8xbf16>, vector<1x8x8xf32> -> vector<1x8x8xf32>
    "tpu.trace_stop"() : () -> ()
    %cst_24 = arith.constant dense<0xFF800000> : vector<1x8xf32>
    %83 = vector.multi_reduction <maximumf>, %82, %cst_24 [2] : vector<1x8x8xf32> to vector<1x8xf32>
    %84 = vector.shape_cast %83 : vector<1x8xf32> to vector<1x8x1xf32>
    %85 = vector.broadcast %84 : vector<1x8x1xf32> to vector<1x8x8xf32>
    %86 = arith.subf %82, %85 : vector<1x8x8xf32>
    %87 = math.exp %86 : vector<1x8x8xf32>
    %cst_25 = arith.constant dense<0.000000e+00> : vector<1x8xf32>
    %88 = vector.multi_reduction <add>, %87, %cst_25 [2] : vector<1x8x8xf32> to vector<1x8xf32>
    %89 = vector.shape_cast %88 : vector<1x8xf32> to vector<1x8x1xf32>
    %90 = tpu.reciprocal %89 {approx = true} : vector<1x8x1xf32> -> vector<1x8x1xf32>
    %91 = vector.broadcast %90 : vector<1x8x1xf32> to vector<1x8x8xf32>
    %92 = arith.mulf %87, %91 : vector<1x8x8xf32>
    %93 = arith.truncf %92 : vector<1x8x8xf32> to vector<1x8x8xbf16>
    "tpu.trace_start"() <{level = 10 : i32, message = "bqk,bkd->bqd"}> : () -> ()
    %cst_26 = arith.constant dense<0.000000e+00> : vector<1x8x8xf32>
    %94 = tpu.matmul %93, %81, %cst_26 {dimension_numbers = #tpu.dot_dimension_numbers<[2], [1], [1], [2], [0, 0, 0, 1, 1, 2], [0], [0]>} : vector<1x8x8xbf16>, vector<1x8x8xbf16>, vector<1x8x8xf32> -> vector<1x8x8xf32>
    "tpu.trace_stop"() : () -> ()
    %95 = vector.shape_cast %94 : vector<1x8x8xf32> to vector<8x8xf32>
    %96 = vector.extract_strided_slice %31 {offsets = [0, 24], sizes = [8, 8], strides = [1, 1]} : vector<8x32xbf16> to vector<8x8xbf16>
    %97 = vector.shape_cast %96 : vector<8x8xbf16> to vector<1x8x8xbf16>
    %98 = vector.extract_strided_slice %33 {offsets = [0, 24], sizes = [8, 8], strides = [1, 1]} : vector<8x32xbf16> to vector<8x8xbf16>
    %99 = vector.shape_cast %98 : vector<8x8xbf16> to vector<1x8x8xbf16>
    %100 = vector.extract_strided_slice %35 {offsets = [0, 24], sizes = [8, 8], strides = [1, 1]} : vector<8x32xbf16> to vector<8x8xbf16>
    %101 = vector.shape_cast %100 : vector<8x8xbf16> to vector<1x8x8xbf16>
    "tpu.trace_start"() <{level = 10 : i32, message = "bqd,bkd->bqk"}> : () -> ()
    %cst_27 = arith.constant dense<0.000000e+00> : vector<1x8x8xf32>
    %102 = tpu.matmul %97, %99, %cst_27 {dimension_numbers = #tpu.dot_dimension_numbers<[2], [2], [1], [1], [0, 0, 0, 1, 1, 1], [0], [0]>} : vector<1x8x8xbf16>, vector<1x8x8xbf16>, vector<1x8x8xf32> -> vector<1x8x8xf32>
    "tpu.trace_stop"() : () -> ()
    %cst_28 = arith.constant dense<0xFF800000> : vector<1x8xf32>
    %103 = vector.multi_reduction <maximumf>, %102, %cst_28 [2] : vector<1x8x8xf32> to vector<1x8xf32>
    %104 = vector.shape_cast %103 : vector<1x8xf32> to vector<1x8x1xf32>
    %105 = vector.broadcast %104 : vector<1x8x1xf32> to vector<1x8x8xf32>
    %106 = arith.subf %102, %105 : vector<1x8x8xf32>
    %107 = math.exp %106 : vector<1x8x8xf32>
    %cst_29 = arith.constant dense<0.000000e+00> : vector<1x8xf32>
    %108 = vector.multi_reduction <add>, %107, %cst_29 [2] : vector<1x8x8xf32> to vector<1x8xf32>
    %109 = vector.shape_cast %108 : vector<1x8xf32> to vector<1x8x1xf32>
    %110 = tpu.reciprocal %109 {approx = true} : vector<1x8x1xf32> -> vector<1x8x1xf32>
    %111 = vector.broadcast %110 : vector<1x8x1xf32> to vector<1x8x8xf32>
    %112 = arith.mulf %107, %111 : vector<1x8x8xf32>
    %113 = arith.truncf %112 : vector<1x8x8xf32> to vector<1x8x8xbf16>
    "tpu.trace_start"() <{level = 10 : i32, message = "bqk,bkd->bqd"}> : () -> ()
    %cst_30 = arith.constant dense<0.000000e+00> : vector<1x8x8xf32>
    %114 = tpu.matmul %113, %101, %cst_30 {dimension_numbers = #tpu.dot_dimension_numbers<[2], [1], [1], [2], [0, 0, 0, 1, 1, 2], [0], [0]>} : vector<1x8x8xbf16>, vector<1x8x8xbf16>, vector<1x8x8xf32> -> vector<1x8x8xf32>
    "tpu.trace_stop"() : () -> ()
    %115 = vector.shape_cast %114 : vector<1x8x8xf32> to vector<8x8xf32>
    %116 = tpu.concatenate %55, %75, %95, %115 in 1 : vector<8x8xf32>, vector<8x8xf32>, vector<8x8xf32>, vector<8x8xf32> -> vector<8x32xf32>
    %117 = arith.truncf %116 : vector<8x32xf32> to vector<8x32xbf16>
    %c0_31 = arith.constant 0 : index
    %c0_32 = arith.constant 0 : index
    %118 = vector.load %arg6[%c0_31, %c0_32] : memref<32x32xbf16, #tpu.memory_space<vmem>>, vector<32x32xbf16>
    %cst_33 = arith.constant dense<0.000000e+00> : vector<8x32xf32>
    %119 = tpu.matmul %117, %118, %cst_33 {dimension_numbers = #tpu.dot_dimension_numbers<[1], [0], [0], [1], [0, 0, 1, 1], [], []>} : vector<8x32xbf16>, vector<32x32xbf16>, vector<8x32xf32> -> vector<8x32xf32>
    %120 = arith.addf %1, %119 : vector<8x32xf32>
    %c0_34 = arith.constant 0 : index
    %c0_35 = arith.constant 0 : index
    %121 = vector.load %arg7[%c0_34, %c0_35] : memref<1x32xf32, #tpu.memory_space<vmem>>, vector<1x32xf32>
    %122 = vector.broadcast %121 : vector<1x32xf32> to vector<8x32xf32>
    %123 = arith.addf %120, %122 : vector<8x32xf32>
    %c0_36 = arith.constant 0 : index
    %c0_37 = arith.constant 0 : index
    %124 = vector.load %arg8[%c0_36, %c0_37] : memref<1x32xf32, #tpu.memory_space<vmem>>, vector<1x32xf32>
    %c0_38 = arith.constant 0 : index
    %c0_39 = arith.constant 0 : index
    %125 = vector.load %arg9[%c0_38, %c0_39] : memref<1x32xf32, #tpu.memory_space<vmem>>, vector<1x32xf32>
    %cst_40 = arith.constant dense<0.000000e+00> : vector<8xf32>
    %126 = vector.multi_reduction <add>, %123, %cst_40 [1] : vector<8x32xf32> to vector<8xf32>
    %127 = vector.shape_cast %126 : vector<8xf32> to vector<8x1xf32>
    %cst_41 = arith.constant 3.200000e+01 : f32
    %128 = vector.broadcast %cst_41 : f32 to vector<8x1xf32>
    %129 = arith.divf %127, %128 : vector<8x1xf32>
    %130 = vector.broadcast %129 : vector<8x1xf32> to vector<8x32xf32>
    %131 = arith.subf %123, %130 : vector<8x32xf32>
    %132 = arith.mulf %131, %131 : vector<8x32xf32>
    %cst_42 = arith.constant dense<0.000000e+00> : vector<8xf32>
    %133 = vector.multi_reduction <add>, %132, %cst_42 [1] : vector<8x32xf32> to vector<8xf32>
    %134 = vector.shape_cast %133 : vector<8xf32> to vector<8x1xf32>
    %cst_43 = arith.constant 3.200000e+01 : f32
    %135 = vector.broadcast %cst_43 : f32 to vector<8x1xf32>
    %136 = arith.divf %134, %135 : vector<8x1xf32>
    %cst_44 = arith.constant 9.99999974E-6 : f32
    %137 = vector.broadcast %cst_44 : f32 to vector<8x1xf32>
    %138 = arith.addf %136, %137 : vector<8x1xf32>
    %139 = math.rsqrt %138 : vector<8x1xf32>
    %140 = vector.broadcast %139 : vector<8x1xf32> to vector<8x32xf32>
    %141 = arith.mulf %131, %140 : vector<8x32xf32>
    %142 = vector.broadcast %124 : vector<1x32xf32> to vector<8x32xf32>
    %143 = arith.mulf %141, %142 : vector<8x32xf32>
    %144 = vector.broadcast %125 : vector<1x32xf32> to vector<8x32xf32>
    %145 = arith.addf %143, %144 : vector<8x32xf32>
    %146 = arith.truncf %145 : vector<8x32xf32> to vector<8x32xbf16>
    %cst_45 = arith.constant 0.000000e+00 : f32
    %147 = vector.broadcast %cst_45 : f32 to vector<8x32xf32>
    %c0_46 = arith.constant 0 : index
    %c0_47 = arith.constant 0 : index
    %148 = vector.load %arg10[%c0_46, %c0_47] : memref<32x64xbf16, #tpu.memory_space<vmem>>, vector<32x64xbf16>
    %cst_48 = arith.constant dense<0.000000e+00> : vector<8x64xf32>
    %149 = tpu.matmul %146, %148, %cst_48 {dimension_numbers = #tpu.dot_dimension_numbers<[1], [0], [0], [1], [0, 0, 1, 1], [], []>} : vector<8x32xbf16>, vector<32x64xbf16>, vector<8x64xf32> -> vector<8x64xf32>
    %c0_49 = arith.constant 0 : index
    %c0_50 = arith.constant 0 : index
    %150 = vector.load %arg11[%c0_49, %c0_50] : memref<1x64xf32, #tpu.memory_space<vmem>>, vector<1x64xf32>
    %151 = vector.broadcast %150 : vector<1x64xf32> to vector<8x64xf32>
    %152 = arith.addf %149, %151 : vector<8x64xf32>
    %cst_51 = arith.constant 0.000000e+00 : f32
    %153 = vector.broadcast %cst_51 : f32 to vector<8x64xf32>
    %154 = arith.maximumf %152, %153 : vector<8x64xf32>
    %155 = arith.truncf %154 : vector<8x64xf32> to vector<8x64xbf16>
    %c0_52 = arith.constant 0 : index
    %c0_53 = arith.constant 0 : index
    %156 = vector.load %arg12[%c0_52, %c0_53] : memref<64x32xbf16, #tpu.memory_space<vmem>>, vector<64x32xbf16>
    %cst_54 = arith.constant dense<0.000000e+00> : vector<8x32xf32>
    %157 = tpu.matmul %155, %156, %cst_54 {dimension_numbers = #tpu.dot_dimension_numbers<[1], [0], [0], [1], [0, 0, 1, 1], [], []>} : vector<8x64xbf16>, vector<64x32xbf16>, vector<8x32xf32> -> vector<8x32xf32>
    %158 = arith.addf %147, %157 : vector<8x32xf32>
    %159 = arith.addf %123, %158 : vector<8x32xf32>
    %c0_55 = arith.constant 0 : index
    %c0_56 = arith.constant 0 : index
    %160 = vector.load %arg13[%c0_55, %c0_56] : memref<1x32xf32, #tpu.memory_space<vmem>>, vector<1x32xf32>
    %161 = vector.broadcast %160 : vector<1x32xf32> to vector<8x32xf32>
    %162 = arith.addf %159, %161 : vector<8x32xf32>
    %163 = vector.shape_cast %162 : vector<8x32xf32> to vector<1x8x32xf32>
    %c0_57 = arith.constant 0 : index
    %c0_58 = arith.constant 0 : index
    %c0_59 = arith.constant 0 : index
    %164 = vector.load %arg14[%c0_57, %c0_58, %c0_59] : memref<1x8x32xf32, #tpu.memory_space<vmem>>, vector<1x8x32xf32>
    tpu.vector_store %arg14[%c0_57, %c0_58, %c0_59], %163 {strides = array<i32>} : memref<1x8x32xf32, #tpu.memory_space<vmem>>, vector<1x8x32xf32>,
    return
  }
  func.func @transform_0(%arg0: i32) -> (i32, i32, i32) {
    %c0_i32 = arith.constant 0 : i32
    %c0_i32_0 = arith.constant 0 : i32
    %c0_i32_1 = arith.constant 0 : i32
    return %arg0, %c0_i32, %c0_i32_0 : i32, i32, i32
  }
  func.func @transform_1(%arg0: i32) -> (i32, i32) {
    %c0_i32 = arith.constant 0 : i32
    %c0_i32_0 = arith.constant 0 : i32
    %c0_i32_1 = arith.constant 0 : i32
    return %c0_i32, %c0_i32_0 : i32, i32
  }
  func.func @transform_2(%arg0: i32) -> (i32, i32) {
    %c0_i32 = arith.constant 0 : i32
    %c0_i32_0 = arith.constant 0 : i32
    %c0_i32_1 = arith.constant 0 : i32
    return %c0_i32, %c0_i32_0 : i32, i32
  }
  func.func @transform_3(%arg0: i32) -> (i32, i32) {
    %c0_i32 = arith.constant 0 : i32
    %c0_i32_0 = arith.constant 0 : i32
    %c0_i32_1 = arith.constant 0 : i32
    return %c0_i32, %c0_i32_0 : i32, i32
  }
  func.func @transform_4(%arg0: i32) -> (i32, i32) {
    %c0_i32 = arith.constant 0 : i32
    %c0_i32_0 = arith.constant 0 : i32
    %c0_i32_1 = arith.constant 0 : i32
    return %c0_i32, %c0_i32_0 : i32, i32
  }
  func.func @transform_5(%arg0: i32) -> (i32, i32) {
    %c0_i32 = arith.constant 0 : i32
    %c0_i32_0 = arith.constant 0 : i32
    %c0_i32_1 = arith.constant 0 : i32
    return %c0_i32, %c0_i32_0 : i32, i32
  }
  func.func @transform_6(%arg0: i32) -> (i32, i32) {
    %c0_i32 = arith.constant 0 : i32
    %c0_i32_0 = arith.constant 0 : i32
    %c0_i32_1 = arith.constant 0 : i32
    return %c0_i32, %c0_i32_0 : i32, i32
  }
  func.func @transform_7(%arg0: i32) -> (i32, i32) {
    %c0_i32 = arith.constant 0 : i32
    %c0_i32_0 = arith.constant 0 : i32
    %c0_i32_1 = arith.constant 0 : i32
    return %c0_i32, %c0_i32_0 : i32, i32
  }
  func.func @transform_8(%arg0: i32) -> (i32, i32) {
    %c0_i32 = arith.constant 0 : i32
    %c0_i32_0 = arith.constant 0 : i32
    %c0_i32_1 = arith.constant 0 : i32
    return %c0_i32, %c0_i32_0 : i32, i32
  }
  func.func @transform_9(%arg0: i32) -> (i32, i32) {
    %c0_i32 = arith.constant 0 : i32
    %c0_i32_0 = arith.constant 0 : i32
    %c0_i32_1 = arith.constant 0 : i32
    return %c0_i32, %c0_i32_0 : i32, i32
  }
  func.func @transform_10(%arg0: i32) -> (i32, i32) {
    %c0_i32 = arith.constant 0 : i32
    %c0_i32_0 = arith.constant 0 : i32
    %c0_i32_1 = arith.constant 0 : i32
    return %c0_i32, %c0_i32_0 : i32, i32
  }
  func.func @transform_11(%arg0: i32) -> (i32, i32) {
    %c0_i32 = arith.constant 0 : i32
    %c0_i32_0 = arith.constant 0 : i32
    %c0_i32_1 = arith.constant 0 : i32
    return %c0_i32, %c0_i32_0 : i32, i32
  }
  func.func @transform_12(%arg0: i32) -> (i32, i32) {
    %c0_i32 = arith.constant 0 : i32
    %c0_i32_0 = arith.constant 0 : i32
    %c0_i32_1 = arith.constant 0 : i32
    return %c0_i32, %c0_i32_0 : i32, i32
  }
  func.func @transform_13(%arg0: i32) -> (i32, i32, i32) {
    %c0_i32 = arith.constant 0 : i32
    %c0_i32_0 = arith.constant 0 : i32
    %c0_i32_1 = arith.constant 0 : i32
    return %arg0, %c0_i32, %c0_i32_0 : i32, i32, i32
  }
}

module attributes {stable_mosaic.version = 11 : i64} {
  func.func @kernel(%arg0: i32, %arg1: memref<1x8x32xf32, #tpu.memory_space<vmem>>, %arg2: memref<1x32xf32, #tpu.memory_space<vmem>>, %arg3: memref<1x32xf32, #tpu.memory_space<vmem>>, %arg4: memref<32x96xbf16, #tpu.memory_space<vmem>>, %arg5: memref<1x96xf32, #tpu.memory_space<vmem>>, %arg6: memref<32x32xbf16, #tpu.memory_space<vmem>>, %arg7: memref<1x32xf32, #tpu.memory_space<vmem>>, %arg8: memref<1x32xf32, #tpu.memory_space<vmem>>, %arg9: memref<1x32xf32, #tpu.memory_space<vmem>>, %arg10: memref<32x64xbf16, #tpu.memory_space<vmem>>, %arg11: memref<1x64xf32, #tpu.memory_space<vmem>>, %arg12: memref<64x32xbf16, #tpu.memory_space<vmem>>, %arg13: memref<1x32xf32, #tpu.memory_space<vmem>>, %arg14: memref<1x8x32xf32, #tpu.memory_space<vmem>>) attributes {dimension_semantics = [#tpu.dimension_semantics<parallel>], iteration_bounds = array<i64: 2>, scalar_prefetch = 0 : i64, scratch_operands = 0 : i64, tpu.core_type = #tpu.core_type<tc>, window_params = [{transform_indices = @transform_0, window_bounds = array<i64: 1, 8, 32>}, {pipeline_mode = #tpu.pipeline_mode<synchronous>, transform_indices = @transform_1, window_bounds = array<i64: 1, 32>}, {pipeline_mode = #tpu.pipeline_mode<synchronous>, transform_indices = @transform_2, window_bounds = array<i64: 1, 32>}, {pipeline_mode = #tpu.pipeline_mode<synchronous>, transform_indices = @transform_3, window_bounds = array<i64: 32, 96>}, {pipeline_mode = #tpu.pipeline_mode<synchronous>, transform_indices = @transform_4, window_bounds = array<i64: 1, 96>}, {pipeline_mode = #tpu.pipeline_mode<synchronous>, transform_indices = @transform_5, window_bounds = array<i64: 32, 32>}, {pipeline_mode = #tpu.pipeline_mode<synchronous>, transform_indices = @transform_6, window_bounds = array<i64: 1, 32>}, {pipeline_mode = #tpu.pipeline_mode<synchronous>, transform_indices = @transform_7, window_bounds = array<i64: 1, 32>}, {pipeline_mode = #tpu.pipeline_mode<synchronous>, transform_indices = @transform_8, window_bounds = array<i64: 1, 32>}, {pipeline_mode = #tpu.pipeline_mode<synchronous>, transform_indices = @transform_9, window_bounds = array<i64: 32, 64>}, {pipeline_mode = #tpu.pipeline_mode<synchronous>, transform_indices = @transform_10, window_bounds = array<i64: 1, 64>}, {pipeline_mode = #tpu.pipeline_mode<synchronous>, transform_indices = @transform_11, window_bounds = array<i64: 64, 32>}, {pipeline_mode = #tpu.pipeline_mode<synchronous>, transform_indices = @transform_12, window_bounds = array<i64: 1, 32>}, {transform_indices = @transform_13, window_bounds = array<i64: 1, 8, 32>}]} {
    %c0 = arith.constant 0 : index
    %c0_0 = arith.constant 0 : index
    %c0_1 = arith.constant 0 : index
    %0 = vector.load %arg1[%c0, %c0_0, %c0_1] : memref<1x8x32xf32, #tpu.memory_space<vmem>>, vector<1x8x32xf32>
    %1 = vector.shape_cast %0 : vector<1x8x32xf32> to vector<8x32xf32>
    %c0_2 = arith.constant 0 : index
    %c0_3 = arith.constant 0 : index
    %2 = vector.load %arg2[%c0_2, %c0_3] : memref<1x32xf32, #tpu.memory_space<vmem>>, vector<1x32xf32>
    %c0_4 = arith.constant 0 : index
    %c0_5 = arith.constant 0 : index
    %3 = vector.load %arg3[%c0_4, %c0_5] : memref<1x32xf32, #tpu.memory_space<vmem>>, vector<1x32xf32>
    %cst = arith.constant dense<0.000000e+00> : vector<8xf32>
    %4 = vector.multi_reduction <add>, %1, %cst [1] : vector<8x32xf32> to vector<8xf32>
    %5 = vector.shape_cast %4 : vector<8xf32> to vector<8x1xf32>
    %cst_6 = arith.constant 3.200000e+01 : f32
    %6 = vector.broadcast %cst_6 : f32 to vector<8x1xf32>
    %7 = arith.divf %5, %6 : vector<8x1xf32>
    %8 = vector.broadcast %7 : vector<8x1xf32> to vector<8x32xf32>
    %9 = arith.subf %1, %8 : vector<8x32xf32>
    %10 = arith.mulf %9, %9 : vector<8x32xf32>
    %cst_7 = arith.constant dense<0.000000e+00> : vector<8xf32>
    %11 = vector.multi_reduction <add>, %10, %cst_7 [1] : vector<8x32xf32> to vector<8xf32>
    %12 = vector.shape_cast %11 : vector<8xf32> to vector<8x1xf32>
    %cst_8 = arith.constant 3.200000e+01 : f32
    %13 = vector.broadcast %cst_8 : f32 to vector<8x1xf32>
    %14 = arith.divf %12, %13 : vector<8x1xf32>
    %cst_9 = arith.constant 9.99999974E-6 : f32
    %15 = vector.broadcast %cst_9 : f32 to vector<8x1xf32>
    %16 = arith.addf %14, %15 : vector<8x1xf32>
    %17 = math.rsqrt %16 : vector<8x1xf32>
    %18 = vector.broadcast %17 : vector<8x1xf32> to vector<8x32xf32>
    %19 = arith.mulf %9, %18 : vector<8x32xf32>
    %20 = vector.broadcast %2 : vector<1x32xf32> to vector<8x32xf32>
    %21 = arith.mulf %19, %20 : vector<8x32xf32>
    %22 = vector.broadcast %3 : vector<1x32xf32> to vector<8x32xf32>
    %23 = arith.addf %21, %22 : vector<8x32xf32>
    %24 = arith.truncf %23 : vector<8x32xf32> to vector<8x32xbf16>
    %c0_10 = arith.constant 0 : index
    %c0_11 = arith.constant 0 : index
    %25 = vector.load %arg4[%c0_10, %c0_11] : memref<32x96xbf16, #tpu.memory_space<vmem>>, vector<32x96xbf16>
    %cst_12 = arith.constant dense<0.000000e+00> : vector<8x96xf32>
    %26 = tpu.matmul %24, %25, %cst_12 {dimension_numbers = #tpu.dot_dimension_numbers<[1], [0], [0], [1], [0, 0, 1, 1], [], []>} : vector<8x32xbf16>, vector<32x96xbf16>, vector<8x96xf32> -> vector<8x96xf32>
    %c0_13 = arith.constant 0 : index
    %c0_14 = arith.constant 0 : index
    %27 = vector.load %arg5[%c0_13, %c0_14] : memref<1x96xf32, #tpu.memory_space<vmem>>, vector<1x96xf32>
    %28 = vector.broadcast %27 : vector<1x96xf32> to vector<8x96xf32>
    %29 = arith.addf %26, %28 : vector<8x96xf32>
    %30 = vector.extract_strided_slice %29 {offsets = [0, 0], sizes = [8, 32], strides = [1, 1]} : vector<8x96xf32> to vector<8x32xf32>
    %31 = arith.truncf %30 : vector<8x32xf32> to vector<8x32xbf16>
    %32 = vector.extract_strided_slice %29 {offsets = [0, 32], sizes = [8, 32], strides = [1, 1]} : vector<8x96xf32> to vector<8x32xf32>
    %33 = arith.truncf %32 : vector<8x32xf32> to vector<8x32xbf16>
    %34 = vector.extract_strided_slice %29 {offsets = [0, 64], sizes = [8, 32], strides = [1, 1]} : vector<8x96xf32> to vector<8x32xf32>
    %35 = arith.truncf %34 : vector<8x32xf32> to vector<8x32xbf16>
    %36 = vector.extract_strided_slice %31 {offsets = [0, 0], sizes = [8, 8], strides = [1, 1]} : vector<8x32xbf16> to vector<8x8xbf16>
    %37 = vector.shape_cast %36 : vector<8x8xbf16> to vector<1x8x8xbf16>
    %38 = vector.extract_strided_slice %33 {offsets = [0, 0], sizes = [8, 8], strides = [1, 1]} : vector<8x32xbf16> to vector<8x8xbf16>
    %39 = vector.shape_cast %38 : vector<8x8xbf16> to vector<1x8x8xbf16>
    %40 = vector.extract_strided_slice %35 {offsets = [0, 0], sizes = [8, 8], strides = [1, 1]} : vector<8x32xbf16> to vector<8x8xbf16>
    %41 = vector.shape_cast %40 : vector<8x8xbf16> to vector<1x8x8xbf16>
    "tpu.trace_start"() <{level = 10 : i32, message = "bqd,bkd->bqk"}> : () -> ()
    %cst_15 = arith.constant dense<0.000000e+00> : vector<1x8x8xf32>
    %42 = tpu.matmul %37, %39, %cst_15 {dimension_numbers = #tpu.dot_dimension_numbers<[2], [2], [1], [1], [0, 0, 0, 1, 1, 1], [0], [0]>} : vector<1x8x8xbf16>, vector<1x8x8xbf16>, vector<1x8x8xf32> -> vector<1x8x8xf32>
    "tpu.trace_stop"() : () -> ()
    %cst_16 = arith.constant dense<0xFF800000> : vector<1x8xf32>
    %43 = vector.multi_reduction <maximumf>, %42, %cst_16 [2] : vector<1x8x8xf32> to vector<1x8xf32>
    %44 = vector.shape_cast %43 : vector<1x8xf32> to vector<1x8x1xf32>
    %45 = vector.broadcast %44 : vector<1x8x1xf32> to vector<1x8x8xf32>
    %46 = arith.subf %42, %45 : vector<1x8x8xf32>
    %47 = math.exp %46 : vector<1x8x8xf32>
    %cst_17 = arith.constant dense<0.000000e+00> : vector<1x8xf32>
    %48 = vector.multi_reduction <add>, %47, %cst_17 [2] : vector<1x8x8xf32> to vector<1x8xf32>
    %49 = vector.shape_cast %48 : vector<1x8xf32> to vector<1x8x1xf32>
    %50 = tpu.reciprocal %49 {approx = true} : vector<1x8x1xf32> -> vector<1x8x1xf32>
    %51 = vector.broadcast %50 : vector<1x8x1xf32> to vector<1x8x8xf32>
    %52 = arith.mulf %47, %51 : vector<1x8x8xf32>
    %53 = arith.truncf %52 : vector<1x8x8xf32> to vector<1x8x8xbf16>
    "tpu.trace_start"() <{level = 10 : i32, message = "bqk,bkd->bqd"}> : () -> ()
    %cst_18 = arith.constant dense<0.000000e+00> : vector<1x8x8xf32>
    %54 = tpu.matmul %53, %41, %cst_18 {dimension_numbers = #tpu.dot_dimension_numbers<[2], [1], [1], [2], [0, 0, 0, 1, 1, 2], [0], [0]>} : vector<1x8x8xbf16>, vector<1x8x8xbf16>, vector<1x8x8xf32> -> vector<1x8x8xf32>
    "tpu.trace_stop"() : () -> ()
    %55 = vector.shape_cast %54 : vector<1x8x8xf32> to vector<8x8xf32>
    %56 = vector.extract_strided_slice %31 {offsets = [0, 8], sizes = [8, 8], strides = [1, 1]} : vector<8x32xbf16> to vector<8x8xbf16>
    %57 = vector.shape_cast %56 : vector<8x8xbf16> to vector<1x8x8xbf16>
    %58 = vector.extract_strided_slice %33 {offsets = [0, 8], sizes = [8, 8], strides = [1, 1]} : vector<8x32xbf16> to vector<8x8xbf16>
    %59 = vector.shape_cast %58 : vector<8x8xbf16> to vector<1x8x8xbf16>
    %60 = vector.extract_strided_slice %35 {offsets = [0, 8], sizes = [8, 8], strides = [1, 1]} : vector<8x32xbf16> to vector<8x8xbf16>
    %61 = vector.shape_cast %60 : vector<8x8xbf16> to vector<1x8x8xbf16>
    "tpu.trace_start"() <{level = 10 : i32, message = "bqd,bkd->bqk"}> : () -> ()
    %cst_19 = arith.constant dense<0.000000e+00> : vector<1x8x8xf32>
    %62 = tpu.matmul %57, %59, %cst_19 {dimension_numbers = #tpu.dot_dimension_numbers<[2], [2], [1], [1], [0, 0, 0, 1, 1, 1], [0], [0]>} : vector<1x8x8xbf16>, vector<1x8x8xbf16>, vector<1x8x8xf32> -> vector<1x8x8xf32>
    "tpu.trace_stop"() : () -> ()
    %cst_20 = arith.constant dense<0xFF800000> : vector<1x8xf32>
    %63 = vector.multi_reduction <maximumf>, %62, %cst_20 [2] : vector<1x8x8xf32> to vector<1x8xf32>
    %64 = vector.shape_cast %63 : vector<1x8xf32> to vector<1x8x1xf32>
    %65 = vector.broadcast %64 : vector<1x8x1xf32> to vector<1x8x8xf32>
    %66 = arith.subf %62, %65 : vector<1x8x8xf32>
    %67 = math.exp %66 : vector<1x8x8xf32>
    %cst_21 = arith.constant dense<0.000000e+00> : vector<1x8xf32>
    %68 = vector.multi_reduction <add>, %67, %cst_21 [2] : vector<1x8x8xf32> to vector<1x8xf32>
    %69 = vector.shape_cast %68 : vector<1x8xf32> to vector<1x8x1xf32>
    %70 = tpu.reciprocal %69 {approx = true} : vector<1x8x1xf32> -> vector<1x8x1xf32>
    %71 = vector.broadcast %70 : vector<1x8x1xf32> to vector<1x8x8xf32>
    %72 = arith.mulf %67, %71 : vector<1x8x8xf32>
    %73 = arith.truncf %72 : vector<1x8x8xf32> to vector<1x8x8xbf16>
    "tpu.trace_start"() <{level = 10 : i32, message = "bqk,bkd->bqd"}> : () -> ()
    %cst_22 = arith.constant dense<0.000000e+00> : vector<1x8x8xf32>
    %74 = tpu.matmul %73, %61, %cst_22 {dimension_numbers = #tpu.dot_dimension_numbers<[2], [1], [1], [2], [0, 0, 0, 1, 1, 2], [0], [0]>} : vector<1x8x8xbf16>, vector<1x8x8xbf16>, vector<1x8x8xf32> -> vector<1x8x8xf32>
    "tpu.trace_stop"() : () -> ()
    %75 = vector.shape_cast %74 : vector<1x8x8xf32> to vector<8x8xf32>
    %76 = vector.extract_strided_slice %31 {offsets = [0, 16], sizes = [8, 8], strides = [1, 1]} : vector<8x32xbf16> to vector<8x8xbf16>
    %77 = vector.shape_cast %76 : vector<8x8xbf16> to vector<1x8x8xbf16>
    %78 = vector.extract_strided_slice %33 {offsets = [0, 16], sizes = [8, 8], strides = [1, 1]} : vector<8x32xbf16> to vector<8x8xbf16>
    %79 = vector.shape_cast %78 : vector<8x8xbf16> to vector<1x8x8xbf16>
    %80 = vector.extract_strided_slice %35 {offsets = [0, 16], sizes = [8, 8], strides = [1, 1]} : vector<8x32xbf16> to vector<8x8xbf16>
    %81 = vector.shape_cast %80 : vector<8x8xbf16> to vector<1x8x8xbf16>
    "tpu.trace_start"() <{level = 10 : i32, message = "bqd,bkd->bqk"}> : () -> ()
    %cst_23 = arith.constant dense<0.000000e+00> : vector<1x8x8xf32>
    %82 = tpu.matmul %77, %79, %cst_23 {dimension_numbers = #tpu.dot_dimension_numbers<[2], [2], [1], [1], [0, 0, 0, 1, 1, 1], [0], [0]>} : vector<1x8x8xbf16>, vector<1x8x8xbf16>, vector<1x8x8xf32> -> vector<1x8x8xf32>
    "tpu.trace_stop"() : () -> ()
    %cst_24 = arith.constant dense<0xFF800000> : vector<1x8xf32>
    %83 = vector.multi_reduction <maximumf>, %82, %cst_24 [2] : vector<1x8x8xf32> to vector<1x8xf32>
    %84 = vector.shape_cast %83 : vector<1x8xf32> to vector<1x8x1xf32>
    %85 = vector.broadcast %84 : vector<1x8x1xf32> to vector<1x8x8xf32>
    %86 = arith.subf %82, %85 : vector<1x8x8xf32>
    %87 = math.exp %86 : vector<1x8x8xf32>
    %cst_25 = arith.constant dense<0.000000e+00> : vector<1x8xf32>
    %88 = vector.multi_reduction <add>, %87, %cst_25 [2] : vector<1x8x8xf32> to vector<1x8xf32>
    %89 = vector.shape_cast %88 : vector<1x8xf32> to vector<1x8x1xf32>
    %90 = tpu.reciprocal %89 {approx = true} : vector<1x8x1xf32> -> vector<1x8x1xf32>
    %91 = vector.broadcast %90 : vector<1x8x1xf32> to vector<1x8x8xf32>
    %92 = arith.mulf %87, %91 : vector<1x8x8xf32>
    %93 = arith.truncf %92 : vector<1x8x8xf32> to vector<1x8x8xbf16>
    "tpu.trace_start"() <{level = 10 : i32, message = "bqk,bkd->bqd"}> : () -> ()
    %cst_26 = arith.constant dense<0.000000e+00> : vector<1x8x8xf32>
    %94 = tpu.matmul %93, %81, %cst_26 {dimension_numbers = #tpu.dot_dimension_numbers<[2], [1], [1], [2], [0, 0, 0, 1, 1, 2], [0], [0]>} : vector<1x8x8xbf16>, vector<1x8x8xbf16>, vector<1x8x8xf32> -> vector<1x8x8xf32>
    "tpu.trace_stop"() : () -> ()
    %95 = vector.shape_cast %94 : vector<1x8x8xf32> to vector<8x8xf32>
    %96 = vector.extract_strided_slice %31 {offsets = [0, 24], sizes = [8, 8], strides = [1, 1]} : vector<8x32xbf16> to vector<8x8xbf16>
    %97 = vector.shape_cast %96 : vector<8x8xbf16> to vector<1x8x8xbf16>
    %98 = vector.extract_strided_slice %33 {offsets = [0, 24], sizes = [8, 8], strides = [1, 1]} : vector<8x32xbf16> to vector<8x8xbf16>
    %99 = vector.shape_cast %98 : vector<8x8xbf16> to vector<1x8x8xbf16>
    %100 = vector.extract_strided_slice %35 {offsets = [0, 24], sizes = [8, 8], strides = [1, 1]} : vector<8x32xbf16> to vector<8x8xbf16>
    %101 = vector.shape_cast %100 : vector<8x8xbf16> to vector<1x8x8xbf16>
    "tpu.trace_start"() <{level = 10 : i32, message = "bqd,bkd->bqk"}> : () -> ()
    %cst_27 = arith.constant dense<0.000000e+00> : vector<1x8x8xf32>
    %102 = tpu.matmul %97, %99, %cst_27 {dimension_numbers = #tpu.dot_dimension_numbers<[2], [2], [1], [1], [0, 0, 0, 1, 1, 1], [0], [0]>} : vector<1x8x8xbf16>, vector<1x8x8xbf16>, vector<1x8x8xf32> -> vector<1x8x8xf32>
    "tpu.trace_stop"() : () -> ()
    %cst_28 = arith.constant dense<0xFF800000> : vector<1x8xf32>
    %103 = vector.multi_reduction <maximumf>, %102, %cst_28 [2] : vector<1x8x8xf32> to vector<1x8xf32>
    %104 = vector.shape_cast %103 : vector<1x8xf32> to vector<1x8x1xf32>
    %105 = vector.broadcast %104 : vector<1x8x1xf32> to vector<1x8x8xf32>
    %106 = arith.subf %102, %105 : vector<1x8x8xf32>
    %107 = math.exp %106 : vector<1x8x8xf32>
    %cst_29 = arith.constant dense<0.000000e+00> : vector<1x8xf32>
    %108 = vector.multi_reduction <add>, %107, %cst_29 [2] : vector<1x8x8xf32> to vector<1x8xf32>
    %109 = vector.shape_cast %108 : vector<1x8xf32> to vector<1x8x1xf32>
    %110 = tpu.reciprocal %109 {approx = true} : vector<1x8x1xf32> -> vector<1x8x1xf32>
    %111 = vector.broadcast %110 : vector<1x8x1xf32> to vector<1x8x8xf32>
    %112 = arith.mulf %107, %111 : vector<1x8x8xf32>
    %113 = arith.truncf %112 : vector<1x8x8xf32> to vector<1x8x8xbf16>
    "tpu.trace_start"() <{level = 10 : i32, message = "bqk,bkd->bqd"}> : () -> ()
    %cst_30 = arith.constant dense<0.000000e+00> : vector<1x8x8xf32>
    %114 = tpu.matmul %113, %101, %cst_30 {dimension_numbers = #tpu.dot_dimension_numbers<[2], [1], [1], [2], [0, 0, 0, 1, 1, 2], [0], [0]>} : vector<1x8x8xbf16>, vector<1x8x8xbf16>, vector<1x8x8xf32> -> vector<1x8x8xf32>
    "tpu.trace_stop"() : () -> ()
    %115 = vector.shape_cast %114 : vector<1x8x8xf32> to vector<8x8xf32>
    %116 = tpu.concatenate %55, %75, %95, %115 in 1 : vector<8x8xf32>, vector<8x8xf32>, vector<8x8xf32>, vector<8x8xf32> -> vector<8x32xf32>
    %117 = arith.truncf %116 : vector<8x32xf32> to vector<8x32xbf16>
    %c0_31 = arith.constant 0 : index
    %c0_32 = arith.constant 0 : index
    %118 = vector.load %arg6[%c0_31, %c0_32] : memref<32x32xbf16, #tpu.memory_space<vmem>>, vector<32x32xbf16>
    %cst_33 = arith.constant dense<0.000000e+00> : vector<8x32xf32>
    %119 = tpu.matmul %117, %118, %cst_33 {dimension_numbers = #tpu.dot_dimension_numbers<[1], [0], [0], [1], [0, 0, 1, 1], [], []>} : vector<8x32xbf16>, vector<32x32xbf16>, vector<8x32xf32> -> vector<8x32xf32>
    %120 = arith.addf %1, %119 : vector<8x32xf32>
    %c0_34 = arith.constant 0 : index
    %c0_35 = arith.constant 0 : index
    %121 = vector.load %arg7[%c0_34, %c0_35] : memref<1x32xf32, #tpu.memory_space<vmem>>, vector<1x32xf32>
    %122 = vector.broadcast %121 : vector<1x32xf32> to vector<8x32xf32>
    %123 = arith.addf %120, %122 : vector<8x32xf32>
    %c0_36 = arith.constant 0 : index
    %c0_37 = arith.constant 0 : index
    %124 = vector.load %arg8[%c0_36, %c0_37] : memref<1x32xf32, #tpu.memory_space<vmem>>, vector<1x32xf32>
    %c0_38 = arith.constant 0 : index
    %c0_39 = arith.constant 0 : index
    %125 = vector.load %arg9[%c0_38, %c0_39] : memref<1x32xf32, #tpu.memory_space<vmem>>, vector<1x32xf32>
    %cst_40 = arith.constant dense<0.000000e+00> : vector<8xf32>
    %126 = vector.multi_reduction <add>, %123, %cst_40 [1] : vector<8x32xf32> to vector<8xf32>
    %127 = vector.shape_cast %126 : vector<8xf32> to vector<8x1xf32>
    %cst_41 = arith.constant 3.200000e+01 : f32
    %128 = vector.broadcast %cst_41 : f32 to vector<8x1xf32>
    %129 = arith.divf %127, %128 : vector<8x1xf32>
    %130 = vector.broadcast %129 : vector<8x1xf32> to vector<8x32xf32>
    %131 = arith.subf %123, %130 : vector<8x32xf32>
    %132 = arith.mulf %131, %131 : vector<8x32xf32>
    %cst_42 = arith.constant dense<0.000000e+00> : vector<8xf32>
    %133 = vector.multi_reduction <add>, %132, %cst_42 [1] : vector<8x32xf32> to vector<8xf32>
    %134 = vector.shape_cast %133 : vector<8xf32> to vector<8x1xf32>
    %cst_43 = arith.constant 3.200000e+01 : f32
    %135 = vector.broadcast %cst_43 : f32 to vector<8x1xf32>
    %136 = arith.divf %134, %135 : vector<8x1xf32>
    %cst_44 = arith.constant 9.99999974E-6 : f32
    %137 = vector.broadcast %cst_44 : f32 to vector<8x1xf32>
    %138 = arith.addf %136, %137 : vector<8x1xf32>
    %139 = math.rsqrt %138 : vector<8x1xf32>
    %140 = vector.broadcast %139 : vector<8x1xf32> to vector<8x32xf32>
    %141 = arith.mulf %131, %140 : vector<8x32xf32>
    %142 = vector.broadcast %124 : vector<1x32xf32> to vector<8x32xf32>
    %143 = arith.mulf %141, %142 : vector<8x32xf32>
    %144 = vector.broadcast %125 : vector<1x32xf32> to vector<8x32xf32>
    %145 = arith.addf %143, %144 : vector<8x32xf32>
    %146 = arith.truncf %145 : vector<8x32xf32> to vector<8x32xbf16>
    %cst_45 = arith.constant 0.000000e+00 : f32
    %147 = vector.broadcast %cst_45 : f32 to vector<8x32xf32>
    %c0_46 = arith.constant 0 : index
    %c0_47 = arith.constant 0 : index
    %148 = vector.load %arg10[%c0_46, %c0_47] : memref<32x64xbf16, #tpu.memory_space<vmem>>, vector<32x64xbf16>
    %cst_48 = arith.constant dense<0.000000e+00> : vector<8x64xf32>
    %149 = tpu.matmul %146, %148, %cst_48 {dimension_numbers = #tpu.dot_dimension_numbers<[1], [0], [0], [1], [0, 0, 1, 1], [], []>} : vector<8x32xbf16>, vector<32x64xbf16>, vector<8x64xf32> -> vector<8x64xf32>
    %c0_49 = arith.constant 0 : index
    %c0_50 = arith.constant 0 : index
    %150 = vector.load %arg11[%c0_49, %c0_50] : memref<1x64xf32, #tpu.memory_space<vmem>>, vector<1x64xf32>
    %151 = vector.broadcast %150 : vector<1x64xf32> to vector<8x64xf32>
    %152 = arith.addf %149, %151 : vector<8x64xf32>
    %cst_51 = arith.constant 0.000000e+00 : f32
    %153 = vector.broadcast %cst_51 : f32 to vector<8x64xf32>
    %154 = arith.maximumf %152, %153 : vector<8x64xf32>
    %155 = arith.truncf %154 : vector<8x64xf32> to vector<8x64xbf16>
    %c0_52 = arith.constant 0 : index
    %c0_53 = arith.constant 0 : index
    %156 = vector.load %arg12[%c0_52, %c0_53] : memref<64x32xbf16, #tpu.memory_space<vmem>>, vector<64x32xbf16>
    %cst_54 = arith.constant dense<0.000000e+00> : vector<8x32xf32>
    %157 = tpu.matmul %155, %156, %cst_54 {dimension_numbers = #tpu.dot_dimension_numbers<[1], [0], [0], [1], [0, 0, 1, 1], [], []>} : vector<8x64xbf16>, vector<64x32xbf16>, vector<8x32xf32> -> vector<8x32xf32>
    %158 = arith.addf %147, %157 : vector<8x32xf32>
    %159 = arith.addf %123, %158 : vector<8x32xf32>
    %c0_55 = arith.constant 0 : index
    %c0_56 = arith.constant 0 : index
    %160 = vector.load %arg13[%c0_55, %c0_56] : memref<1x32xf32, #tpu.memory_space<vmem>>, vector<1x32xf32>
    %161 = vector.broadcast %160 : vector<1x32xf32> to vector<8x32xf32>
    %162 = arith.addf %159, %161 : vector<8x32xf32>
    %163 = vector.shape_cast %162 : vector<8x32xf32> to vector<1x8x32xf32>
    %c0_57 = arith.constant 0 : index
    %c0_58 = arith.constant 0 : index
    %c0_59 = arith.constant 0 : index
    %164 = vector.load %arg14[%c0_57, %c0_58, %c0_59] : memref<1x8x32xf32, #tpu.memory_space<vmem>>, vector<1x8x32xf32>
    tpu.vector_store %arg14[%c0_57, %c0_58, %c0_59], %163 {strides = array<i32>} : memref<1x8x32xf32, #tpu.memory_space<vmem>>, vector<1x8x32xf32>,
    return
  }
  func.func @transform_0(%arg0: i32) -> (i32, i32, i32) {
    %c0_i32 = arith.constant 0 : i32
    %c0_i32_0 = arith.constant 0 : i32
    %c0_i32_1 = arith.constant 0 : i32
    return %arg0, %c0_i32, %c0_i32_0 : i32, i32, i32
  }
  func.func @transform_1(%arg0: i32) -> (i32, i32) {
    %c0_i32 = arith.constant 0 : i32
    %c0_i32_0 = arith.constant 0 : i32
    %c0_i32_1 = arith.constant 0 : i32
    return %c0_i32, %c0_i32_0 : i32, i32
  }
  func.func @transform_2(%arg0: i32) -> (i32, i32) {
    %c0_i32 = arith.constant 0 : i32
    %c0_i32_0 = arith.constant 0 : i32
    %c0_i32_1 = arith.constant 0 : i32
    return %c0_i32, %c0_i32_0 : i32, i32
  }
  func.func @transform_3(%arg0: i32) -> (i32, i32) {
    %c0_i32 = arith.constant 0 : i32
    %c0_i32_0 = arith.constant 0 : i32
    %c0_i32_1 = arith.constant 0 : i32
    return %c0_i32, %c0_i32_0 : i32, i32
  }
  func.func @transform_4(%arg0: i32) -> (i32, i32) {
    %c0_i32 = arith.constant 0 : i32
    %c0_i32_0 = arith.constant 0 : i32
    %c0_i32_1 = arith.constant 0 : i32
    return %c0_i32, %c0_i32_0 : i32, i32
  }
  func.func @transform_5(%arg0: i32) -> (i32, i32) {
    %c0_i32 = arith.constant 0 : i32
    %c0_i32_0 = arith.constant 0 : i32
    %c0_i32_1 = arith.constant 0 : i32
    return %c0_i32, %c0_i32_0 : i32, i32
  }
  func.func @transform_6(%arg0: i32) -> (i32, i32) {
    %c0_i32 = arith.constant 0 : i32
    %c0_i32_0 = arith.constant 0 : i32
    %c0_i32_1 = arith.constant 0 : i32
    return %c0_i32, %c0_i32_0 : i32, i32
  }
  func.func @transform_7(%arg0: i32) -> (i32, i32) {
    %c0_i32 = arith.constant 0 : i32
    %c0_i32_0 = arith.constant 0 : i32
    %c0_i32_1 = arith.constant 0 : i32
    return %c0_i32, %c0_i32_0 : i32, i32
  }
  func.func @transform_8(%arg0: i32) -> (i32, i32) {
    %c0_i32 = arith.constant 0 : i32
    %c0_i32_0 = arith.constant 0 : i32
    %c0_i32_1 = arith.constant 0 : i32
    return %c0_i32, %c0_i32_0 : i32, i32
  }
  func.func @transform_9(%arg0: i32) -> (i32, i32) {
    %c0_i32 = arith.constant 0 : i32
    %c0_i32_0 = arith.constant 0 : i32
    %c0_i32_1 = arith.constant 0 : i32
    return %c0_i32, %c0_i32_0 : i32, i32
  }
  func.func @transform_10(%arg0: i32) -> (i32, i32) {
    %c0_i32 = arith.constant 0 : i32
    %c0_i32_0 = arith.constant 0 : i32
    %c0_i32_1 = arith.constant 0 : i32
    return %c0_i32, %c0_i32_0 : i32, i32
  }
  func.func @transform_11(%arg0: i32) -> (i32, i32) {
    %c0_i32 = arith.constant 0 : i32
    %c0_i32_0 = arith.constant 0 : i32
    %c0_i32_1 = arith.constant 0 : i32
    return %c0_i32, %c0_i32_0 : i32, i32
  }
  func.func @transform_12(%arg0: i32) -> (i32, i32) {
    %c0_i32 = arith.constant 0 : i32
    %c0_i32_0 = arith.constant 0 : i32
    %c0_i32_1 = arith.constant 0 : i32
    return %c0_i32, %c0_i32_0 : i32, i32
  }
  func.func @transform_13(%arg0: i32) -> (i32, i32, i32) {
    %c0_i32 = arith.constant 0 : i32
    %c0_i32_0 = arith.constant 0 : i32
    %c0_i32_1 = arith.constant 0 : i32
    return %arg0, %c0_i32, %c0_i32_0 : i32, i32, i32
  }
}

</mosaic_0001>

<llo_original>
// kernel: tpu_custom_call.1
$region0: #{tpu_custom_call.1}
  #allocation0 [shape = 'u32[]', space=smem, size = 0x4, offset = 0x4, fixed_abs, tag = 'smem constant byte address 0x4 - core index']
  #allocation1 [shape = 'u32[144,128]{1,0:T(1,128)}', space=vmem, size = 0x12000, scoped, tag = 'internal scratch']
  %s0 = inlined_call_operand.vmem [shape: f32[2,8,32], index: 0, kind: input, shape index: {}]
  %s1 = inlined_call_operand.vmem [shape: f32[1,32], index: 1, kind: input, shape index: {}]
  %s2 = inlined_call_operand.vmem [shape: f32[1,32], index: 2, kind: input, shape index: {}]
  %s3 = inlined_call_operand.vmem [shape: bf16[32,96], index: 3, kind: input, shape index: {}]
  %s4 = inlined_call_operand.vmem [shape: f32[1,96], index: 4, kind: input, shape index: {}]
  %s5 = inlined_call_operand.vmem [shape: bf16[32,32], index: 5, kind: input, shape index: {}]
  %s6 = inlined_call_operand.vmem [shape: f32[1,32], index: 6, kind: input, shape index: {}]
  %s7 = inlined_call_operand.hbm [shape: f32[1,32], index: 7, kind: input, shape index: {}]
  %s8 = inlined_call_operand.hbm [shape: f32[1,32], index: 8, kind: input, shape index: {}]
  %s9 = inlined_call_operand.hbm [shape: bf16[32,64], index: 9, kind: input, shape index: {}]
  %s10 = inlined_call_operand.hbm [shape: f32[1,64], index: 10, kind: input, shape index: {}]
  %s11 = inlined_call_operand.vmem [shape: bf16[64,32], index: 11, kind: input, shape index: {}]
  %s12 = inlined_call_operand.vmem [shape: f32[1,32], index: 12, kind: input, shape index: {}]
  %s13 = inlined_call_operand.hbm [shape: f32[2,8,32], index: 13, kind: output, shape index: {}]
  %s14 = sld [smem:[#allocation0]]
  $region101: #{tpu_custom_call.1} parent=0
    _
  %s16 = ssub.s32 1, %s14
  %s17 = scalar_select 0, %s16, %s14
  $region1: #{tpu_custom_call.1} parent=0
    #allocation2 [shape = 'u8[512]{0}', space=vmem, size = 0x400, scoped, tag = 'input window, operand 7, single buffered']
    #allocation3 [shape = 's32[2]{0}', space=sflag, size = 0x8, scoped, tag = 'scoped memory for tpu_custom_call.1']
    #allocation4 [shape = 's32[2]{0}', space=sflag, size = 0x8, scoped, tag = 'scoped memory for tpu_custom_call.1']
    #allocation5 [shape = 'u8[512]{0}', space=vmem, size = 0x400, scoped, tag = 'input window, operand 8, single buffered']
    #allocation6 [shape = 's32[1]{0}', space=sflag, size = 0x4, scoped, tag = 'scoped memory for tpu_custom_call.1']
    #allocation7 [shape = 'u8[8192]{0}', space=vmem, size = 0x2000, scoped, tag = 'input window, operand 9, single buffered']
    #allocation8 [shape = 'u8[512]{0}', space=vmem, size = 0x400, scoped, tag = 'input window, operand 10, single buffered']
    #allocation9 [shape = 's32[1]{0}', space=sflag, size = 0x4, scoped, tag = 'scoped memory for tpu_custom_call.1']
    #allocation10 [shape = 'u8[8192]{0}', space=vmem, size = 0x2000, scoped, tag = 'output window, operand 0']
    %18 = vsyncpa [#allocation3], 0
    %19 = vsyncpa [#allocation6], 0
    %20 = vsyncpa [#allocation9], 0
    %21 = vsyncpa [#allocation4], 0
    %s22 = scalar_lea.sflag [#allocation4], 1
    %23 = vsyncpa %s22, 0
    loop: start=0, step=1, limit=4
    $region2: #{tpu_custom_call.1} parent=1 // loop_pre_header
      _
    $region3: #{tpu_custom_call.1} parent=1 // loop_header
      %s25 = sphi 0, %s29
      %p26 = scmp.ge.s32.totalorder %s25, 4
      %s35 = sphi 0, %s37
      %s38 = sphi 0, %s35
      %s39 = sphi 0, %s38
      %s55 = sphi 0, %s39
      %s59 = sphi 0, %s59
      %s61 = sphi 0, %s59
      %s62 = sphi 0, %s61
      %s76 = sphi 0, %s62
      %s80 = sphi 0, %s80
      %s82 = sphi 0, %s80
      %s83 = sphi 0, %s82
      %s97 = sphi 0, %s83
      %s101 = sphi 0, %s101
      %s103 = sphi 0, %s101
      %s104 = sphi 0, %s103
      %s118 = sphi 0, %s104
      %s122 = sphi 0, %s122
      %s124 = sphi 0, %s122
      %s125 = sphi 0, %s124
      %s139 = sphi 0, %s125
      %s143 = sphi 0, %s143
      %s145 = sphi 0, %s143
      %s146 = sphi 0, %s145
      %s160 = sphi 0, %s146
      %s164 = sphi 0, %s164
      %s166 = sphi 0, %s164
      %s167 = sphi 0, %s166
      %s181 = sphi 0, %s167
      %s185 = sphi 0, %s185
      %s187 = sphi 0, %s185
      %s188 = sphi 0, %s187
      %s202 = sphi 0, %s188
      %s206 = sphi 0, %s206
      %s208 = sphi 0, %s206
      %s209 = sphi 0, %s208
      %s223 = sphi 0, %s209
      %s227 = sphi 0, %s227
      %s229 = sphi 0, %s227
      %s230 = sphi 0, %s229
      %s244 = sphi 0, %s230
      %s248 = sphi 0, %s248
      %s250 = sphi 0, %s248
      %s251 = sphi 0, %s250
      %s265 = sphi 0, %s251
      %s269 = sphi 0, %s269
      %s271 = sphi 0, %s269
      %s272 = sphi 0, %s271
      %s286 = sphi 0, %s272
      %s290 = sphi 0, %s290
      %s292 = sphi 0, %s290
      %s293 = sphi 0, %s292
      %s307 = sphi 0, %s293
      %s313 = sphi 0, %s315
      %s316 = sphi 0, %s313
      %s317 = sphi 0, %s316
      %s333 = sphi 0, %s317
    $region4: #{tpu_custom_call.1} parent=1 // loop_header_branch
      %28 = sbr.rel (%p26) target = $region8
    $region5: #{tpu_custom_call.1} parent=1 // loop_body
      %s30 = ssub.s32 %s25, 1
      %s31 = ssub.s32 %s25, 2
      %s32 = sadd.s32 %s25, 1
      %s33 = ssub.s32 %s25, %s32
      %p34 = scmp.eq.s32.totalorder %s33, 0
      %s36 = sadd.s32 %s35, 1
      %s37 = scalar_select %p34, %s35, %s36
      %p40 = pneg %p34
      %p41 = scmp.eq.s32.totalorder %s25, 1
      %p42 = por %p40, %p41
      %p43 = scmp.ne.s32.totalorder %s35, %s38
      %p44 = scmp.eq.s32.totalorder %s25, 0
      %p45 = por %p43, %p44
      %p46 = scmp.ne.s32.totalorder %s35, %s38
      %p47 = scmp.eq.s32.totalorder %s30, 1
      %p48 = por %p46, %p47
      %p49 = scmp.ne.s32.totalorder %s38, %s39
      %p50 = scmp.eq.s32.totalorder %s30, 0
      %p51 = por %p49, %p50
      %p52 = scmp.ne.s32.totalorder %s38, %s39
      %p53 = scmp.eq.s32.totalorder %s31, 1
      %p54 = por %p52, %p53
      %p56 = scmp.ne.s32.totalorder %s39, %s55
      %p57 = scmp.eq.s32.totalorder %s31, 0
      %p58 = por %p56, %p57
      %s60 = sadd.s32 %s59, 1
      %p63 = scmp.eq.s32.totalorder %s25, 1
      %p64 = scmp.ne.s32.totalorder %s59, %s61
      %p65 = scmp.eq.s32.totalorder %s25, 0
      %p66 = por %p64, %p65
      %p67 = scmp.ne.s32.totalorder %s59, %s61
      %p68 = scmp.eq.s32.totalorder %s30, 1
      %p69 = por %p67, %p68
      %p70 = scmp.ne.s32.totalorder %s61, %s62
      %p71 = scmp.eq.s32.totalorder %s30, 0
      %p72 = por %p70, %p71
      %p73 = scmp.ne.s32.totalorder %s61, %s62
      %p74 = scmp.eq.s32.totalorder %s31, 1
      %p75 = por %p73, %p74
      %p77 = scmp.ne.s32.totalorder %s62, %s76
      %p78 = scmp.eq.s32.totalorder %s31, 0
      %p79 = por %p77, %p78
      %s81 = sadd.s32 %s80, 1
      %p84 = scmp.eq.s32.totalorder %s25, 1
      %p85 = scmp.ne.s32.totalorder %s80, %s82
      %p86 = scmp.eq.s32.totalorder %s25, 0
      %p87 = por %p85, %p86
      %p88 = scmp.ne.s32.totalorder %s80, %s82
      %p89 = scmp.eq.s32.totalorder %s30, 1
      %p90 = por %p88, %p89
      %p91 = scmp.ne.s32.totalorder %s82, %s83
      %p92 = scmp.eq.s32.totalorder %s30, 0
      %p93 = por %p91, %p92
      %p94 = scmp.ne.s32.totalorder %s82, %s83
      %p95 = scmp.eq.s32.totalorder %s31, 1
      %p96 = por %p94, %p95
      %p98 = scmp.ne.s32.totalorder %s83, %s97
      %p99 = scmp.eq.s32.totalorder %s31, 0
      %p100 = por %p98, %p99
      %s102 = sadd.s32 %s101, 1
      %p105 = scmp.eq.s32.totalorder %s25, 1
      %p106 = scmp.ne.s32.totalorder %s101, %s103
      %p107 = scmp.eq.s32.totalorder %s25, 0
      %p108 = por %p106, %p107
      %p109 = scmp.ne.s32.totalorder %s101, %s103
      %p110 = scmp.eq.s32.totalorder %s30, 1
      %p111 = por %p109, %p110
      %p112 = scmp.ne.s32.totalorder %s103, %s104
      %p113 = scmp.eq.s32.totalorder %s30, 0
      %p114 = por %p112, %p113
      %p115 = scmp.ne.s32.totalorder %s103, %s104
      %p116 = scmp.eq.s32.totalorder %s31, 1
      %p117 = por %p115, %p116
      %p119 = scmp.ne.s32.totalorder %s104, %s118
      %p120 = scmp.eq.s32.totalorder %s31, 0
      %p121 = por %p119, %p120
      %s123 = sadd.s32 %s122, 1
      %p126 = scmp.eq.s32.totalorder %s25, 1
      %p127 = scmp.ne.s32.totalorder %s122, %s124
      %p128 = scmp.eq.s32.totalorder %s25, 0
      %p129 = por %p127, %p128
      %p130 = scmp.ne.s32.totalorder %s122, %s124
      %p131 = scmp.eq.s32.totalorder %s30, 1
      %p132 = por %p130, %p131
      %p133 = scmp.ne.s32.totalorder %s124, %s125
      %p134 = scmp.eq.s32.totalorder %s30, 0
      %p135 = por %p133, %p134
      %p136 = scmp.ne.s32.totalorder %s124, %s125
      %p137 = scmp.eq.s32.totalorder %s31, 1
      %p138 = por %p136, %p137
      %p140 = scmp.ne.s32.totalorder %s125, %s139
      %p141 = scmp.eq.s32.totalorder %s31, 0
      %p142 = por %p140, %p141
      %s144 = sadd.s32 %s143, 1
      %p147 = scmp.eq.s32.totalorder %s25, 1
      %p148 = scmp.ne.s32.totalorder %s143, %s145
      %p149 = scmp.eq.s32.totalorder %s25, 0
      %p150 = por %p148, %p149
      %p151 = scmp.ne.s32.totalorder %s143, %s145
      %p152 = scmp.eq.s32.totalorder %s30, 1
      %p153 = por %p151, %p152
      %p154 = scmp.ne.s32.totalorder %s145, %s146
      %p155 = scmp.eq.s32.totalorder %s30, 0
      %p156 = por %p154, %p155
      %p157 = scmp.ne.s32.totalorder %s145, %s146
      %p158 = scmp.eq.s32.totalorder %s31, 1
      %p159 = por %p157, %p158
      %p161 = scmp.ne.s32.totalorder %s146, %s160
      %p162 = scmp.eq.s32.totalorder %s31, 0
      %p163 = por %p161, %p162
      %s165 = sadd.s32 %s164, 1
      %p168 = scmp.eq.s32.totalorder %s25, 1
      %p169 = scmp.ne.s32.totalorder %s164, %s166
      %p170 = scmp.eq.s32.totalorder %s25, 0
      %p171 = por %p169, %p170
      %p172 = scmp.ne.s32.totalorder %s164, %s166
      %p173 = scmp.eq.s32.totalorder %s30, 1
      %p174 = por %p172, %p173
      %p175 = scmp.ne.s32.totalorder %s166, %s167
      %p176 = scmp.eq.s32.totalorder %s30, 0
      %p177 = por %p175, %p176
      %p178 = scmp.ne.s32.totalorder %s166, %s167
      %p179 = scmp.eq.s32.totalorder %s31, 1
      %p180 = por %p178, %p179
      %p182 = scmp.ne.s32.totalorder %s167, %s181
      %p183 = scmp.eq.s32.totalorder %s31, 0
      %p184 = por %p182, %p183
      %s186 = sadd.s32 %s185, 1
      %p189 = scmp.eq.s32.totalorder %s25, 1
      %p190 = scmp.ne.s32.totalorder %s185, %s187
      %p191 = scmp.eq.s32.totalorder %s25, 0
      %p192 = por %p190, %p191
      %p193 = scmp.ne.s32.totalorder %s185, %s187
      %p194 = scmp.eq.s32.totalorder %s30, 1
      %p195 = por %p193, %p194
      %p196 = scmp.ne.s32.totalorder %s187, %s188
      %p197 = scmp.eq.s32.totalorder %s30, 0
      %p198 = por %p196, %p197
      %p199 = scmp.ne.s32.totalorder %s187, %s188
      %p200 = scmp.eq.s32.totalorder %s31, 1
      %p201 = por %p199, %p200
      %p203 = scmp.ne.s32.totalorder %s188, %s202
      %p204 = scmp.eq.s32.totalorder %s31, 0
      %p205 = por %p203, %p204
      %s207 = sadd.s32 %s206, 1
      %p210 = scmp.eq.s32.totalorder %s25, 1
      %p211 = scmp.ne.s32.totalorder %s206, %s208
      %p212 = scmp.eq.s32.totalorder %s25, 0
      %p213 = por %p211, %p212
      %p214 = scmp.ne.s32.totalorder %s206, %s208
      %p215 = scmp.eq.s32.totalorder %s30, 1
      %p216 = por %p214, %p215
      %p217 = scmp.ne.s32.totalorder %s208, %s209
      %p218 = scmp.eq.s32.totalorder %s30, 0
      %p219 = por %p217, %p218
      %p220 = scmp.ne.s32.totalorder %s208, %s209
      %p221 = scmp.eq.s32.totalorder %s31, 1
      %p222 = por %p220, %p221
      %p224 = scmp.ne.s32.totalorder %s209, %s223
      %p225 = scmp.eq.s32.totalorder %s31, 0
      %p226 = por %p224, %p225
      %s228 = sadd.s32 %s227, 1
      %p231 = scmp.eq.s32.totalorder %s25, 1
      %p232 = scmp.ne.s32.totalorder %s227, %s229
      %p233 = scmp.eq.s32.totalorder %s25, 0
      %p234 = por %p232, %p233
      %p235 = scmp.ne.s32.totalorder %s227, %s229
      %p236 = scmp.eq.s32.totalorder %s30, 1
      %p237 = por %p235, %p236
      %p238 = scmp.ne.s32.totalorder %s229, %s230
      %p239 = scmp.eq.s32.totalorder %s30, 0
      %p240 = por %p238, %p239
      %p241 = scmp.ne.s32.totalorder %s229, %s230
      %p242 = scmp.eq.s32.totalorder %s31, 1
      %p243 = por %p241, %p242
      %p245 = scmp.ne.s32.totalorder %s230, %s244
      %p246 = scmp.eq.s32.totalorder %s31, 0
      %p247 = por %p245, %p246
      %s249 = sadd.s32 %s248, 1
      %p252 = scmp.eq.s32.totalorder %s25, 1
      %p253 = scmp.ne.s32.totalorder %s248, %s250
      %p254 = scmp.eq.s32.totalorder %s25, 0
      %p255 = por %p253, %p254
      %p256 = scmp.ne.s32.totalorder %s248, %s250
      %p257 = scmp.eq.s32.totalorder %s30, 1
      %p258 = por %p256, %p257
      %p259 = scmp.ne.s32.totalorder %s250, %s251
      %p260 = scmp.eq.s32.totalorder %s30, 0
      %p261 = por %p259, %p260
      %p262 = scmp.ne.s32.totalorder %s250, %s251
      %p263 = scmp.eq.s32.totalorder %s31, 1
      %p264 = por %p262, %p263
      %p266 = scmp.ne.s32.totalorder %s251, %s265
      %p267 = scmp.eq.s32.totalorder %s31, 0
      %p268 = por %p266, %p267
      %s270 = sadd.s32 %s269, 1
      %p273 = scmp.eq.s32.totalorder %s25, 1
      %p274 = scmp.ne.s32.totalorder %s269, %s271
      %p275 = scmp.eq.s32.totalorder %s25, 0
      %p276 = por %p274, %p275
      %p277 = scmp.ne.s32.totalorder %s269, %s271
      %p278 = scmp.eq.s32.totalorder %s30, 1
      %p279 = por %p277, %p278
      %p280 = scmp.ne.s32.totalorder %s271, %s272
      %p281 = scmp.eq.s32.totalorder %s30, 0
      %p282 = por %p280, %p281
      %p283 = scmp.ne.s32.totalorder %s271, %s272
      %p284 = scmp.eq.s32.totalorder %s31, 1
      %p285 = por %p283, %p284
      %p287 = scmp.ne.s32.totalorder %s272, %s286
      %p288 = scmp.eq.s32.totalorder %s31, 0
      %p289 = por %p287, %p288
      %s291 = sadd.s32 %s290, 1
      %p294 = scmp.eq.s32.totalorder %s25, 1
      %p295 = scmp.ne.s32.totalorder %s290, %s292
      %p296 = scmp.eq.s32.totalorder %s25, 0
      %p297 = por %p295, %p296
      %p298 = scmp.ne.s32.totalorder %s290, %s292
      %p299 = scmp.eq.s32.totalorder %s30, 1
      %p300 = por %p298, %p299
      %p301 = scmp.ne.s32.totalorder %s292, %s293
      %p302 = scmp.eq.s32.totalorder %s30, 0
      %p303 = por %p301, %p302
      %p304 = scmp.ne.s32.totalorder %s292, %s293
      %p305 = scmp.eq.s32.totalorder %s31, 1
      %p306 = por %p304, %p305
      %p308 = scmp.ne.s32.totalorder %s293, %s307
      %p309 = scmp.eq.s32.totalorder %s31, 0
      %p310 = por %p308, %p309
      %s311 = ssub.s32 %s25, %s32
      %p312 = scmp.eq.s32.totalorder %s311, 0
      %s314 = sadd.s32 %s313, 1
      %s315 = scalar_select %p312, %s313, %s314
      %p318 = pneg %p312
      %p319 = scmp.eq.s32.totalorder %s25, 1
      %p320 = por %p318, %p319
      %p321 = scmp.ne.s32.totalorder %s313, %s316
      %p322 = scmp.eq.s32.totalorder %s25, 0
      %p323 = por %p321, %p322
      %p324 = scmp.ne.s32.totalorder %s313, %s316
      %p325 = scmp.eq.s32.totalorder %s30, 1
      %p326 = por %p324, %p325
      %p327 = scmp.ne.s32.totalorder %s316, %s317
      %p328 = scmp.eq.s32.totalorder %s30, 0
      %p329 = por %p327, %p328
      %p330 = scmp.ne.s32.totalorder %s316, %s317
      %p331 = scmp.eq.s32.totalorder %s31, 1
      %p332 = por %p330, %p331
      %p334 = scmp.ne.s32.totalorder %s317, %s333
      %p335 = scmp.eq.s32.totalorder %s31, 0
      %p336 = por %p334, %p335
      %p337 = scmp.le.s32.totalorder 1, %s25
      %p338 = scmp.lt.s32.totalorder %s25, 3
      %p339 = pnand %p337, %p338
      %p340 = pneg %p339
      // Predicated region
      $region9: #{tpu_custom_call.1} parent=5 // pred_check
        _
      $region10: #{tpu_custom_call.1} parent=5 // pred_check_branch
        %342 = sbr.rel (%p339) target = $region12
      $region11: #{tpu_custom_call.1} parent=5 // pred_region
        %s343 = ssub.s32 %s25, 1
        // Predicated region
        $region13: #{tpu_custom_call.1} parent=11 // pred_check
          %p344 = pneg %p72
        $region14: #{tpu_custom_call.1} parent=11 // pred_check_branch
          %346 = sbr.rel (%p344) target = $region16
        $region15: #{tpu_custom_call.1} parent=11 // pred_region
          _
        $region16: #{tpu_custom_call.1} parent=11 // pred_fallthru
          _
        // Predicated region
        $region17: #{tpu_custom_call.1} parent=11 // pred_check
          %p347 = pneg %p93
        $region18: #{tpu_custom_call.1} parent=11 // pred_check_branch
          %349 = sbr.rel (%p347) target = $region20
        $region19: #{tpu_custom_call.1} parent=11 // pred_region
          _
        $region20: #{tpu_custom_call.1} parent=11 // pred_fallthru
          _
        // Predicated region
        $region21: #{tpu_custom_call.1} parent=11 // pred_check
          %p350 = pneg %p114
        $region22: #{tpu_custom_call.1} parent=11 // pred_check_branch
          %352 = sbr.rel (%p350) target = $region24
        $region23: #{tpu_custom_call.1} parent=11 // pred_region
          _
        $region24: #{tpu_custom_call.1} parent=11 // pred_fallthru
          _
        // Predicated region
        $region25: #{tpu_custom_call.1} parent=11 // pred_check
          %p353 = pneg %p135
        $region26: #{tpu_custom_call.1} parent=11 // pred_check_branch
          %355 = sbr.rel (%p353) target = $region28
        $region27: #{tpu_custom_call.1} parent=11 // pred_region
          _
        $region28: #{tpu_custom_call.1} parent=11 // pred_fallthru
          _
        // Predicated region
        $region29: #{tpu_custom_call.1} parent=11 // pred_check
          %p356 = pneg %p156
        $region30: #{tpu_custom_call.1} parent=11 // pred_check_branch
          %358 = sbr.rel (%p356) target = $region32
        $region31: #{tpu_custom_call.1} parent=11 // pred_region
          _
        $region32: #{tpu_custom_call.1} parent=11 // pred_fallthru
          _
        // Predicated region
        $region33: #{tpu_custom_call.1} parent=11 // pred_check
          %p359 = pneg %p177
        $region34: #{tpu_custom_call.1} parent=11 // pred_check_branch
          %361 = sbr.rel (%p359) target = $region36
        $region35: #{tpu_custom_call.1} parent=11 // pred_region
          _
        $region36: #{tpu_custom_call.1} parent=11 // pred_fallthru
          _
        // Predicated region
        $region37: #{tpu_custom_call.1} parent=11 // pred_check
          %p362 = pneg %p198
        $region38: #{tpu_custom_call.1} parent=11 // pred_check_branch
          %364 = sbr.rel (%p362) target = $region40
        $region39: #{tpu_custom_call.1} parent=11 // pred_region
          %s366 = ssub.s32 16, 16
          %367 = vsyncadd [#allocation3], %s366
          %s369 = sshll.u32 [#allocation2], 4
          %s370 = int_to_ptr.vmem [resolvable:$true] %s369
          %372 = dma.hbm_to_vmem [thread:$0]  %s7, 16, %s370, [#allocation3]
        $region40: #{tpu_custom_call.1} parent=11 // pred_fallthru
          _
        // Predicated region
        $region41: #{tpu_custom_call.1} parent=11 // pred_check
          %p373 = pneg %p219
        $region42: #{tpu_custom_call.1} parent=11 // pred_check_branch
          %375 = sbr.rel (%p373) target = $region44
        $region43: #{tpu_custom_call.1} parent=11 // pred_region
          %s377 = ssub.s32 16, 16
          %378 = vsyncadd [#allocation6], %s377
          %s380 = sshll.u32 [#allocation5], 4
          %s381 = int_to_ptr.vmem [resolvable:$true] %s380
          %383 = dma.hbm_to_vmem [thread:$0]  %s8, 16, %s381, [#allocation6]
        $region44: #{tpu_custom_call.1} parent=11 // pred_fallthru
          _
        // Predicated region
        $region45: #{tpu_custom_call.1} parent=11 // pred_check
          %p384 = pneg %p240
        $region46: #{tpu_custom_call.1} parent=11 // pred_check_branch
          %386 = sbr.rel (%p384) target = $region48
        $region47: #{tpu_custom_call.1} parent=11 // pred_region
          %s388 = ssub.s32 256, 256
          %389 = vsyncadd [#allocation6], %s388
          %s390 = sshll.u32 [#allocation7], 4
          %s391 = int_to_ptr.vmem [resolvable:$true] %s390
          %396 = dma.hbm_to_vmem [thread:$0]  %s9, 256, %s391, [#allocation6], 64, 64, 4
        $region48: #{tpu_custom_call.1} parent=11 // pred_fallthru
          _
        // Predicated region
        $region49: #{tpu_custom_call.1} parent=11 // pred_check
          %p397 = pneg %p261
        $region50: #{tpu_custom_call.1} parent=11 // pred_check_branch
          %399 = sbr.rel (%p397) target = $region52
        $region51: #{tpu_custom_call.1} parent=11 // pred_region
          %s401 = ssub.s32 16, 16
          %402 = vsyncadd [#allocation9], %s401
          %s404 = sshll.u32 [#allocation8], 4
          %s405 = int_to_ptr.vmem [resolvable:$true] %s404
          %407 = dma.hbm_to_vmem [thread:$0]  %s10, 16, %s405, [#allocation9]
        $region52: #{tpu_custom_call.1} parent=11 // pred_fallthru
          _
        // Predicated region
        $region53: #{tpu_custom_call.1} parent=11 // pred_check
          %p408 = pneg %p282
        $region54: #{tpu_custom_call.1} parent=11 // pred_check_branch
          %410 = sbr.rel (%p408) target = $region56
        $region55: #{tpu_custom_call.1} parent=11 // pred_region
          _
        $region56: #{tpu_custom_call.1} parent=11 // pred_fallthru
          _
        // Predicated region
        $region57: #{tpu_custom_call.1} parent=11 // pred_check
          %p411 = pneg %p303
        $region58: #{tpu_custom_call.1} parent=11 // pred_check_branch
          %413 = sbr.rel (%p411) target = $region60
        $region59: #{tpu_custom_call.1} parent=11 // pred_region
          _
        $region60: #{tpu_custom_call.1} parent=11 // pred_fallthru
          _
      $region12: #{tpu_custom_call.1} parent=5 // pred_fallthru
        _
      %p414 = scmp.lt.s32.totalorder %s25, 2
      // Predicated region
      $region61: #{tpu_custom_call.1} parent=5 // pred_check
        %p415 = pneg %p414
      $region62: #{tpu_custom_call.1} parent=5 // pred_check_branch
        %417 = sbr.rel (%p415) target = $region64
      $region63: #{tpu_custom_call.1} parent=5 // pred_region
        // Predicated region
        $region65: #{tpu_custom_call.1} parent=63 // pred_check
          %p418 = pneg %p45
        $region66: #{tpu_custom_call.1} parent=63 // pred_check_branch
          %420 = sbr.rel (%p418) target = $region68
        $region67: #{tpu_custom_call.1} parent=63 // pred_region
          %p421 = scmp.lt.s32.totalorder %s25, 1
          %s422 = scalar_select %p421, %s25, 1
          %s423 = smul.addr %s422, 8
          %s424 = scalar_lea.vmem %s0, %s423
        $region68: #{tpu_custom_call.1} parent=63 // pred_fallthru
          _
      $region64: #{tpu_custom_call.1} parent=5 // pred_fallthru
        _
      %p425 = scmp.le.s32.totalorder 1, %s25
      %p426 = scmp.lt.s32.totalorder %s25, 3
      %p427 = pnand %p425, %p426
      %p428 = pneg %p427
      // Predicated region
      $region69: #{tpu_custom_call.1} parent=5 // pred_check
        _
      $region70: #{tpu_custom_call.1} parent=5 // pred_check_branch
        %430 = sbr.rel (%p427) target = $region72
      $region71: #{tpu_custom_call.1} parent=5 // pred_region
        %s431 = ssub.s32 %s25, 1
        // Predicated region
        $region73: #{tpu_custom_call.1} parent=71 // pred_check
          %p432 = pneg %p198
        $region74: #{tpu_custom_call.1} parent=71 // pred_check_branch
          %434 = sbr.rel (%p432) target = $region76
        $region75: #{tpu_custom_call.1} parent=71 // pred_region
          %435 = dma.done [#allocation3], 16
        $region76: #{tpu_custom_call.1} parent=71 // pred_fallthru
          _
        // Predicated region
        $region77: #{tpu_custom_call.1} parent=71 // pred_check
          %p436 = pneg %p219
        $region78: #{tpu_custom_call.1} parent=71 // pred_check_branch
          %438 = sbr.rel (%p436) target = $region80
        $region79: #{tpu_custom_call.1} parent=71 // pred_region
          %439 = dma.done [#allocation6], 16
        $region80: #{tpu_custom_call.1} parent=71 // pred_fallthru
          _
        // Predicated region
        $region81: #{tpu_custom_call.1} parent=71 // pred_check
          %p440 = pneg %p240
        $region82: #{tpu_custom_call.1} parent=71 // pred_check_branch
          %442 = sbr.rel (%p440) target = $region84
        $region83: #{tpu_custom_call.1} parent=71 // pred_region
          %443 = dma.done [#allocation6], 256
        $region84: #{tpu_custom_call.1} parent=71 // pred_fallthru
          _
        // Predicated region
        $region85: #{tpu_custom_call.1} parent=71 // pred_check
          %p444 = pneg %p261
        $region86: #{tpu_custom_call.1} parent=71 // pred_check_branch
          %446 = sbr.rel (%p444) target = $region88
        $region87: #{tpu_custom_call.1} parent=71 // pred_region
          %447 = dma.done [#allocation9], 16
        $region88: #{tpu_custom_call.1} parent=71 // pred_fallthru
          _
        %p448 = scmp.lt.s32.totalorder %s30, 1
        %s449 = scalar_select %p448, %s30, 1
        %s450 = smul.addr %s449, 8
        %s451 = scalar_lea.vmem %s0, %s450
        %p452 = pneg %p51
        %p453 = pneg %p48
        %p454 = pneg %p72
        %p455 = pneg %p69
        %p456 = pneg %p93
        %p457 = pneg %p90
        %p458 = pneg %p114
        %p459 = pneg %p111
        %p460 = pneg %p135
        %p461 = pneg %p132
        %p462 = pneg %p156
        %p463 = pneg %p153
        %p464 = pneg %p177
        %p465 = pneg %p174
        %p466 = pneg %p198
        %p467 = pneg %p195
        %p468 = pneg %p219
        %p469 = pneg %p216
        %p470 = pneg %p240
        %p471 = pneg %p237
        %p472 = pneg %p261
        %p473 = pneg %p258
        %p474 = pneg %p282
        %p475 = pneg %p279
        %p476 = pneg %p303
        %p477 = pneg %p300
        %p478 = pneg %p329
        %p479 = pneg %p326
        %s480 = sand.u32 %s316, 1
        %s481 = scalar_lea.sflag [#allocation4], %s480
        %s482 = sand.u32 %s316, 1
        %s483 = smul.addr %s482, 8
        %s484 = scalar_lea.vmem [#allocation10], %s483
        %p485 = scmp.lt.s32.totalorder %s30, 1
        %s486 = scalar_select %p485, %s30, 1
        %s487 = smul.addr %s486, 8
        %s488 = scalar_lea.vmem %s0, %s487
        %v490 = vld [vmem:[%s488] sm:$0xff]
        %v491 = vld [vmem:[%s1] sm:$0x1]
        %v492 = vld [vmem:[%s2] sm:$0x1]
        %vm493 = vcmask 261120
        %v494 = vsel %vm493, %v490, 0.0
        %495 = vadd.xlane.f32.xlu0 %v494
        %v496 = vpop.xlane.xlu0 %495
        %v497 = vrcp.pop 32.0
        %v498 = vmul.f32 %v496, %v497
        %v499 = vsub.f32 %v490, %v498
        %v500 = vmul.f32 %v499, %v499
        %v501 = vsel %vm493, %v500, 0.0
        %502 = vadd.xlane.f32.xlu0 %v501
        %v503 = vpop.xlane.xlu0 %502
        %v504 = vmul.f32 %v503, %v497
        %v505 = vadd.f32 %v504, 1e-05
        %v506 = vrsqrt.pop %v505
        %v507 = vmul.f32 %v499, %v506
        %v509 = vlaneseq
        %v510 = vshrl.u32 %v509, 7
        %v511 = vsub.s32 0, %v510
        %v512 = vrot.slane %v491, %v511
        %v514 = vmul.f32 %v507, %v512
        %v516 = vlaneseq
        %v517 = vshrl.u32 %v516, 7
        %v518 = vsub.s32 0, %v517
        %v519 = vrot.slane %v492, %v518
        %v521 = vadd.f32 %v514, %v519
        %v522 = vpack.c.bf16 %v521, %v521
        %v523 = vld [vmem:[%s3] sm:$0xf]
        %v524 = vld [vmem:[%s3 + $0x4] sm:$0xf]
        %v525 = vld [vmem:[%s3 + $0x8] sm:$0xf]
        %v526 = vld [vmem:[%s3 + $0xc] sm:$0xf]
        %v527 = vld [vmem:[%s4] sm:$0x1]
        %v529 = vlaneseq
        %v530 = vshrl.u32 %v529, 7
        %v531 = vsub.s32 0, %v530
        %v532 = vrot.slane %v527, %v531
        %v538 = vunpack.c.l.b16 %v523
        %v539 = vunpack.c.l.b16 %v524
        %v540 = vunpack.c.l.b16 %v525
        %v541 = vunpack.c.l.b16 %v526
        %v542 = vpack.c.b16 %v539, %v538
        %v543 = vpack.c.b16 %v541, %v540
        %v547 = vsel %vm493, %v522, 0
        %549 = vmatprep.subr.bf16.mxu0 0
        %550 = vmatpush1.bf16.msra.mxu0 0
        %551 = vmatprep.subr.bf16.mxu0 0
        %552 = vmatpush1.bf16.msra.mxu0 0
        %553 = vmatprep.subr.bf16.mxu0 0
        %554 = vmatpush1.bf16.msra.mxu0 0
        %555 = vmatprep.subr.bf16.mxu0 0
        %556 = vmatpush1.bf16.msra.mxu0 0
        %557 = vmatprep.subr.bf16.mxu0 0
        %558 = vmatpush1.bf16.msra.mxu0 0
        %559 = vmatprep.subr.bf16.mxu0 0
        %560 = vmatpush1.bf16.msra.mxu0 0
        %561 = vmatprep.subr.bf16.mxu0 0
        %562 = vmatpush1.bf16.msra.mxu0 %v543
        %563 = vmatprep.subr.bf16.mxu0 0
        %564 = vmatpush1.bf16.msra.mxu0 %v542
        %565 = vmatprep.subr.bf16.mxu0 0
        %566 = vmatpush2.bf16.msra.mxu0 0
        %567 = vmatprep.subr.bf16.mxu0 0
        %568 = vmatpush2.bf16.msra.mxu0 0
        %569 = vmatprep.subr.bf16.mxu0 0
        %570 = vmatpush2.bf16.msra.mxu0 0
        %571 = vmatprep.subr.bf16.mxu0 0
        %572 = vmatpush2.bf16.msra.mxu0 0
        %573 = vmatprep.subr.bf16.mxu0 0
        %574 = vmatpush2.bf16.msra.mxu0 0
        %575 = vmatprep.subr.bf16.mxu0 0
        %576 = vmatpush2.bf16.msra.mxu0 0
        %577 = vmatprep.subr.bf16.mxu0 0
        %578 = vmatpush2.bf16.msra.mxu0 0
        %579 = vmatprep.subr.bf16.mxu0 0
        %580 = vmatpush2.bf16.msra.mxu0 0
        %581 = vmatprep.mubr.bf16.mxu0 0
        %582 = vmatmul.mubr.bf16.gmra.mxu0 %v547
        %v583 = vpop.f32.mrf.mxu0
        %v584 = vadd.f32 %v532, %v583
        %v585 = vpop.f32.mrf.mxu0
        %v586 = vpop.f32.mrf.mxu0
        %v587 = vpop.f32.mrf.mxu0
        %588 = vdwg.mxu0
        %v589 = vpack.c.bf16 %v584, %v584
        %591 = vrot.lane.b32.xlu0 %v589, 96
        %v592 = vpop.permute.xlu0 %591
        %vm593 = vcmask 64512
        %v595 = vsel %vm593, %v589, 0
        %v598 = vsel %vm593, %v592, 0
        %600 = vmatprep.subr.bf16.mxu0 0
        %601 = vmatpush1.bf16.xpose.msra.mxu0 0
        %602 = vmatprep.subr.bf16.mxu0 0
        %603 = vmatpush1.bf16.xpose.msra.mxu0 0
        %604 = vmatprep.subr.bf16.mxu0 0
        %605 = vmatpush1.bf16.xpose.msra.mxu0 0
        %606 = vmatprep.subr.bf16.mxu0 0
        %607 = vmatpush1.bf16.xpose.msra.mxu0 0
        %608 = vmatprep.subr.bf16.mxu0 0
        %609 = vmatpush1.bf16.xpose.msra.mxu0 0
        %610 = vmatprep.subr.bf16.mxu0 0
        %611 = vmatpush1.bf16.xpose.msra.mxu0 0
        %612 = vmatprep.subr.bf16.mxu0 0
        %613 = vmatpush1.bf16.xpose.msra.mxu0 0
        %614 = vmatprep.subr.bf16.mxu0 0
        %615 = vmatpush1.bf16.xpose.msra.mxu0 %v598
        %616 = vmatprep.subr.bf16.mxu0 0
        %617 = vmatpush2.bf16.xpose.msra.mxu0 0
        %618 = vmatprep.subr.bf16.mxu0 0
        %619 = vmatpush2.bf16.xpose.msra.mxu0 0
        %620 = vmatprep.subr.bf16.mxu0 0
        %621 = vmatpush2.bf16.xpose.msra.mxu0 0
        %622 = vmatprep.subr.bf16.mxu0 0
        %623 = vmatpush2.bf16.xpose.msra.mxu0 0
        %624 = vmatprep.subr.bf16.mxu0 0
        %625 = vmatpush2.bf16.xpose.msra.mxu0 0
        %626 = vmatprep.subr.bf16.mxu0 0
        %627 = vmatpush2.bf16.xpose.msra.mxu0 0
        %628 = vmatprep.subr.bf16.mxu0 0
        %629 = vmatpush2.bf16.xpose.msra.mxu0 0
        %630 = vmatprep.subr.bf16.mxu0 0
        %631 = vmatpush2.bf16.xpose.msra.mxu0 0
        %632 = vmatprep.mubr.bf16.mxu0 0
        %633 = vmatmul.mubr.bf16.gmra.mxu0 %v595
        %v634 = vpop.f32.mrf.mxu0
        %v635 = vadd.f32 0.0, %v634
        %v636 = vpop.f32.mrf.mxu0
        %v637 = vpop.f32.mrf.mxu0
        %v638 = vpop.f32.mrf.mxu0
        %639 = vdwg.mxu0
        %v640 = vsel %vm593, %v635, -inf
        %641 = vmax.xlane.f32.xlu0 %v640
        %v642 = vpop.xlane.xlu0 %641
        %v643 = vsub.f32 %v635, %v642
        %v644 = vmul.f32 %v643, 1.442695
        %v645 = vpow.pop %v644
        %v646 = vsel %vm593, %v645, 0.0
        %647 = vadd.xlane.f32.xlu0 %v646
        %v648 = vpop.xlane.xlu0 %647
        %v649 = vrcp.pop %v648
        %v650 = vmul.f32 %v645, %v649
        %v651 = vpack.c.bf16 %v650, %v650
        %652 = vrot.lane.b32.xlu0 %v589, 64
        %v653 = vpop.permute.xlu0 %652
        %v655 = vsel %vm593, %v651, 0
        %vm657 = vcmask 1043456
        %v659 = vsel %vm657, %v653, 0
        %661 = vmatprep.subr.bf16.mxu0 0
        %662 = vmatpush1.bf16.msra.mxu0 0
        %663 = vmatprep.subr.bf16.mxu0 0
        %664 = vmatpush1.bf16.msra.mxu0 0
        %665 = vmatprep.subr.bf16.mxu0 0
        %666 = vmatpush1.bf16.msra.mxu0 0
        %667 = vmatprep.subr.bf16.mxu0 0
        %668 = vmatpush1.bf16.msra.mxu0 0
        %669 = vmatprep.subr.bf16.mxu0 0
        %670 = vmatpush1.bf16.msra.mxu0 0
        %671 = vmatprep.subr.bf16.mxu0 0
        %672 = vmatpush1.bf16.msra.mxu0 0
        %673 = vmatprep.subr.bf16.mxu0 0
        %674 = vmatpush1.bf16.msra.mxu0 0
        %675 = vmatprep.subr.bf16.mxu0 0
        %676 = vmatpush1.bf16.msra.mxu0 %v659
        %677 = vmatprep.subr.bf16.mxu0 0
        %678 = vmatpush2.bf16.msra.mxu0 0
        %679 = vmatprep.subr.bf16.mxu0 0
        %680 = vmatpush2.bf16.msra.mxu0 0
        %681 = vmatprep.subr.bf16.mxu0 0
        %682 = vmatpush2.bf16.msra.mxu0 0
        %683 = vmatprep.subr.bf16.mxu0 0
        %684 = vmatpush2.bf16.msra.mxu0 0
        %685 = vmatprep.subr.bf16.mxu0 0
        %686 = vmatpush2.bf16.msra.mxu0 0
        %687 = vmatprep.subr.bf16.mxu0 0
        %688 = vmatpush2.bf16.msra.mxu0 0
        %689 = vmatprep.subr.bf16.mxu0 0
        %690 = vmatpush2.bf16.msra.mxu0 0
        %691 = vmatprep.subr.bf16.mxu0 0
        %692 = vmatpush2.bf16.msra.mxu0 0
        %693 = vmatprep.mubr.bf16.mxu0 0
        %694 = vmatmul.mubr.bf16.gmra.mxu0 %v655
        %v695 = vpop.f32.mrf.mxu0
        %v696 = vadd.f32 0.0, %v695
        %v697 = vpop.f32.mrf.mxu0
        %v698 = vpop.f32.mrf.mxu0
        %v699 = vpop.f32.mrf.mxu0
        %700 = vdwg.mxu0
        %701 = vrot.lane.b32.xlu0 %v589, 120
        %v702 = vpop.permute.xlu0 %701
        %703 = vrot.lane.b32.xlu0 %v589, 88
        %v704 = vpop.permute.xlu0 %703
        %v706 = vsel %vm593, %v702, 0
        %v709 = vsel %vm593, %v704, 0
        %711 = vmatprep.subr.bf16.mxu0 0
        %712 = vmatpush1.bf16.xpose.msra.mxu0 0
        %713 = vmatprep.subr.bf16.mxu0 0
        %714 = vmatpush1.bf16.xpose.msra.mxu0 0
        %715 = vmatprep.subr.bf16.mxu0 0
        %716 = vmatpush1.bf16.xpose.msra.mxu0 0
        %717 = vmatprep.subr.bf16.mxu0 0
        %718 = vmatpush1.bf16.xpose.msra.mxu0 0
        %719 = vmatprep.subr.bf16.mxu0 0
        %720 = vmatpush1.bf16.xpose.msra.mxu0 0
        %721 = vmatprep.subr.bf16.mxu0 0
        %722 = vmatpush1.bf16.xpose.msra.mxu0 0
        %723 = vmatprep.subr.bf16.mxu0 0
        %724 = vmatpush1.bf16.xpose.msra.mxu0 0
        %725 = vmatprep.subr.bf16.mxu0 0
        %726 = vmatpush1.bf16.xpose.msra.mxu0 %v709
        %727 = vmatprep.subr.bf16.mxu0 0
        %728 = vmatpush2.bf16.xpose.msra.mxu0 0
        %729 = vmatprep.subr.bf16.mxu0 0
        %730 = vmatpush2.bf16.xpose.msra.mxu0 0
        %731 = vmatprep.subr.bf16.mxu0 0
        %732 = vmatpush2.bf16.xpose.msra.mxu0 0
        %733 = vmatprep.subr.bf16.mxu0 0
        %734 = vmatpush2.bf16.xpose.msra.mxu0 0
        %735 = vmatprep.subr.bf16.mxu0 0
        %736 = vmatpush2.bf16.xpose.msra.mxu0 0
        %737 = vmatprep.subr.bf16.mxu0 0
        %738 = vmatpush2.bf16.xpose.msra.mxu0 0
        %739 = vmatprep.subr.bf16.mxu0 0
        %740 = vmatpush2.bf16.xpose.msra.mxu0 0
        %741 = vmatprep.subr.bf16.mxu0 0
        %742 = vmatpush2.bf16.xpose.msra.mxu0 0
        %743 = vmatprep.mubr.bf16.mxu0 0
        %744 = vmatmul.mubr.bf16.gmra.mxu0 %v706
        %v745 = vpop.f32.mrf.mxu0
        %v746 = vadd.f32 0.0, %v745
        %v747 = vpop.f32.mrf.mxu0
        %v748 = vpop.f32.mrf.mxu0
        %v749 = vpop.f32.mrf.mxu0
        %750 = vdwg.mxu0
        %v751 = vsel %vm593, %v746, -inf
        %752 = vmax.xlane.f32.xlu0 %v751
        %v753 = vpop.xlane.xlu0 %752
        %v754 = vsub.f32 %v746, %v753
        %v755 = vmul.f32 %v754, 1.442695
        %v756 = vpow.pop %v755
        %v757 = vsel %vm593, %v756, 0.0
        %758 = vadd.xlane.f32.xlu0 %v757
        %v759 = vpop.xlane.xlu0 %758
        %v760 = vrcp.pop %v759
        %v761 = vmul.f32 %v756, %v760
        %v762 = vpack.c.bf16 %v761, %v761
        %763 = vrot.lane.b32.xlu0 %v589, 56
        %v764 = vpop.permute.xlu0 %763
        %v766 = vsel %vm593, %v762, 0
        %v769 = vsel %vm657, %v764, 0
        %771 = vmatprep.subr.bf16.mxu0 0
        %772 = vmatpush1.bf16.msra.mxu0 0
        %773 = vmatprep.subr.bf16.mxu0 0
        %774 = vmatpush1.bf16.msra.mxu0 0
        %775 = vmatprep.subr.bf16.mxu0 0
        %776 = vmatpush1.bf16.msra.mxu0 0
        %777 = vmatprep.subr.bf16.mxu0 0
        %778 = vmatpush1.bf16.msra.mxu0 0
        %779 = vmatprep.subr.bf16.mxu0 0
        %780 = vmatpush1.bf16.msra.mxu0 0
        %781 = vmatprep.subr.bf16.mxu0 0
        %782 = vmatpush1.bf16.msra.mxu0 0
        %783 = vmatprep.subr.bf16.mxu0 0
        %784 = vmatpush1.bf16.msra.mxu0 0
        %785 = vmatprep.subr.bf16.mxu0 0
        %786 = vmatpush1.bf16.msra.mxu0 %v769
        %787 = vmatprep.subr.bf16.mxu0 0
        %788 = vmatpush2.bf16.msra.mxu0 0
        %789 = vmatprep.subr.bf16.mxu0 0
        %790 = vmatpush2.bf16.msra.mxu0 0
        %791 = vmatprep.subr.bf16.mxu0 0
        %792 = vmatpush2.bf16.msra.mxu0 0
        %793 = vmatprep.subr.bf16.mxu0 0
        %794 = vmatpush2.bf16.msra.mxu0 0
        %795 = vmatprep.subr.bf16.mxu0 0
        %796 = vmatpush2.bf16.msra.mxu0 0
        %797 = vmatprep.subr.bf16.mxu0 0
        %798 = vmatpush2.bf16.msra.mxu0 0
        %799 = vmatprep.subr.bf16.mxu0 0
        %800 = vmatpush2.bf16.msra.mxu0 0
        %801 = vmatprep.subr.bf16.mxu0 0
        %802 = vmatpush2.bf16.msra.mxu0 0
        %803 = vmatprep.mubr.bf16.mxu0 0
        %804 = vmatmul.mubr.bf16.gmra.mxu0 %v766
        %v805 = vpop.f32.mrf.mxu0
        %v806 = vadd.f32 0.0, %v805
        %v807 = vpop.f32.mrf.mxu0
        %v808 = vpop.f32.mrf.mxu0
        %v809 = vpop.f32.mrf.mxu0
        %810 = vdwg.mxu0
        %811 = vrot.lane.b32.xlu0 %v589, 112
        %v812 = vpop.permute.xlu0 %811
        %813 = vrot.lane.b32.xlu0 %v589, 80
        %v814 = vpop.permute.xlu0 %813
        %v816 = vsel %vm593, %v812, 0
        %v819 = vsel %vm593, %v814, 0
        %821 = vmatprep.subr.bf16.mxu0 0
        %822 = vmatpush1.bf16.xpose.msra.mxu0 0
        %823 = vmatprep.subr.bf16.mxu0 0
        %824 = vmatpush1.bf16.xpose.msra.mxu0 0
        %825 = vmatprep.subr.bf16.mxu0 0
        %826 = vmatpush1.bf16.xpose.msra.mxu0 0
        %827 = vmatprep.subr.bf16.mxu0 0
        %828 = vmatpush1.bf16.xpose.msra.mxu0 0
        %829 = vmatprep.subr.bf16.mxu0 0
        %830 = vmatpush1.bf16.xpose.msra.mxu0 0
        %831 = vmatprep.subr.bf16.mxu0 0
        %832 = vmatpush1.bf16.xpose.msra.mxu0 0
        %833 = vmatprep.subr.bf16.mxu0 0
        %834 = vmatpush1.bf16.xpose.msra.mxu0 0
        %835 = vmatprep.subr.bf16.mxu0 0
        %836 = vmatpush1.bf16.xpose.msra.mxu0 %v819
        %837 = vmatprep.subr.bf16.mxu0 0
        %838 = vmatpush2.bf16.xpose.msra.mxu0 0
        %839 = vmatprep.subr.bf16.mxu0 0
        %840 = vmatpush2.bf16.xpose.msra.mxu0 0
        %841 = vmatprep.subr.bf16.mxu0 0
        %842 = vmatpush2.bf16.xpose.msra.mxu0 0
        %843 = vmatprep.subr.bf16.mxu0 0
        %844 = vmatpush2.bf16.xpose.msra.mxu0 0
        %845 = vmatprep.subr.bf16.mxu0 0
        %846 = vmatpush2.bf16.xpose.msra.mxu0 0
        %847 = vmatprep.subr.bf16.mxu0 0
        %848 = vmatpush2.bf16.xpose.msra.mxu0 0
        %849 = vmatprep.subr.bf16.mxu0 0
        %850 = vmatpush2.bf16.xpose.msra.mxu0 0
        %851 = vmatprep.subr.bf16.mxu0 0
        %852 = vmatpush2.bf16.xpose.msra.mxu0 0
        %853 = vmatprep.mubr.bf16.mxu0 0
        %854 = vmatmul.mubr.bf16.gmra.mxu0 %v816
        %v855 = vpop.f32.mrf.mxu0
        %v856 = vadd.f32 0.0, %v855
        %v857 = vpop.f32.mrf.mxu0
        %v858 = vpop.f32.mrf.mxu0
        %v859 = vpop.f32.mrf.mxu0
        %860 = vdwg.mxu0
        %v861 = vsel %vm593, %v856, -inf
        %862 = vmax.xlane.f32.xlu0 %v861
        %v863 = vpop.xlane.xlu0 %862
        %v864 = vsub.f32 %v856, %v863
        %v865 = vmul.f32 %v864, 1.442695
        %v866 = vpow.pop %v865
        %v867 = vsel %vm593, %v866, 0.0
        %868 = vadd.xlane.f32.xlu0 %v867
        %v869 = vpop.xlane.xlu0 %868
        %v870 = vrcp.pop %v869
        %v871 = vmul.f32 %v866, %v870
        %v872 = vpack.c.bf16 %v871, %v871
        %873 = vrot.lane.b32.xlu0 %v589, 48
        %v874 = vpop.permute.xlu0 %873
        %v876 = vsel %vm593, %v872, 0
        %v879 = vsel %vm657, %v874, 0
        %881 = vmatprep.subr.bf16.mxu0 0
        %882 = vmatpush1.bf16.msra.mxu0 0
        %883 = vmatprep.subr.bf16.mxu0 0
        %884 = vmatpush1.bf16.msra.mxu0 0
        %885 = vmatprep.subr.bf16.mxu0 0
        %886 = vmatpush1.bf16.msra.mxu0 0
        %887 = vmatprep.subr.bf16.mxu0 0
        %888 = vmatpush1.bf16.msra.mxu0 0
        %889 = vmatprep.subr.bf16.mxu0 0
        %890 = vmatpush1.bf16.msra.mxu0 0
        %891 = vmatprep.subr.bf16.mxu0 0
        %892 = vmatpush1.bf16.msra.mxu0 0
        %893 = vmatprep.subr.bf16.mxu0 0
        %894 = vmatpush1.bf16.msra.mxu0 0
        %895 = vmatprep.subr.bf16.mxu0 0
        %896 = vmatpush1.bf16.msra.mxu0 %v879
        %897 = vmatprep.subr.bf16.mxu0 0
        %898 = vmatpush2.bf16.msra.mxu0 0
        %899 = vmatprep.subr.bf16.mxu0 0
        %900 = vmatpush2.bf16.msra.mxu0 0
        %901 = vmatprep.subr.bf16.mxu0 0
        %902 = vmatpush2.bf16.msra.mxu0 0
        %903 = vmatprep.subr.bf16.mxu0 0
        %904 = vmatpush2.bf16.msra.mxu0 0
        %905 = vmatprep.subr.bf16.mxu0 0
        %906 = vmatpush2.bf16.msra.mxu0 0
        %907 = vmatprep.subr.bf16.mxu0 0
        %908 = vmatpush2.bf16.msra.mxu0 0
        %909 = vmatprep.subr.bf16.mxu0 0
        %910 = vmatpush2.bf16.msra.mxu0 0
        %911 = vmatprep.subr.bf16.mxu0 0
        %912 = vmatpush2.bf16.msra.mxu0 0
        %913 = vmatprep.mubr.bf16.mxu0 0
        %914 = vmatmul.mubr.bf16.gmra.mxu0 %v876
        %v915 = vpop.f32.mrf.mxu0
        %v916 = vadd.f32 0.0, %v915
        %v917 = vpop.f32.mrf.mxu0
        %v918 = vpop.f32.mrf.mxu0
        %v919 = vpop.f32.mrf.mxu0
        %920 = vdwg.mxu0
        %921 = vrot.lane.b32.xlu0 %v589, 104
        %v922 = vpop.permute.xlu0 %921
        %923 = vrot.lane.b32.xlu0 %v589, 72
        %v924 = vpop.permute.xlu0 %923
        %v926 = vsel %vm593, %v922, 0
        %v929 = vsel %vm593, %v924, 0
        %931 = vmatprep.subr.bf16.mxu0 0
        %932 = vmatpush1.bf16.xpose.msra.mxu0 0
        %933 = vmatprep.subr.bf16.mxu0 0
        %934 = vmatpush1.bf16.xpose.msra.mxu0 0
        %935 = vmatprep.subr.bf16.mxu0 0
        %936 = vmatpush1.bf16.xpose.msra.mxu0 0
        %937 = vmatprep.subr.bf16.mxu0 0
        %938 = vmatpush1.bf16.xpose.msra.mxu0 0
        %939 = vmatprep.subr.bf16.mxu0 0
        %940 = vmatpush1.bf16.xpose.msra.mxu0 0
        %941 = vmatprep.subr.bf16.mxu0 0
        %942 = vmatpush1.bf16.xpose.msra.mxu0 0
        %943 = vmatprep.subr.bf16.mxu0 0
        %944 = vmatpush1.bf16.xpose.msra.mxu0 0
        %945 = vmatprep.subr.bf16.mxu0 0
        %946 = vmatpush1.bf16.xpose.msra.mxu0 %v929
        %947 = vmatprep.subr.bf16.mxu0 0
        %948 = vmatpush2.bf16.xpose.msra.mxu0 0
        %949 = vmatprep.subr.bf16.mxu0 0
        %950 = vmatpush2.bf16.xpose.msra.mxu0 0
        %951 = vmatprep.subr.bf16.mxu0 0
        %952 = vmatpush2.bf16.xpose.msra.mxu0 0
        %953 = vmatprep.subr.bf16.mxu0 0
        %954 = vmatpush2.bf16.xpose.msra.mxu0 0
        %955 = vmatprep.subr.bf16.mxu0 0
        %956 = vmatpush2.bf16.xpose.msra.mxu0 0
        %957 = vmatprep.subr.bf16.mxu0 0
        %958 = vmatpush2.bf16.xpose.msra.mxu0 0
        %959 = vmatprep.subr.bf16.mxu0 0
        %960 = vmatpush2.bf16.xpose.msra.mxu0 0
        %961 = vmatprep.subr.bf16.mxu0 0
        %962 = vmatpush2.bf16.xpose.msra.mxu0 0
        %963 = vmatprep.mubr.bf16.mxu0 0
        %964 = vmatmul.mubr.bf16.gmra.mxu0 %v926
        %v965 = vpop.f32.mrf.mxu0
        %v966 = vadd.f32 0.0, %v965
        %v967 = vpop.f32.mrf.mxu0
        %v968 = vpop.f32.mrf.mxu0
        %v969 = vpop.f32.mrf.mxu0
        %970 = vdwg.mxu0
        %v971 = vsel %vm593, %v966, -inf
        %972 = vmax.xlane.f32.xlu0 %v971
        %v973 = vpop.xlane.xlu0 %972
        %v974 = vsub.f32 %v966, %v973
        %v975 = vmul.f32 %v974, 1.442695
        %v976 = vpow.pop %v975
        %v977 = vsel %vm593, %v976, 0.0
        %978 = vadd.xlane.f32.xlu0 %v977
        %v979 = vpop.xlane.xlu0 %978
        %v980 = vrcp.pop %v979
        %v981 = vmul.f32 %v976, %v980
        %v982 = vpack.c.bf16 %v981, %v981
        %983 = vrot.lane.b32.xlu0 %v589, 40
        %v984 = vpop.permute.xlu0 %983
        %v986 = vsel %vm593, %v982, 0
        %v989 = vsel %vm657, %v984, 0
        %991 = vmatprep.subr.bf16.mxu0 0
        %992 = vmatpush1.bf16.msra.mxu0 0
        %993 = vmatprep.subr.bf16.mxu0 0
        %994 = vmatpush1.bf16.msra.mxu0 0
        %995 = vmatprep.subr.bf16.mxu0 0
        %996 = vmatpush1.bf16.msra.mxu0 0
        %997 = vmatprep.subr.bf16.mxu0 0
        %998 = vmatpush1.bf16.msra.mxu0 0
        %999 = vmatprep.subr.bf16.mxu0 0
        %1000 = vmatpush1.bf16.msra.mxu0 0
        %1001 = vmatprep.subr.bf16.mxu0 0
        %1002 = vmatpush1.bf16.msra.mxu0 0
        %1003 = vmatprep.subr.bf16.mxu0 0
        %1004 = vmatpush1.bf16.msra.mxu0 0
        %1005 = vmatprep.subr.bf16.mxu0 0
        %1006 = vmatpush1.bf16.msra.mxu0 %v989
        %1007 = vmatprep.subr.bf16.mxu0 0
        %1008 = vmatpush2.bf16.msra.mxu0 0
        %1009 = vmatprep.subr.bf16.mxu0 0
        %1010 = vmatpush2.bf16.msra.mxu0 0
        %1011 = vmatprep.subr.bf16.mxu0 0
        %1012 = vmatpush2.bf16.msra.mxu0 0
        %1013 = vmatprep.subr.bf16.mxu0 0
        %1014 = vmatpush2.bf16.msra.mxu0 0
        %1015 = vmatprep.subr.bf16.mxu0 0
        %1016 = vmatpush2.bf16.msra.mxu0 0
        %1017 = vmatprep.subr.bf16.mxu0 0
        %1018 = vmatpush2.bf16.msra.mxu0 0
        %1019 = vmatprep.subr.bf16.mxu0 0
        %1020 = vmatpush2.bf16.msra.mxu0 0
        %1021 = vmatprep.subr.bf16.mxu0 0
        %1022 = vmatpush2.bf16.msra.mxu0 0
        %1023 = vmatprep.mubr.bf16.mxu0 0
        %1024 = vmatmul.mubr.bf16.gmra.mxu0 %v986
        %v1025 = vpop.f32.mrf.mxu0
        %v1026 = vadd.f32 0.0, %v1025
        %v1027 = vpop.f32.mrf.mxu0
        %v1028 = vpop.f32.mrf.mxu0
        %v1029 = vpop.f32.mrf.mxu0
        %1030 = vdwg.mxu0
        %1032 = vrot.lane.b32.xlu0 %v806, 8
        %v1033 = vpop.permute.xlu0 %1032
        %1036 = vrot.lane.b32.xlu0 %v916, 16
        %v1037 = vpop.permute.xlu0 %1036
        %1040 = vrot.lane.b32.xlu0 %v1026, 24
        %v1041 = vpop.permute.xlu0 %1040
        %v1043 = vsel %vm593, %v696, %v1033
        %vm1044 = vcmask 130048
        %v1045 = vsel %vm1044, %v1043, %v1037
        %vm1046 = vcmask 195584
        %v1047 = vsel %vm1046, %v1045, %v1041
        %v1048 = vpack.c.bf16 %v1047, %v1047
        %v1049 = vld [vmem:[%s5] sm:$0xf]
        %v1050 = vld [vmem:[%s5 + $0x4] sm:$0xf]
        %v1051 = vld [vmem:[%s5 + $0x8] sm:$0xf]
        %v1052 = vld [vmem:[%s5 + $0xc] sm:$0xf]
        %v1057 = vunpack.c.l.b16 %v1049
        %v1058 = vunpack.c.l.b16 %v1050
        %v1059 = vunpack.c.l.b16 %v1051
        %v1060 = vunpack.c.l.b16 %v1052
        %v1061 = vpack.c.b16 %v1058, %v1057
        %v1062 = vpack.c.b16 %v1060, %v1059
        %v1066 = vsel %vm493, %v1048, 0
        %1068 = vmatprep.subr.bf16.mxu0 0
        %1069 = vmatpush1.bf16.msra.mxu0 0
        %1070 = vmatprep.subr.bf16.mxu0 0
        %1071 = vmatpush1.bf16.msra.mxu0 0
        %1072 = vmatprep.subr.bf16.mxu0 0
        %1073 = vmatpush1.bf16.msra.mxu0 0
        %1074 = vmatprep.subr.bf16.mxu0 0
        %1075 = vmatpush1.bf16.msra.mxu0 0
        %1076 = vmatprep.subr.bf16.mxu0 0
        %1077 = vmatpush1.bf16.msra.mxu0 0
        %1078 = vmatprep.subr.bf16.mxu0 0
        %1079 = vmatpush1.bf16.msra.mxu0 0
        %1080 = vmatprep.subr.bf16.mxu0 0
        %1081 = vmatpush1.bf16.msra.mxu0 %v1062
        %1082 = vmatprep.subr.bf16.mxu0 0
        %1083 = vmatpush1.bf16.msra.mxu0 %v1061
        %1084 = vmatprep.subr.bf16.mxu0 0
        %1085 = vmatpush2.bf16.msra.mxu0 0
        %1086 = vmatprep.subr.bf16.mxu0 0
        %1087 = vmatpush2.bf16.msra.mxu0 0
        %1088 = vmatprep.subr.bf16.mxu0 0
        %1089 = vmatpush2.bf16.msra.mxu0 0
        %1090 = vmatprep.subr.bf16.mxu0 0
        %1091 = vmatpush2.bf16.msra.mxu0 0
        %1092 = vmatprep.subr.bf16.mxu0 0
        %1093 = vmatpush2.bf16.msra.mxu0 0
        %1094 = vmatprep.subr.bf16.mxu0 0
        %1095 = vmatpush2.bf16.msra.mxu0 0
        %1096 = vmatprep.subr.bf16.mxu0 0
        %1097 = vmatpush2.bf16.msra.mxu0 0
        %1098 = vmatprep.subr.bf16.mxu0 0
        %1099 = vmatpush2.bf16.msra.mxu0 0
        %1100 = vmatprep.mubr.bf16.mxu0 0
        %1101 = vmatmul.mubr.bf16.gmra.mxu0 %v1066
        %v1102 = vpop.f32.mrf.mxu0
        %v1103 = vadd.f32 0.0, %v1102
        %v1104 = vpop.f32.mrf.mxu0
        %v1105 = vpop.f32.mrf.mxu0
        %v1106 = vpop.f32.mrf.mxu0
        %1107 = vdwg.mxu0
        %v1108 = vadd.f32 %v490, %v1103
        %v1109 = vld [vmem:[%s6] sm:$0x1]
        %v1111 = vlaneseq
        %v1112 = vshrl.u32 %v1111, 7
        %v1113 = vsub.s32 0, %v1112
        %v1114 = vrot.slane %v1109, %v1113
        %v1116 = vadd.f32 %v1108, %v1114
        %v1117 = vld [vmem:[#allocation2] sm:$0x1]
        %v1118 = vld [vmem:[#allocation5] sm:$0x1]
        %v1119 = vsel %vm493, %v1116, 0.0
        %1120 = vadd.xlane.f32.xlu0 %v1119
        %v1121 = vpop.xlane.xlu0 %1120
        %v1122 = vmul.f32 %v1121, %v497
        %v1123 = vsub.f32 %v1116, %v1122
        %v1124 = vmul.f32 %v1123, %v1123
        %v1125 = vsel %vm493, %v1124, 0.0
        %1126 = vadd.xlane.f32.xlu0 %v1125
        %v1127 = vpop.xlane.xlu0 %1126
        %v1128 = vmul.f32 %v1127, %v497
        %v1129 = vadd.f32 %v1128, 1e-05
        %v1130 = vrsqrt.pop %v1129
        %v1131 = vmul.f32 %v1123, %v1130
        %v1133 = vlaneseq
        %v1134 = vshrl.u32 %v1133, 7
        %v1135 = vsub.s32 0, %v1134
        %v1136 = vrot.slane %v1117, %v1135
        %v1138 = vmul.f32 %v1131, %v1136
        %v1140 = vlaneseq
        %v1141 = vshrl.u32 %v1140, 7
        %v1142 = vsub.s32 0, %v1141
        %v1143 = vrot.slane %v1118, %v1142
        %v1145 = vadd.f32 %v1138, %v1143
        %v1146 = vpack.c.bf16 %v1145, %v1145
        %v1147 = vld [vmem:[#allocation7] sm:$0xf]
        %v1148 = vld [vmem:[#allocation7 + $0x4] sm:$0xf]
        %v1149 = vld [vmem:[#allocation7 + $0x8] sm:$0xf]
        %v1150 = vld [vmem:[#allocation7 + $0xc] sm:$0xf]
        %v1151 = vld [vmem:[#allocation8] sm:$0x1]
        %v1153 = vlaneseq
        %v1154 = vshrl.u32 %v1153, 7
        %v1155 = vsub.s32 0, %v1154
        %v1156 = vrot.slane %v1151, %v1155
        %v1162 = vunpack.c.l.b16 %v1147
        %v1163 = vunpack.c.l.b16 %v1148
        %v1164 = vunpack.c.l.b16 %v1149
        %v1165 = vunpack.c.l.b16 %v1150
        %v1166 = vpack.c.b16 %v1163, %v1162
        %v1167 = vpack.c.b16 %v1165, %v1164
        %v1171 = vsel %vm493, %v1146, 0
        %1173 = vmatprep.subr.bf16.mxu0 0
        %1174 = vmatpush1.bf16.msra.mxu0 0
        %1175 = vmatprep.subr.bf16.mxu0 0
        %1176 = vmatpush1.bf16.msra.mxu0 0
        %1177 = vmatprep.subr.bf16.mxu0 0
        %1178 = vmatpush1.bf16.msra.mxu0 0
        %1179 = vmatprep.subr.bf16.mxu0 0
        %1180 = vmatpush1.bf16.msra.mxu0 0
        %1181 = vmatprep.subr.bf16.mxu0 0
        %1182 = vmatpush1.bf16.msra.mxu0 0
        %1183 = vmatprep.subr.bf16.mxu0 0
        %1184 = vmatpush1.bf16.msra.mxu0 0
        %1185 = vmatprep.subr.bf16.mxu0 0
        %1186 = vmatpush1.bf16.msra.mxu0 %v1167
        %1187 = vmatprep.subr.bf16.mxu0 0
        %1188 = vmatpush1.bf16.msra.mxu0 %v1166
        %1189 = vmatprep.subr.bf16.mxu0 0
        %1190 = vmatpush2.bf16.msra.mxu0 0
        %1191 = vmatprep.subr.bf16.mxu0 0
        %1192 = vmatpush2.bf16.msra.mxu0 0
        %1193 = vmatprep.subr.bf16.mxu0 0
        %1194 = vmatpush2.bf16.msra.mxu0 0
        %1195 = vmatprep.subr.bf16.mxu0 0
        %1196 = vmatpush2.bf16.msra.mxu0 0
        %1197 = vmatprep.subr.bf16.mxu0 0
        %1198 = vmatpush2.bf16.msra.mxu0 0
        %1199 = vmatprep.subr.bf16.mxu0 0
        %1200 = vmatpush2.bf16.msra.mxu0 0
        %1201 = vmatprep.subr.bf16.mxu0 0
        %1202 = vmatpush2.bf16.msra.mxu0 0
        %1203 = vmatprep.subr.bf16.mxu0 0
        %1204 = vmatpush2.bf16.msra.mxu0 0
        %1205 = vmatprep.mubr.bf16.mxu0 0
        %1206 = vmatmul.mubr.bf16.gmra.mxu0 %v1171
        %v1207 = vpop.f32.mrf.mxu0
        %v1208 = vadd.f32 %v1156, %v1207
        %v1209 = vpop.f32.mrf.mxu0
        %v1210 = vpop.f32.mrf.mxu0
        %v1211 = vpop.f32.mrf.mxu0
        %1212 = vdwg.mxu0
        %v1213 = vmax.f32 %v1208, 0.0
        %v1214 = vpack.c.bf16 %v1213, %v1213
        %v1215 = vld [vmem:[%s11] sm:$0xf]
        %v1216 = vld [vmem:[%s11 + $0x4] sm:$0xf]
        %v1217 = vld [vmem:[%s11 + $0x8] sm:$0xf]
        %v1218 = vld [vmem:[%s11 + $0xc] sm:$0xf]
        %v1219 = vld [vmem:[%s11 + $0x10] sm:$0xf]
        %v1220 = vld [vmem:[%s11 + $0x14] sm:$0xf]
        %v1221 = vld [vmem:[%s11 + $0x18] sm:$0xf]
        %v1222 = vld [vmem:[%s11 + $0x1c] sm:$0xf]
        %v1231 = vunpack.c.l.b16 %v1215
        %v1232 = vunpack.c.l.b16 %v1216
        %v1233 = vunpack.c.l.b16 %v1217
        %v1234 = vunpack.c.l.b16 %v1218
        %v1235 = vunpack.c.l.b16 %v1219
        %v1236 = vunpack.c.l.b16 %v1220
        %v1237 = vunpack.c.l.b16 %v1221
        %v1238 = vunpack.c.l.b16 %v1222
        %v1239 = vpack.c.b16 %v1232, %v1231
        %v1240 = vpack.c.b16 %v1234, %v1233
        %v1241 = vpack.c.b16 %v1236, %v1235
        %v1242 = vpack.c.b16 %v1238, %v1237
        %vm1247 = vcmask 523264
        %v1249 = vsel %vm1247, %v1214, 0
        %1251 = vmatprep.subr.bf16.mxu0 0
        %1252 = vmatpush1.bf16.msra.mxu0 0
        %1253 = vmatprep.subr.bf16.mxu0 0
        %1254 = vmatpush1.bf16.msra.mxu0 0
        %1255 = vmatprep.subr.bf16.mxu0 0
        %1256 = vmatpush1.bf16.msra.mxu0 0
        %1257 = vmatprep.subr.bf16.mxu0 0
        %1258 = vmatpush1.bf16.msra.mxu0 0
        %1259 = vmatprep.subr.bf16.mxu0 0
        %1260 = vmatpush1.bf16.msra.mxu0 %v1242
        %1261 = vmatprep.subr.bf16.mxu0 0
        %1262 = vmatpush1.bf16.msra.mxu0 %v1241
        %1263 = vmatprep.subr.bf16.mxu0 0
        %1264 = vmatpush1.bf16.msra.mxu0 %v1240
        %1265 = vmatprep.subr.bf16.mxu0 0
        %1266 = vmatpush1.bf16.msra.mxu0 %v1239
        %1267 = vmatprep.subr.bf16.mxu0 0
        %1268 = vmatpush2.bf16.msra.mxu0 0
        %1269 = vmatprep.subr.bf16.mxu0 0
        %1270 = vmatpush2.bf16.msra.mxu0 0
        %1271 = vmatprep.subr.bf16.mxu0 0
        %1272 = vmatpush2.bf16.msra.mxu0 0
        %1273 = vmatprep.subr.bf16.mxu0 0
        %1274 = vmatpush2.bf16.msra.mxu0 0
        %1275 = vmatprep.subr.bf16.mxu0 0
        %1276 = vmatpush2.bf16.msra.mxu0 0
        %1277 = vmatprep.subr.bf16.mxu0 0
        %1278 = vmatpush2.bf16.msra.mxu0 0
        %1279 = vmatprep.subr.bf16.mxu0 0
        %1280 = vmatpush2.bf16.msra.mxu0 0
        %1281 = vmatprep.subr.bf16.mxu0 0
        %1282 = vmatpush2.bf16.msra.mxu0 0
        %1283 = vmatprep.mubr.bf16.mxu0 0
        %1284 = vmatmul.mubr.bf16.gmra.mxu0 %v1249
        %v1285 = vpop.f32.mrf.mxu0
        %v1286 = vadd.f32 0.0, %v1285
        %v1287 = vpop.f32.mrf.mxu0
        %v1288 = vpop.f32.mrf.mxu0
        %v1289 = vpop.f32.mrf.mxu0
        %1290 = vdwg.mxu0
        %v1291 = vadd.f32 %v1116, %v1286
        %v1292 = vld [vmem:[%s12] sm:$0x1]
        %v1294 = vlaneseq
        %v1295 = vshrl.u32 %v1294, 7
        %v1296 = vsub.s32 0, %v1295
        %v1297 = vrot.slane %v1292, %v1296
        %v1299 = vadd.f32 %v1291, %v1297
        %1300 = vst.msk [vmem:[%s484] sm:$0xff] %vm493, %v1299
        %s1301 = sand.u32 %s316, 1
        %s1302 = scalar_lea.sflag [#allocation4], %s1301
        %s1303 = sand.u32 %s316, 1
        %s1304 = smul.addr %s1303, 8
        %s1305 = scalar_lea.vmem [#allocation10], %s1304
        // Predicated region
        $region89: #{tpu_custom_call.1} parent=71 // pred_check
          %p1306 = pneg %p326
        $region90: #{tpu_custom_call.1} parent=71 // pred_check_branch
          %1308 = sbr.rel (%p1306) target = $region92
        $region91: #{tpu_custom_call.1} parent=71 // pred_region
          %s1310 = ssub.s32 128, 128
          %1311 = vsyncadd %s1302, %s1310
          %s1312 = smul.addr %s30, 128
          %s1313 = scalar_lea.hbm %s13, %s1312
          %s1315 = sshll.u32 %s1305, 4
          %s1316 = int_to_ptr.vmem [resolvable:$true] %s1315
          %1318 = dma.vmem_to_hbm [thread:$0]  %s1316, 128, %s1313, %s1302
        $region92: #{tpu_custom_call.1} parent=71 // pred_fallthru
          _
      $region72: #{tpu_custom_call.1} parent=5 // pred_fallthru
        _
      %p1319 = scmp.le.s32.totalorder 2, %s25
      // Predicated region
      $region93: #{tpu_custom_call.1} parent=5 // pred_check
        %p1320 = pneg %p1319
      $region94: #{tpu_custom_call.1} parent=5 // pred_check_branch
        %1322 = sbr.rel (%p1320) target = $region96
      $region95: #{tpu_custom_call.1} parent=5 // pred_region
        %s1323 = ssub.s32 %s25, 2
        // Predicated region
        $region97: #{tpu_custom_call.1} parent=95 // pred_check
          %p1324 = pneg %p332
        $region98: #{tpu_custom_call.1} parent=95 // pred_check_branch
          %1326 = sbr.rel (%p1324) target = $region100
        $region99: #{tpu_custom_call.1} parent=95 // pred_region
          %s1327 = sand.u32 %s317, 1
          %s1328 = scalar_lea.sflag [#allocation4], %s1327
          %s1329 = sand.u32 %s317, 1
          %s1330 = smul.addr %s1329, 8
          %s1331 = scalar_lea.vmem [#allocation10], %s1330
          %1332 = dma.done %s1328, 128
        $region100: #{tpu_custom_call.1} parent=95 // pred_fallthru
          _
      $region96: #{tpu_custom_call.1} parent=5 // pred_fallthru
        _
    $region6: #{tpu_custom_call.1} parent=1 // loop_footer
      %s29 = sadd.s32 1, %s25
    $region7: #{tpu_custom_call.1} parent=1 // loop_footer_branch
      %24 = sbr.rel target = $region3
    $region8: #{tpu_custom_call.1} parent=1 // loop_exit
      _
    %1333 = vsyncpa [#allocation3], 1
    %s1334 = scalar_lea.sflag [#allocation3], 1
    %1335 = vsyncpa %s1334, 1
    %1336 = vsyncpa [#allocation6], 1
    %1337 = vsyncpa [#allocation9], 1
    %1338 = vsyncpa [#allocation4], 1
    %s1339 = scalar_lea.sflag [#allocation4], 1
    %1340 = vsyncpa %s1339, 1

// kernel: tpu_custom_call.1
$region0: #{tpu_custom_call.1}
  #allocation0 [shape = 'u32[]', space=smem, size = 0x4, offset = 0x4, fixed_abs, tag = 'smem constant byte address 0x4 - core index']
  #allocation1 [shape = 'u32[144,128]{1,0:T(1,128)}', space=vmem, size = 0x12000, scoped, tag = 'internal scratch']
  %s0 = inlined_call_operand.vmem [shape: f32[2,8,32], index: 0, kind: input, shape index: {}]
  %s1 = inlined_call_operand.vmem [shape: f32[1,32], index: 1, kind: input, shape index: {}]
  %s2 = inlined_call_operand.vmem [shape: f32[1,32], index: 2, kind: input, shape index: {}]
  %s3 = inlined_call_operand.vmem [shape: bf16[32,96], index: 3, kind: input, shape index: {}]
  %s4 = inlined_call_operand.vmem [shape: f32[1,96], index: 4, kind: input, shape index: {}]
  %s5 = inlined_call_operand.vmem [shape: bf16[32,32], index: 5, kind: input, shape index: {}]
  %s6 = inlined_call_operand.vmem [shape: f32[1,32], index: 6, kind: input, shape index: {}]
  %s7 = inlined_call_operand.hbm [shape: f32[1,32], index: 7, kind: input, shape index: {}]
  %s8 = inlined_call_operand.hbm [shape: f32[1,32], index: 8, kind: input, shape index: {}]
  %s9 = inlined_call_operand.hbm [shape: bf16[32,64], index: 9, kind: input, shape index: {}]
  %s10 = inlined_call_operand.hbm [shape: f32[1,64], index: 10, kind: input, shape index: {}]
  %s11 = inlined_call_operand.vmem [shape: bf16[64,32], index: 11, kind: input, shape index: {}]
  %s12 = inlined_call_operand.vmem [shape: f32[1,32], index: 12, kind: input, shape index: {}]
  %s13 = inlined_call_operand.hbm [shape: f32[2,8,32], index: 13, kind: output, shape index: {}]
  %s14 = sld [smem:[#allocation0]]
  $region101: #{tpu_custom_call.1} parent=0
    _
  %s16 = ssub.s32 1, %s14
  %s17 = scalar_select 0, %s16, %s14
  $region1: #{tpu_custom_call.1} parent=0
    #allocation2 [shape = 'u8[512]{0}', space=vmem, size = 0x400, scoped, tag = 'input window, operand 7, single buffered']
    #allocation3 [shape = 's32[2]{0}', space=sflag, size = 0x8, scoped, tag = 'scoped memory for tpu_custom_call.1']
    #allocation4 [shape = 's32[2]{0}', space=sflag, size = 0x8, scoped, tag = 'scoped memory for tpu_custom_call.1']
    #allocation5 [shape = 'u8[512]{0}', space=vmem, size = 0x400, scoped, tag = 'input window, operand 8, single buffered']
    #allocation6 [shape = 's32[1]{0}', space=sflag, size = 0x4, scoped, tag = 'scoped memory for tpu_custom_call.1']
    #allocation7 [shape = 'u8[8192]{0}', space=vmem, size = 0x2000, scoped, tag = 'input window, operand 9, single buffered']
    #allocation8 [shape = 'u8[512]{0}', space=vmem, size = 0x400, scoped, tag = 'input window, operand 10, single buffered']
    #allocation9 [shape = 's32[1]{0}', space=sflag, size = 0x4, scoped, tag = 'scoped memory for tpu_custom_call.1']
    #allocation10 [shape = 'u8[8192]{0}', space=vmem, size = 0x2000, scoped, tag = 'output window, operand 0']
    %18 = vsyncpa [#allocation3], 0
    %19 = vsyncpa [#allocation6], 0
    %20 = vsyncpa [#allocation9], 0
    %21 = vsyncpa [#allocation4], 0
    %s22 = scalar_lea.sflag [#allocation4], 1
    %23 = vsyncpa %s22, 0
    loop: start=0, step=1, limit=4
    $region2: #{tpu_custom_call.1} parent=1 // loop_pre_header
      _
    $region3: #{tpu_custom_call.1} parent=1 // loop_header
      %s25 = sphi 0, %s29
      %p26 = scmp.ge.s32.totalorder %s25, 4
      %s35 = sphi 0, %s37
      %s38 = sphi 0, %s35
      %s39 = sphi 0, %s38
      %s55 = sphi 0, %s39
      %s59 = sphi 0, %s59
      %s61 = sphi 0, %s59
      %s62 = sphi 0, %s61
      %s76 = sphi 0, %s62
      %s80 = sphi 0, %s80
      %s82 = sphi 0, %s80
      %s83 = sphi 0, %s82
      %s97 = sphi 0, %s83
      %s101 = sphi 0, %s101
      %s103 = sphi 0, %s101
      %s104 = sphi 0, %s103
      %s118 = sphi 0, %s104
      %s122 = sphi 0, %s122
      %s124 = sphi 0, %s122
      %s125 = sphi 0, %s124
      %s139 = sphi 0, %s125
      %s143 = sphi 0, %s143
      %s145 = sphi 0, %s143
      %s146 = sphi 0, %s145
      %s160 = sphi 0, %s146
      %s164 = sphi 0, %s164
      %s166 = sphi 0, %s164
      %s167 = sphi 0, %s166
      %s181 = sphi 0, %s167
      %s185 = sphi 0, %s185
      %s187 = sphi 0, %s185
      %s188 = sphi 0, %s187
      %s202 = sphi 0, %s188
      %s206 = sphi 0, %s206
      %s208 = sphi 0, %s206
      %s209 = sphi 0, %s208
      %s223 = sphi 0, %s209
      %s227 = sphi 0, %s227
      %s229 = sphi 0, %s227
      %s230 = sphi 0, %s229
      %s244 = sphi 0, %s230
      %s248 = sphi 0, %s248
      %s250 = sphi 0, %s248
      %s251 = sphi 0, %s250
      %s265 = sphi 0, %s251
      %s269 = sphi 0, %s269
      %s271 = sphi 0, %s269
      %s272 = sphi 0, %s271
      %s286 = sphi 0, %s272
      %s290 = sphi 0, %s290
      %s292 = sphi 0, %s290
      %s293 = sphi 0, %s292
      %s307 = sphi 0, %s293
      %s313 = sphi 0, %s315
      %s316 = sphi 0, %s313
      %s317 = sphi 0, %s316
      %s333 = sphi 0, %s317
    $region4: #{tpu_custom_call.1} parent=1 // loop_header_branch
      %28 = sbr.rel (%p26) target = $region8
    $region5: #{tpu_custom_call.1} parent=1 // loop_body
      %s30 = ssub.s32 %s25, 1
      %s31 = ssub.s32 %s25, 2
      %s32 = sadd.s32 %s25, 1
      %s33 = ssub.s32 %s25, %s32
      %p34 = scmp.eq.s32.totalorder %s33, 0
      %s36 = sadd.s32 %s35, 1
      %s37 = scalar_select %p34, %s35, %s36
      %p40 = pneg %p34
      %p41 = scmp.eq.s32.totalorder %s25, 1
      %p42 = por %p40, %p41
      %p43 = scmp.ne.s32.totalorder %s35, %s38
      %p44 = scmp.eq.s32.totalorder %s25, 0
      %p45 = por %p43, %p44
      %p46 = scmp.ne.s32.totalorder %s35, %s38
      %p47 = scmp.eq.s32.totalorder %s30, 1
      %p48 = por %p46, %p47
      %p49 = scmp.ne.s32.totalorder %s38, %s39
      %p50 = scmp.eq.s32.totalorder %s30, 0
      %p51 = por %p49, %p50
      %p52 = scmp.ne.s32.totalorder %s38, %s39
      %p53 = scmp.eq.s32.totalorder %s31, 1
      %p54 = por %p52, %p53
      %p56 = scmp.ne.s32.totalorder %s39, %s55
      %p57 = scmp.eq.s32.totalorder %s31, 0
      %p58 = por %p56, %p57
      %s60 = sadd.s32 %s59, 1
      %p63 = scmp.eq.s32.totalorder %s25, 1
      %p64 = scmp.ne.s32.totalorder %s59, %s61
      %p65 = scmp.eq.s32.totalorder %s25, 0
      %p66 = por %p64, %p65
      %p67 = scmp.ne.s32.totalorder %s59, %s61
      %p68 = scmp.eq.s32.totalorder %s30, 1
      %p69 = por %p67, %p68
      %p70 = scmp.ne.s32.totalorder %s61, %s62
      %p71 = scmp.eq.s32.totalorder %s30, 0
      %p72 = por %p70, %p71
      %p73 = scmp.ne.s32.totalorder %s61, %s62
      %p74 = scmp.eq.s32.totalorder %s31, 1
      %p75 = por %p73, %p74
      %p77 = scmp.ne.s32.totalorder %s62, %s76
      %p78 = scmp.eq.s32.totalorder %s31, 0
      %p79 = por %p77, %p78
      %s81 = sadd.s32 %s80, 1
      %p84 = scmp.eq.s32.totalorder %s25, 1
      %p85 = scmp.ne.s32.totalorder %s80, %s82
      %p86 = scmp.eq.s32.totalorder %s25, 0
      %p87 = por %p85, %p86
      %p88 = scmp.ne.s32.totalorder %s80, %s82
      %p89 = scmp.eq.s32.totalorder %s30, 1
      %p90 = por %p88, %p89
      %p91 = scmp.ne.s32.totalorder %s82, %s83
      %p92 = scmp.eq.s32.totalorder %s30, 0
      %p93 = por %p91, %p92
      %p94 = scmp.ne.s32.totalorder %s82, %s83
      %p95 = scmp.eq.s32.totalorder %s31, 1
      %p96 = por %p94, %p95
      %p98 = scmp.ne.s32.totalorder %s83, %s97
      %p99 = scmp.eq.s32.totalorder %s31, 0
      %p100 = por %p98, %p99
      %s102 = sadd.s32 %s101, 1
      %p105 = scmp.eq.s32.totalorder %s25, 1
      %p106 = scmp.ne.s32.totalorder %s101, %s103
      %p107 = scmp.eq.s32.totalorder %s25, 0
      %p108 = por %p106, %p107
      %p109 = scmp.ne.s32.totalorder %s101, %s103
      %p110 = scmp.eq.s32.totalorder %s30, 1
      %p111 = por %p109, %p110
      %p112 = scmp.ne.s32.totalorder %s103, %s104
      %p113 = scmp.eq.s32.totalorder %s30, 0
      %p114 = por %p112, %p113
      %p115 = scmp.ne.s32.totalorder %s103, %s104
      %p116 = scmp.eq.s32.totalorder %s31, 1
      %p117 = por %p115, %p116
      %p119 = scmp.ne.s32.totalorder %s104, %s118
      %p120 = scmp.eq.s32.totalorder %s31, 0
      %p121 = por %p119, %p120
      %s123 = sadd.s32 %s122, 1
      %p126 = scmp.eq.s32.totalorder %s25, 1
      %p127 = scmp.ne.s32.totalorder %s122, %s124
      %p128 = scmp.eq.s32.totalorder %s25, 0
      %p129 = por %p127, %p128
      %p130 = scmp.ne.s32.totalorder %s122, %s124
      %p131 = scmp.eq.s32.totalorder %s30, 1
      %p132 = por %p130, %p131
      %p133 = scmp.ne.s32.totalorder %s124, %s125
      %p134 = scmp.eq.s32.totalorder %s30, 0
      %p135 = por %p133, %p134
      %p136 = scmp.ne.s32.totalorder %s124, %s125
      %p137 = scmp.eq.s32.totalorder %s31, 1
      %p138 = por %p136, %p137
      %p140 = scmp.ne.s32.totalorder %s125, %s139
      %p141 = scmp.eq.s32.totalorder %s31, 0
      %p142 = por %p140, %p141
      %s144 = sadd.s32 %s143, 1
      %p147 = scmp.eq.s32.totalorder %s25, 1
      %p148 = scmp.ne.s32.totalorder %s143, %s145
      %p149 = scmp.eq.s32.totalorder %s25, 0
      %p150 = por %p148, %p149
      %p151 = scmp.ne.s32.totalorder %s143, %s145
      %p152 = scmp.eq.s32.totalorder %s30, 1
      %p153 = por %p151, %p152
      %p154 = scmp.ne.s32.totalorder %s145, %s146
      %p155 = scmp.eq.s32.totalorder %s30, 0
      %p156 = por %p154, %p155
      %p157 = scmp.ne.s32.totalorder %s145, %s146
      %p158 = scmp.eq.s32.totalorder %s31, 1
      %p159 = por %p157, %p158
      %p161 = scmp.ne.s32.totalorder %s146, %s160
      %p162 = scmp.eq.s32.totalorder %s31, 0
      %p163 = por %p161, %p162
      %s165 = sadd.s32 %s164, 1
      %p168 = scmp.eq.s32.totalorder %s25, 1
      %p169 = scmp.ne.s32.totalorder %s164, %s166
      %p170 = scmp.eq.s32.totalorder %s25, 0
      %p171 = por %p169, %p170
      %p172 = scmp.ne.s32.totalorder %s164, %s166
      %p173 = scmp.eq.s32.totalorder %s30, 1
      %p174 = por %p172, %p173
      %p175 = scmp.ne.s32.totalorder %s166, %s167
      %p176 = scmp.eq.s32.totalorder %s30, 0
      %p177 = por %p175, %p176
      %p178 = scmp.ne.s32.totalorder %s166, %s167
      %p179 = scmp.eq.s32.totalorder %s31, 1
      %p180 = por %p178, %p179
      %p182 = scmp.ne.s32.totalorder %s167, %s181
      %p183 = scmp.eq.s32.totalorder %s31, 0
      %p184 = por %p182, %p183
      %s186 = sadd.s32 %s185, 1
      %p189 = scmp.eq.s32.totalorder %s25, 1
      %p190 = scmp.ne.s32.totalorder %s185, %s187
      %p191 = scmp.eq.s32.totalorder %s25, 0
      %p192 = por %p190, %p191
      %p193 = scmp.ne.s32.totalorder %s185, %s187
      %p194 = scmp.eq.s32.totalorder %s30, 1
      %p195 = por %p193, %p194
      %p196 = scmp.ne.s32.totalorder %s187, %s188
      %p197 = scmp.eq.s32.totalorder %s30, 0
      %p198 = por %p196, %p197
      %p199 = scmp.ne.s32.totalorder %s187, %s188
      %p200 = scmp.eq.s32.totalorder %s31, 1
      %p201 = por %p199, %p200
      %p203 = scmp.ne.s32.totalorder %s188, %s202
      %p204 = scmp.eq.s32.totalorder %s31, 0
      %p205 = por %p203, %p204
      %s207 = sadd.s32 %s206, 1
      %p210 = scmp.eq.s32.totalorder %s25, 1
      %p211 = scmp.ne.s32.totalorder %s206, %s208
      %p212 = scmp.eq.s32.totalorder %s25, 0
      %p213 = por %p211, %p212
      %p214 = scmp.ne.s32.totalorder %s206, %s208
      %p215 = scmp.eq.s32.totalorder %s30, 1
      %p216 = por %p214, %p215
      %p217 = scmp.ne.s32.totalorder %s208, %s209
      %p218 = scmp.eq.s32.totalorder %s30, 0
      %p219 = por %p217, %p218
      %p220 = scmp.ne.s32.totalorder %s208, %s209
      %p221 = scmp.eq.s32.totalorder %s31, 1
      %p222 = por %p220, %p221
      %p224 = scmp.ne.s32.totalorder %s209, %s223
      %p225 = scmp.eq.s32.totalorder %s31, 0
      %p226 = por %p224, %p225
      %s228 = sadd.s32 %s227, 1
      %p231 = scmp.eq.s32.totalorder %s25, 1
      %p232 = scmp.ne.s32.totalorder %s227, %s229
      %p233 = scmp.eq.s32.totalorder %s25, 0
      %p234 = por %p232, %p233
      %p235 = scmp.ne.s32.totalorder %s227, %s229
      %p236 = scmp.eq.s32.totalorder %s30, 1
      %p237 = por %p235, %p236
      %p238 = scmp.ne.s32.totalorder %s229, %s230
      %p239 = scmp.eq.s32.totalorder %s30, 0
      %p240 = por %p238, %p239
      %p241 = scmp.ne.s32.totalorder %s229, %s230
      %p242 = scmp.eq.s32.totalorder %s31, 1
      %p243 = por %p241, %p242
      %p245 = scmp.ne.s32.totalorder %s230, %s244
      %p246 = scmp.eq.s32.totalorder %s31, 0
      %p247 = por %p245, %p246
      %s249 = sadd.s32 %s248, 1
      %p252 = scmp.eq.s32.totalorder %s25, 1
      %p253 = scmp.ne.s32.totalorder %s248, %s250
      %p254 = scmp.eq.s32.totalorder %s25, 0
      %p255 = por %p253, %p254
      %p256 = scmp.ne.s32.totalorder %s248, %s250
      %p257 = scmp.eq.s32.totalorder %s30, 1
      %p258 = por %p256, %p257
      %p259 = scmp.ne.s32.totalorder %s250, %s251
      %p260 = scmp.eq.s32.totalorder %s30, 0
      %p261 = por %p259, %p260
      %p262 = scmp.ne.s32.totalorder %s250, %s251
      %p263 = scmp.eq.s32.totalorder %s31, 1
      %p264 = por %p262, %p263
      %p266 = scmp.ne.s32.totalorder %s251, %s265
      %p267 = scmp.eq.s32.totalorder %s31, 0
      %p268 = por %p266, %p267
      %s270 = sadd.s32 %s269, 1
      %p273 = scmp.eq.s32.totalorder %s25, 1
      %p274 = scmp.ne.s32.totalorder %s269, %s271
      %p275 = scmp.eq.s32.totalorder %s25, 0
      %p276 = por %p274, %p275
      %p277 = scmp.ne.s32.totalorder %s269, %s271
      %p278 = scmp.eq.s32.totalorder %s30, 1
      %p279 = por %p277, %p278
      %p280 = scmp.ne.s32.totalorder %s271, %s272
      %p281 = scmp.eq.s32.totalorder %s30, 0
      %p282 = por %p280, %p281
      %p283 = scmp.ne.s32.totalorder %s271, %s272
      %p284 = scmp.eq.s32.totalorder %s31, 1
      %p285 = por %p283, %p284
      %p287 = scmp.ne.s32.totalorder %s272, %s286
      %p288 = scmp.eq.s32.totalorder %s31, 0
      %p289 = por %p287, %p288
      %s291 = sadd.s32 %s290, 1
      %p294 = scmp.eq.s32.totalorder %s25, 1
      %p295 = scmp.ne.s32.totalorder %s290, %s292
      %p296 = scmp.eq.s32.totalorder %s25, 0
      %p297 = por %p295, %p296
      %p298 = scmp.ne.s32.totalorder %s290, %s292
      %p299 = scmp.eq.s32.totalorder %s30, 1
      %p300 = por %p298, %p299
      %p301 = scmp.ne.s32.totalorder %s292, %s293
      %p302 = scmp.eq.s32.totalorder %s30, 0
      %p303 = por %p301, %p302
      %p304 = scmp.ne.s32.totalorder %s292, %s293
      %p305 = scmp.eq.s32.totalorder %s31, 1
      %p306 = por %p304, %p305
      %p308 = scmp.ne.s32.totalorder %s293, %s307
      %p309 = scmp.eq.s32.totalorder %s31, 0
      %p310 = por %p308, %p309
      %s311 = ssub.s32 %s25, %s32
      %p312 = scmp.eq.s32.totalorder %s311, 0
      %s314 = sadd.s32 %s313, 1
      %s315 = scalar_select %p312, %s313, %s314
      %p318 = pneg %p312
      %p319 = scmp.eq.s32.totalorder %s25, 1
      %p320 = por %p318, %p319
      %p321 = scmp.ne.s32.totalorder %s313, %s316
      %p322 = scmp.eq.s32.totalorder %s25, 0
      %p323 = por %p321, %p322
      %p324 = scmp.ne.s32.totalorder %s313, %s316
      %p325 = scmp.eq.s32.totalorder %s30, 1
      %p326 = por %p324, %p325
      %p327 = scmp.ne.s32.totalorder %s316, %s317
      %p328 = scmp.eq.s32.totalorder %s30, 0
      %p329 = por %p327, %p328
      %p330 = scmp.ne.s32.totalorder %s316, %s317
      %p331 = scmp.eq.s32.totalorder %s31, 1
      %p332 = por %p330, %p331
      %p334 = scmp.ne.s32.totalorder %s317, %s333
      %p335 = scmp.eq.s32.totalorder %s31, 0
      %p336 = por %p334, %p335
      %p337 = scmp.le.s32.totalorder 1, %s25
      %p338 = scmp.lt.s32.totalorder %s25, 3
      %p339 = pnand %p337, %p338
      %p340 = pneg %p339
      // Predicated region
      $region9: #{tpu_custom_call.1} parent=5 // pred_check
        _
      $region10: #{tpu_custom_call.1} parent=5 // pred_check_branch
        %342 = sbr.rel (%p339) target = $region12
      $region11: #{tpu_custom_call.1} parent=5 // pred_region
        %s343 = ssub.s32 %s25, 1
        // Predicated region
        $region13: #{tpu_custom_call.1} parent=11 // pred_check
          %p344 = pneg %p72
        $region14: #{tpu_custom_call.1} parent=11 // pred_check_branch
          %346 = sbr.rel (%p344) target = $region16
        $region15: #{tpu_custom_call.1} parent=11 // pred_region
          _
        $region16: #{tpu_custom_call.1} parent=11 // pred_fallthru
          _
        // Predicated region
        $region17: #{tpu_custom_call.1} parent=11 // pred_check
          %p347 = pneg %p93
        $region18: #{tpu_custom_call.1} parent=11 // pred_check_branch
          %349 = sbr.rel (%p347) target = $region20
        $region19: #{tpu_custom_call.1} parent=11 // pred_region
          _
        $region20: #{tpu_custom_call.1} parent=11 // pred_fallthru
          _
        // Predicated region
        $region21: #{tpu_custom_call.1} parent=11 // pred_check
          %p350 = pneg %p114
        $region22: #{tpu_custom_call.1} parent=11 // pred_check_branch
          %352 = sbr.rel (%p350) target = $region24
        $region23: #{tpu_custom_call.1} parent=11 // pred_region
          _
        $region24: #{tpu_custom_call.1} parent=11 // pred_fallthru
          _
        // Predicated region
        $region25: #{tpu_custom_call.1} parent=11 // pred_check
          %p353 = pneg %p135
        $region26: #{tpu_custom_call.1} parent=11 // pred_check_branch
          %355 = sbr.rel (%p353) target = $region28
        $region27: #{tpu_custom_call.1} parent=11 // pred_region
          _
        $region28: #{tpu_custom_call.1} parent=11 // pred_fallthru
          _
        // Predicated region
        $region29: #{tpu_custom_call.1} parent=11 // pred_check
          %p356 = pneg %p156
        $region30: #{tpu_custom_call.1} parent=11 // pred_check_branch
          %358 = sbr.rel (%p356) target = $region32
        $region31: #{tpu_custom_call.1} parent=11 // pred_region
          _
        $region32: #{tpu_custom_call.1} parent=11 // pred_fallthru
          _
        // Predicated region
        $region33: #{tpu_custom_call.1} parent=11 // pred_check
          %p359 = pneg %p177
        $region34: #{tpu_custom_call.1} parent=11 // pred_check_branch
          %361 = sbr.rel (%p359) target = $region36
        $region35: #{tpu_custom_call.1} parent=11 // pred_region
          _
        $region36: #{tpu_custom_call.1} parent=11 // pred_fallthru
          _
        // Predicated region
        $region37: #{tpu_custom_call.1} parent=11 // pred_check
          %p362 = pneg %p198
        $region38: #{tpu_custom_call.1} parent=11 // pred_check_branch
          %364 = sbr.rel (%p362) target = $region40
        $region39: #{tpu_custom_call.1} parent=11 // pred_region
          %s366 = ssub.s32 16, 16
          %367 = vsyncadd [#allocation3], %s366
          %s369 = sshll.u32 [#allocation2], 4
          %s370 = int_to_ptr.vmem [resolvable:$true] %s369
          %372 = dma.hbm_to_vmem [thread:$0]  %s7, 16, %s370, [#allocation3]
        $region40: #{tpu_custom_call.1} parent=11 // pred_fallthru
          _
        // Predicated region
        $region41: #{tpu_custom_call.1} parent=11 // pred_check
          %p373 = pneg %p219
        $region42: #{tpu_custom_call.1} parent=11 // pred_check_branch
          %375 = sbr.rel (%p373) target = $region44
        $region43: #{tpu_custom_call.1} parent=11 // pred_region
          %s377 = ssub.s32 16, 16
          %378 = vsyncadd [#allocation6], %s377
          %s380 = sshll.u32 [#allocation5], 4
          %s381 = int_to_ptr.vmem [resolvable:$true] %s380
          %383 = dma.hbm_to_vmem [thread:$0]  %s8, 16, %s381, [#allocation6]
        $region44: #{tpu_custom_call.1} parent=11 // pred_fallthru
          _
        // Predicated region
        $region45: #{tpu_custom_call.1} parent=11 // pred_check
          %p384 = pneg %p240
        $region46: #{tpu_custom_call.1} parent=11 // pred_check_branch
          %386 = sbr.rel (%p384) target = $region48
        $region47: #{tpu_custom_call.1} parent=11 // pred_region
          %s388 = ssub.s32 256, 256
          %389 = vsyncadd [#allocation6], %s388
          %s390 = sshll.u32 [#allocation7], 4
          %s391 = int_to_ptr.vmem [resolvable:$true] %s390
          %396 = dma.hbm_to_vmem [thread:$0]  %s9, 256, %s391, [#allocation6], 64, 64, 4
        $region48: #{tpu_custom_call.1} parent=11 // pred_fallthru
          _
        // Predicated region
        $region49: #{tpu_custom_call.1} parent=11 // pred_check
          %p397 = pneg %p261
        $region50: #{tpu_custom_call.1} parent=11 // pred_check_branch
          %399 = sbr.rel (%p397) target = $region52
        $region51: #{tpu_custom_call.1} parent=11 // pred_region
          %s401 = ssub.s32 16, 16
          %402 = vsyncadd [#allocation9], %s401
          %s404 = sshll.u32 [#allocation8], 4
          %s405 = int_to_ptr.vmem [resolvable:$true] %s404
          %407 = dma.hbm_to_vmem [thread:$0]  %s10, 16, %s405, [#allocation9]
        $region52: #{tpu_custom_call.1} parent=11 // pred_fallthru
          _
        // Predicated region
        $region53: #{tpu_custom_call.1} parent=11 // pred_check
          %p408 = pneg %p282
        $region54: #{tpu_custom_call.1} parent=11 // pred_check_branch
          %410 = sbr.rel (%p408) target = $region56
        $region55: #{tpu_custom_call.1} parent=11 // pred_region
          _
        $region56: #{tpu_custom_call.1} parent=11 // pred_fallthru
          _
        // Predicated region
        $region57: #{tpu_custom_call.1} parent=11 // pred_check
          %p411 = pneg %p303
        $region58: #{tpu_custom_call.1} parent=11 // pred_check_branch
          %413 = sbr.rel (%p411) target = $region60
        $region59: #{tpu_custom_call.1} parent=11 // pred_region
          _
        $region60: #{tpu_custom_call.1} parent=11 // pred_fallthru
          _
      $region12: #{tpu_custom_call.1} parent=5 // pred_fallthru
        _
      %p414 = scmp.lt.s32.totalorder %s25, 2
      // Predicated region
      $region61: #{tpu_custom_call.1} parent=5 // pred_check
        %p415 = pneg %p414
      $region62: #{tpu_custom_call.1} parent=5 // pred_check_branch
        %417 = sbr.rel (%p415) target = $region64
      $region63: #{tpu_custom_call.1} parent=5 // pred_region
        // Predicated region
        $region65: #{tpu_custom_call.1} parent=63 // pred_check
          %p418 = pneg %p45
        $region66: #{tpu_custom_call.1} parent=63 // pred_check_branch
          %420 = sbr.rel (%p418) target = $region68
        $region67: #{tpu_custom_call.1} parent=63 // pred_region
          %p421 = scmp.lt.s32.totalorder %s25, 1
          %s422 = scalar_select %p421, %s25, 1
          %s423 = smul.addr %s422, 8
          %s424 = scalar_lea.vmem %s0, %s423
        $region68: #{tpu_custom_call.1} parent=63 // pred_fallthru
          _
      $region64: #{tpu_custom_call.1} parent=5 // pred_fallthru
        _
      %p425 = scmp.le.s32.totalorder 1, %s25
      %p426 = scmp.lt.s32.totalorder %s25, 3
      %p427 = pnand %p425, %p426
      %p428 = pneg %p427
      // Predicated region
      $region69: #{tpu_custom_call.1} parent=5 // pred_check
        _
      $region70: #{tpu_custom_call.1} parent=5 // pred_check_branch
        %430 = sbr.rel (%p427) target = $region72
      $region71: #{tpu_custom_call.1} parent=5 // pred_region
        %s431 = ssub.s32 %s25, 1
        // Predicated region
        $region73: #{tpu_custom_call.1} parent=71 // pred_check
          %p432 = pneg %p198
        $region74: #{tpu_custom_call.1} parent=71 // pred_check_branch
          %434 = sbr.rel (%p432) target = $region76
        $region75: #{tpu_custom_call.1} parent=71 // pred_region
          %435 = dma.done [#allocation3], 16
        $region76: #{tpu_custom_call.1} parent=71 // pred_fallthru
          _
        // Predicated region
        $region77: #{tpu_custom_call.1} parent=71 // pred_check
          %p436 = pneg %p219
        $region78: #{tpu_custom_call.1} parent=71 // pred_check_branch
          %438 = sbr.rel (%p436) target = $region80
        $region79: #{tpu_custom_call.1} parent=71 // pred_region
          %439 = dma.done [#allocation6], 16
        $region80: #{tpu_custom_call.1} parent=71 // pred_fallthru
          _
        // Predicated region
        $region81: #{tpu_custom_call.1} parent=71 // pred_check
          %p440 = pneg %p240
        $region82: #{tpu_custom_call.1} parent=71 // pred_check_branch
          %442 = sbr.rel (%p440) target = $region84
        $region83: #{tpu_custom_call.1} parent=71 // pred_region
          %443 = dma.done [#allocation6], 256
        $region84: #{tpu_custom_call.1} parent=71 // pred_fallthru
          _
        // Predicated region
        $region85: #{tpu_custom_call.1} parent=71 // pred_check
          %p444 = pneg %p261
        $region86: #{tpu_custom_call.1} parent=71 // pred_check_branch
          %446 = sbr.rel (%p444) target = $region88
        $region87: #{tpu_custom_call.1} parent=71 // pred_region
          %447 = dma.done [#allocation9], 16
        $region88: #{tpu_custom_call.1} parent=71 // pred_fallthru
          _
        %p448 = scmp.lt.s32.totalorder %s30, 1
        %s449 = scalar_select %p448, %s30, 1
        %s450 = smul.addr %s449, 8
        %s451 = scalar_lea.vmem %s0, %s450
        %p452 = pneg %p51
        %p453 = pneg %p48
        %p454 = pneg %p72
        %p455 = pneg %p69
        %p456 = pneg %p93
        %p457 = pneg %p90
        %p458 = pneg %p114
        %p459 = pneg %p111
        %p460 = pneg %p135
        %p461 = pneg %p132
        %p462 = pneg %p156
        %p463 = pneg %p153
        %p464 = pneg %p177
        %p465 = pneg %p174
        %p466 = pneg %p198
        %p467 = pneg %p195
        %p468 = pneg %p219
        %p469 = pneg %p216
        %p470 = pneg %p240
        %p471 = pneg %p237
        %p472 = pneg %p261
        %p473 = pneg %p258
        %p474 = pneg %p282
        %p475 = pneg %p279
        %p476 = pneg %p303
        %p477 = pneg %p300
        %p478 = pneg %p329
        %p479 = pneg %p326
        %s480 = sand.u32 %s316, 1
        %s481 = scalar_lea.sflag [#allocation4], %s480
        %s482 = sand.u32 %s316, 1
        %s483 = smul.addr %s482, 8
        %s484 = scalar_lea.vmem [#allocation10], %s483
        %p485 = scmp.lt.s32.totalorder %s30, 1
        %s486 = scalar_select %p485, %s30, 1
        %s487 = smul.addr %s486, 8
        %s488 = scalar_lea.vmem %s0, %s487
        %v490 = vld [vmem:[%s488] sm:$0xff]
        %v491 = vld [vmem:[%s1] sm:$0x1]
        %v492 = vld [vmem:[%s2] sm:$0x1]
        %vm493 = vcmask 261120
        %v494 = vsel %vm493, %v490, 0.0
        %495 = vadd.xlane.f32.xlu0 %v494
        %v496 = vpop.xlane.xlu0 %495
        %v497 = vrcp.pop 32.0
        %v498 = vmul.f32 %v496, %v497
        %v499 = vsub.f32 %v490, %v498
        %v500 = vmul.f32 %v499, %v499
        %v501 = vsel %vm493, %v500, 0.0
        %502 = vadd.xlane.f32.xlu0 %v501
        %v503 = vpop.xlane.xlu0 %502
        %v504 = vmul.f32 %v503, %v497
        %v505 = vadd.f32 %v504, 1e-05
        %v506 = vrsqrt.pop %v505
        %v507 = vmul.f32 %v499, %v506
        %v509 = vlaneseq
        %v510 = vshrl.u32 %v509, 7
        %v511 = vsub.s32 0, %v510
        %v512 = vrot.slane %v491, %v511
        %v514 = vmul.f32 %v507, %v512
        %v516 = vlaneseq
        %v517 = vshrl.u32 %v516, 7
        %v518 = vsub.s32 0, %v517
        %v519 = vrot.slane %v492, %v518
        %v521 = vadd.f32 %v514, %v519
        %v522 = vpack.c.bf16 %v521, %v521
        %v523 = vld [vmem:[%s3] sm:$0xf]
        %v524 = vld [vmem:[%s3 + $0x4] sm:$0xf]
        %v525 = vld [vmem:[%s3 + $0x8] sm:$0xf]
        %v526 = vld [vmem:[%s3 + $0xc] sm:$0xf]
        %v527 = vld [vmem:[%s4] sm:$0x1]
        %v529 = vlaneseq
        %v530 = vshrl.u32 %v529, 7
        %v531 = vsub.s32 0, %v530
        %v532 = vrot.slane %v527, %v531
        %v538 = vunpack.c.l.b16 %v523
        %v539 = vunpack.c.l.b16 %v524
        %v540 = vunpack.c.l.b16 %v525
        %v541 = vunpack.c.l.b16 %v526
        %v542 = vpack.c.b16 %v539, %v538
        %v543 = vpack.c.b16 %v541, %v540
        %v547 = vsel %vm493, %v522, 0
        %549 = vmatprep.subr.bf16.mxu0 0
        %550 = vmatpush1.bf16.msra.mxu0 0
        %551 = vmatprep.subr.bf16.mxu0 0
        %552 = vmatpush1.bf16.msra.mxu0 0
        %553 = vmatprep.subr.bf16.mxu0 0
        %554 = vmatpush1.bf16.msra.mxu0 0
        %555 = vmatprep.subr.bf16.mxu0 0
        %556 = vmatpush1.bf16.msra.mxu0 0
        %557 = vmatprep.subr.bf16.mxu0 0
        %558 = vmatpush1.bf16.msra.mxu0 0
        %559 = vmatprep.subr.bf16.mxu0 0
        %560 = vmatpush1.bf16.msra.mxu0 0
        %561 = vmatprep.subr.bf16.mxu0 0
        %562 = vmatpush1.bf16.msra.mxu0 %v543
        %563 = vmatprep.subr.bf16.mxu0 0
        %564 = vmatpush1.bf16.msra.mxu0 %v542
        %565 = vmatprep.subr.bf16.mxu0 0
        %566 = vmatpush2.bf16.msra.mxu0 0
        %567 = vmatprep.subr.bf16.mxu0 0
        %568 = vmatpush2.bf16.msra.mxu0 0
        %569 = vmatprep.subr.bf16.mxu0 0
        %570 = vmatpush2.bf16.msra.mxu0 0
        %571 = vmatprep.subr.bf16.mxu0 0
        %572 = vmatpush2.bf16.msra.mxu0 0
        %573 = vmatprep.subr.bf16.mxu0 0
        %574 = vmatpush2.bf16.msra.mxu0 0
        %575 = vmatprep.subr.bf16.mxu0 0
        %576 = vmatpush2.bf16.msra.mxu0 0
        %577 = vmatprep.subr.bf16.mxu0 0
        %578 = vmatpush2.bf16.msra.mxu0 0
        %579 = vmatprep.subr.bf16.mxu0 0
        %580 = vmatpush2.bf16.msra.mxu0 0
        %581 = vmatprep.mubr.bf16.mxu0 0
        %582 = vmatmul.mubr.bf16.gmra.mxu0 %v547
        %v583 = vpop.f32.mrf.mxu0
        %v584 = vadd.f32 %v532, %v583
        %v585 = vpop.f32.mrf.mxu0
        %v586 = vpop.f32.mrf.mxu0
        %v587 = vpop.f32.mrf.mxu0
        %588 = vdwg.mxu0
        %v589 = vpack.c.bf16 %v584, %v584
        %591 = vrot.lane.b32.xlu0 %v589, 96
        %v592 = vpop.permute.xlu0 %591
        %vm593 = vcmask 64512
        %v595 = vsel %vm593, %v589, 0
        %v598 = vsel %vm593, %v592, 0
        %600 = vmatprep.subr.bf16.mxu0 0
        %601 = vmatpush1.bf16.xpose.msra.mxu0 0
        %602 = vmatprep.subr.bf16.mxu0 0
        %603 = vmatpush1.bf16.xpose.msra.mxu0 0
        %604 = vmatprep.subr.bf16.mxu0 0
        %605 = vmatpush1.bf16.xpose.msra.mxu0 0
        %606 = vmatprep.subr.bf16.mxu0 0
        %607 = vmatpush1.bf16.xpose.msra.mxu0 0
        %608 = vmatprep.subr.bf16.mxu0 0
        %609 = vmatpush1.bf16.xpose.msra.mxu0 0
        %610 = vmatprep.subr.bf16.mxu0 0
        %611 = vmatpush1.bf16.xpose.msra.mxu0 0
        %612 = vmatprep.subr.bf16.mxu0 0
        %613 = vmatpush1.bf16.xpose.msra.mxu0 0
        %614 = vmatprep.subr.bf16.mxu0 0
        %615 = vmatpush1.bf16.xpose.msra.mxu0 %v598
        %616 = vmatprep.subr.bf16.mxu0 0
        %617 = vmatpush2.bf16.xpose.msra.mxu0 0
        %618 = vmatprep.subr.bf16.mxu0 0
        %619 = vmatpush2.bf16.xpose.msra.mxu0 0
        %620 = vmatprep.subr.bf16.mxu0 0
        %621 = vmatpush2.bf16.xpose.msra.mxu0 0
        %622 = vmatprep.subr.bf16.mxu0 0
        %623 = vmatpush2.bf16.xpose.msra.mxu0 0
        %624 = vmatprep.subr.bf16.mxu0 0
        %625 = vmatpush2.bf16.xpose.msra.mxu0 0
        %626 = vmatprep.subr.bf16.mxu0 0
        %627 = vmatpush2.bf16.xpose.msra.mxu0 0
        %628 = vmatprep.subr.bf16.mxu0 0
        %629 = vmatpush2.bf16.xpose.msra.mxu0 0
        %630 = vmatprep.subr.bf16.mxu0 0
        %631 = vmatpush2.bf16.xpose.msra.mxu0 0
        %632 = vmatprep.mubr.bf16.mxu0 0
        %633 = vmatmul.mubr.bf16.gmra.mxu0 %v595
        %v634 = vpop.f32.mrf.mxu0
        %v635 = vadd.f32 0.0, %v634
        %v636 = vpop.f32.mrf.mxu0
        %v637 = vpop.f32.mrf.mxu0
        %v638 = vpop.f32.mrf.mxu0
        %639 = vdwg.mxu0
        %v640 = vsel %vm593, %v635, -inf
        %641 = vmax.xlane.f32.xlu0 %v640
        %v642 = vpop.xlane.xlu0 %641
        %v643 = vsub.f32 %v635, %v642
        %v644 = vmul.f32 %v643, 1.442695
        %v645 = vpow.pop %v644
        %v646 = vsel %vm593, %v645, 0.0
        %647 = vadd.xlane.f32.xlu0 %v646
        %v648 = vpop.xlane.xlu0 %647
        %v649 = vrcp.pop %v648
        %v650 = vmul.f32 %v645, %v649
        %v651 = vpack.c.bf16 %v650, %v650
        %652 = vrot.lane.b32.xlu0 %v589, 64
        %v653 = vpop.permute.xlu0 %652
        %v655 = vsel %vm593, %v651, 0
        %vm657 = vcmask 1043456
        %v659 = vsel %vm657, %v653, 0
        %661 = vmatprep.subr.bf16.mxu0 0
        %662 = vmatpush1.bf16.msra.mxu0 0
        %663 = vmatprep.subr.bf16.mxu0 0
        %664 = vmatpush1.bf16.msra.mxu0 0
        %665 = vmatprep.subr.bf16.mxu0 0
        %666 = vmatpush1.bf16.msra.mxu0 0
        %667 = vmatprep.subr.bf16.mxu0 0
        %668 = vmatpush1.bf16.msra.mxu0 0
        %669 = vmatprep.subr.bf16.mxu0 0
        %670 = vmatpush1.bf16.msra.mxu0 0
        %671 = vmatprep.subr.bf16.mxu0 0
        %672 = vmatpush1.bf16.msra.mxu0 0
        %673 = vmatprep.subr.bf16.mxu0 0
        %674 = vmatpush1.bf16.msra.mxu0 0
        %675 = vmatprep.subr.bf16.mxu0 0
        %676 = vmatpush1.bf16.msra.mxu0 %v659
        %677 = vmatprep.subr.bf16.mxu0 0
        %678 = vmatpush2.bf16.msra.mxu0 0
        %679 = vmatprep.subr.bf16.mxu0 0
        %680 = vmatpush2.bf16.msra.mxu0 0
        %681 = vmatprep.subr.bf16.mxu0 0
        %682 = vmatpush2.bf16.msra.mxu0 0
        %683 = vmatprep.subr.bf16.mxu0 0
        %684 = vmatpush2.bf16.msra.mxu0 0
        %685 = vmatprep.subr.bf16.mxu0 0
        %686 = vmatpush2.bf16.msra.mxu0 0
        %687 = vmatprep.subr.bf16.mxu0 0
        %688 = vmatpush2.bf16.msra.mxu0 0
        %689 = vmatprep.subr.bf16.mxu0 0
        %690 = vmatpush2.bf16.msra.mxu0 0
        %691 = vmatprep.subr.bf16.mxu0 0
        %692 = vmatpush2.bf16.msra.mxu0 0
        %693 = vmatprep.mubr.bf16.mxu0 0
        %694 = vmatmul.mubr.bf16.gmra.mxu0 %v655
        %v695 = vpop.f32.mrf.mxu0
        %v696 = vadd.f32 0.0, %v695
        %v697 = vpop.f32.mrf.mxu0
        %v698 = vpop.f32.mrf.mxu0
        %v699 = vpop.f32.mrf.mxu0
        %700 = vdwg.mxu0
        %701 = vrot.lane.b32.xlu0 %v589, 120
        %v702 = vpop.permute.xlu0 %701
        %703 = vrot.lane.b32.xlu0 %v589, 88
        %v704 = vpop.permute.xlu0 %703
        %v706 = vsel %vm593, %v702, 0
        %v709 = vsel %vm593, %v704, 0
        %711 = vmatprep.subr.bf16.mxu0 0
        %712 = vmatpush1.bf16.xpose.msra.mxu0 0
        %713 = vmatprep.subr.bf16.mxu0 0
        %714 = vmatpush1.bf16.xpose.msra.mxu0 0
        %715 = vmatprep.subr.bf16.mxu0 0
        %716 = vmatpush1.bf16.xpose.msra.mxu0 0
        %717 = vmatprep.subr.bf16.mxu0 0
        %718 = vmatpush1.bf16.xpose.msra.mxu0 0
        %719 = vmatprep.subr.bf16.mxu0 0
        %720 = vmatpush1.bf16.xpose.msra.mxu0 0
        %721 = vmatprep.subr.bf16.mxu0 0
        %722 = vmatpush1.bf16.xpose.msra.mxu0 0
        %723 = vmatprep.subr.bf16.mxu0 0
        %724 = vmatpush1.bf16.xpose.msra.mxu0 0
        %725 = vmatprep.subr.bf16.mxu0 0
        %726 = vmatpush1.bf16.xpose.msra.mxu0 %v709
        %727 = vmatprep.subr.bf16.mxu0 0
        %728 = vmatpush2.bf16.xpose.msra.mxu0 0
        %729 = vmatprep.subr.bf16.mxu0 0
        %730 = vmatpush2.bf16.xpose.msra.mxu0 0
        %731 = vmatprep.subr.bf16.mxu0 0
        %732 = vmatpush2.bf16.xpose.msra.mxu0 0
        %733 = vmatprep.subr.bf16.mxu0 0
        %734 = vmatpush2.bf16.xpose.msra.mxu0 0
        %735 = vmatprep.subr.bf16.mxu0 0
        %736 = vmatpush2.bf16.xpose.msra.mxu0 0
        %737 = vmatprep.subr.bf16.mxu0 0
        %738 = vmatpush2.bf16.xpose.msra.mxu0 0
        %739 = vmatprep.subr.bf16.mxu0 0
        %740 = vmatpush2.bf16.xpose.msra.mxu0 0
        %741 = vmatprep.subr.bf16.mxu0 0
        %742 = vmatpush2.bf16.xpose.msra.mxu0 0
        %743 = vmatprep.mubr.bf16.mxu0 0
        %744 = vmatmul.mubr.bf16.gmra.mxu0 %v706
        %v745 = vpop.f32.mrf.mxu0
        %v746 = vadd.f32 0.0, %v745
        %v747 = vpop.f32.mrf.mxu0
        %v748 = vpop.f32.mrf.mxu0
        %v749 = vpop.f32.mrf.mxu0
        %750 = vdwg.mxu0
        %v751 = vsel %vm593, %v746, -inf
        %752 = vmax.xlane.f32.xlu0 %v751
        %v753 = vpop.xlane.xlu0 %752
        %v754 = vsub.f32 %v746, %v753
        %v755 = vmul.f32 %v754, 1.442695
        %v756 = vpow.pop %v755
        %v757 = vsel %vm593, %v756, 0.0
        %758 = vadd.xlane.f32.xlu0 %v757
        %v759 = vpop.xlane.xlu0 %758
        %v760 = vrcp.pop %v759
        %v761 = vmul.f32 %v756, %v760
        %v762 = vpack.c.bf16 %v761, %v761
        %763 = vrot.lane.b32.xlu0 %v589, 56
        %v764 = vpop.permute.xlu0 %763
        %v766 = vsel %vm593, %v762, 0
        %v769 = vsel %vm657, %v764, 0
        %771 = vmatprep.subr.bf16.mxu0 0
        %772 = vmatpush1.bf16.msra.mxu0 0
        %773 = vmatprep.subr.bf16.mxu0 0
        %774 = vmatpush1.bf16.msra.mxu0 0
        %775 = vmatprep.subr.bf16.mxu0 0
        %776 = vmatpush1.bf16.msra.mxu0 0
        %777 = vmatprep.subr.bf16.mxu0 0
        %778 = vmatpush1.bf16.msra.mxu0 0
        %779 = vmatprep.subr.bf16.mxu0 0
        %780 = vmatpush1.bf16.msra.mxu0 0
        %781 = vmatprep.subr.bf16.mxu0 0
        %782 = vmatpush1.bf16.msra.mxu0 0
        %783 = vmatprep.subr.bf16.mxu0 0
        %784 = vmatpush1.bf16.msra.mxu0 0
        %785 = vmatprep.subr.bf16.mxu0 0
        %786 = vmatpush1.bf16.msra.mxu0 %v769
        %787 = vmatprep.subr.bf16.mxu0 0
        %788 = vmatpush2.bf16.msra.mxu0 0
        %789 = vmatprep.subr.bf16.mxu0 0
        %790 = vmatpush2.bf16.msra.mxu0 0
        %791 = vmatprep.subr.bf16.mxu0 0
        %792 = vmatpush2.bf16.msra.mxu0 0
        %793 = vmatprep.subr.bf16.mxu0 0
        %794 = vmatpush2.bf16.msra.mxu0 0
        %795 = vmatprep.subr.bf16.mxu0 0
        %796 = vmatpush2.bf16.msra.mxu0 0
        %797 = vmatprep.subr.bf16.mxu0 0
        %798 = vmatpush2.bf16.msra.mxu0 0
        %799 = vmatprep.subr.bf16.mxu0 0
        %800 = vmatpush2.bf16.msra.mxu0 0
        %801 = vmatprep.subr.bf16.mxu0 0
        %802 = vmatpush2.bf16.msra.mxu0 0
        %803 = vmatprep.mubr.bf16.mxu0 0
        %804 = vmatmul.mubr.bf16.gmra.mxu0 %v766
        %v805 = vpop.f32.mrf.mxu0
        %v806 = vadd.f32 0.0, %v805
        %v807 = vpop.f32.mrf.mxu0
        %v808 = vpop.f32.mrf.mxu0
        %v809 = vpop.f32.mrf.mxu0
        %810 = vdwg.mxu0
        %811 = vrot.lane.b32.xlu0 %v589, 112
        %v812 = vpop.permute.xlu0 %811
        %813 = vrot.lane.b32.xlu0 %v589, 80
        %v814 = vpop.permute.xlu0 %813
        %v816 = vsel %vm593, %v812, 0
        %v819 = vsel %vm593, %v814, 0
        %821 = vmatprep.subr.bf16.mxu0 0
        %822 = vmatpush1.bf16.xpose.msra.mxu0 0
        %823 = vmatprep.subr.bf16.mxu0 0
        %824 = vmatpush1.bf16.xpose.msra.mxu0 0
        %825 = vmatprep.subr.bf16.mxu0 0
        %826 = vmatpush1.bf16.xpose.msra.mxu0 0
        %827 = vmatprep.subr.bf16.mxu0 0
        %828 = vmatpush1.bf16.xpose.msra.mxu0 0
        %829 = vmatprep.subr.bf16.mxu0 0
        %830 = vmatpush1.bf16.xpose.msra.mxu0 0
        %831 = vmatprep.subr.bf16.mxu0 0
        %832 = vmatpush1.bf16.xpose.msra.mxu0 0
        %833 = vmatprep.subr.bf16.mxu0 0
        %834 = vmatpush1.bf16.xpose.msra.mxu0 0
        %835 = vmatprep.subr.bf16.mxu0 0
        %836 = vmatpush1.bf16.xpose.msra.mxu0 %v819
        %837 = vmatprep.subr.bf16.mxu0 0
        %838 = vmatpush2.bf16.xpose.msra.mxu0 0
        %839 = vmatprep.subr.bf16.mxu0 0
        %840 = vmatpush2.bf16.xpose.msra.mxu0 0
        %841 = vmatprep.subr.bf16.mxu0 0
        %842 = vmatpush2.bf16.xpose.msra.mxu0 0
        %843 = vmatprep.subr.bf16.mxu0 0
        %844 = vmatpush2.bf16.xpose.msra.mxu0 0
        %845 = vmatprep.subr.bf16.mxu0 0
        %846 = vmatpush2.bf16.xpose.msra.mxu0 0
        %847 = vmatprep.subr.bf16.mxu0 0
        %848 = vmatpush2.bf16.xpose.msra.mxu0 0
        %849 = vmatprep.subr.bf16.mxu0 0
        %850 = vmatpush2.bf16.xpose.msra.mxu0 0
        %851 = vmatprep.subr.bf16.mxu0 0
        %852 = vmatpush2.bf16.xpose.msra.mxu0 0
        %853 = vmatprep.mubr.bf16.mxu0 0
        %854 = vmatmul.mubr.bf16.gmra.mxu0 %v816
        %v855 = vpop.f32.mrf.mxu0
        %v856 = vadd.f32 0.0, %v855
        %v857 = vpop.f32.mrf.mxu0
        %v858 = vpop.f32.mrf.mxu0
        %v859 = vpop.f32.mrf.mxu0
        %860 = vdwg.mxu0
        %v861 = vsel %vm593, %v856, -inf
        %862 = vmax.xlane.f32.xlu0 %v861
        %v863 = vpop.xlane.xlu0 %862
        %v864 = vsub.f32 %v856, %v863
        %v865 = vmul.f32 %v864, 1.442695
        %v866 = vpow.pop %v865
        %v867 = vsel %vm593, %v866, 0.0
        %868 = vadd.xlane.f32.xlu0 %v867
        %v869 = vpop.xlane.xlu0 %868
        %v870 = vrcp.pop %v869
        %v871 = vmul.f32 %v866, %v870
        %v872 = vpack.c.bf16 %v871, %v871
        %873 = vrot.lane.b32.xlu0 %v589, 48
        %v874 = vpop.permute.xlu0 %873
        %v876 = vsel %vm593, %v872, 0
        %v879 = vsel %vm657, %v874, 0
        %881 = vmatprep.subr.bf16.mxu0 0
        %882 = vmatpush1.bf16.msra.mxu0 0
        %883 = vmatprep.subr.bf16.mxu0 0
        %884 = vmatpush1.bf16.msra.mxu0 0
        %885 = vmatprep.subr.bf16.mxu0 0
        %886 = vmatpush1.bf16.msra.mxu0 0
        %887 = vmatprep.subr.bf16.mxu0 0
        %888 = vmatpush1.bf16.msra.mxu0 0
        %889 = vmatprep.subr.bf16.mxu0 0
        %890 = vmatpush1.bf16.msra.mxu0 0
        %891 = vmatprep.subr.bf16.mxu0 0
        %892 = vmatpush1.bf16.msra.mxu0 0
        %893 = vmatprep.subr.bf16.mxu0 0
        %894 = vmatpush1.bf16.msra.mxu0 0
        %895 = vmatprep.subr.bf16.mxu0 0
        %896 = vmatpush1.bf16.msra.mxu0 %v879
        %897 = vmatprep.subr.bf16.mxu0 0
        %898 = vmatpush2.bf16.msra.mxu0 0
        %899 = vmatprep.subr.bf16.mxu0 0
        %900 = vmatpush2.bf16.msra.mxu0 0
        %901 = vmatprep.subr.bf16.mxu0 0
        %902 = vmatpush2.bf16.msra.mxu0 0
        %903 = vmatprep.subr.bf16.mxu0 0
        %904 = vmatpush2.bf16.msra.mxu0 0
        %905 = vmatprep.subr.bf16.mxu0 0
        %906 = vmatpush2.bf16.msra.mxu0 0
        %907 = vmatprep.subr.bf16.mxu0 0
        %908 = vmatpush2.bf16.msra.mxu0 0
        %909 = vmatprep.subr.bf16.mxu0 0
        %910 = vmatpush2.bf16.msra.mxu0 0
        %911 = vmatprep.subr.bf16.mxu0 0
        %912 = vmatpush2.bf16.msra.mxu0 0
        %913 = vmatprep.mubr.bf16.mxu0 0
        %914 = vmatmul.mubr.bf16.gmra.mxu0 %v876
        %v915 = vpop.f32.mrf.mxu0
        %v916 = vadd.f32 0.0, %v915
        %v917 = vpop.f32.mrf.mxu0
        %v918 = vpop.f32.mrf.mxu0
        %v919 = vpop.f32.mrf.mxu0
        %920 = vdwg.mxu0
        %921 = vrot.lane.b32.xlu0 %v589, 104
        %v922 = vpop.permute.xlu0 %921
        %923 = vrot.lane.b32.xlu0 %v589, 72
        %v924 = vpop.permute.xlu0 %923
        %v926 = vsel %vm593, %v922, 0
        %v929 = vsel %vm593, %v924, 0
        %931 = vmatprep.subr.bf16.mxu0 0
        %932 = vmatpush1.bf16.xpose.msra.mxu0 0
        %933 = vmatprep.subr.bf16.mxu0 0
        %934 = vmatpush1.bf16.xpose.msra.mxu0 0
        %935 = vmatprep.subr.bf16.mxu0 0
        %936 = vmatpush1.bf16.xpose.msra.mxu0 0
        %937 = vmatprep.subr.bf16.mxu0 0
        %938 = vmatpush1.bf16.xpose.msra.mxu0 0
        %939 = vmatprep.subr.bf16.mxu0 0
        %940 = vmatpush1.bf16.xpose.msra.mxu0 0
        %941 = vmatprep.subr.bf16.mxu0 0
        %942 = vmatpush1.bf16.xpose.msra.mxu0 0
        %943 = vmatprep.subr.bf16.mxu0 0
        %944 = vmatpush1.bf16.xpose.msra.mxu0 0
        %945 = vmatprep.subr.bf16.mxu0 0
        %946 = vmatpush1.bf16.xpose.msra.mxu0 %v929
        %947 = vmatprep.subr.bf16.mxu0 0
        %948 = vmatpush2.bf16.xpose.msra.mxu0 0
        %949 = vmatprep.subr.bf16.mxu0 0
        %950 = vmatpush2.bf16.xpose.msra.mxu0 0
        %951 = vmatprep.subr.bf16.mxu0 0
        %952 = vmatpush2.bf16.xpose.msra.mxu0 0
        %953 = vmatprep.subr.bf16.mxu0 0
        %954 = vmatpush2.bf16.xpose.msra.mxu0 0
        %955 = vmatprep.subr.bf16.mxu0 0
        %956 = vmatpush2.bf16.xpose.msra.mxu0 0
        %957 = vmatprep.subr.bf16.mxu0 0
        %958 = vmatpush2.bf16.xpose.msra.mxu0 0
        %959 = vmatprep.subr.bf16.mxu0 0
        %960 = vmatpush2.bf16.xpose.msra.mxu0 0
        %961 = vmatprep.subr.bf16.mxu0 0
        %962 = vmatpush2.bf16.xpose.msra.mxu0 0
        %963 = vmatprep.mubr.bf16.mxu0 0
        %964 = vmatmul.mubr.bf16.gmra.mxu0 %v926
        %v965 = vpop.f32.mrf.mxu0
        %v966 = vadd.f32 0.0, %v965
        %v967 = vpop.f32.mrf.mxu0
        %v968 = vpop.f32.mrf.mxu0
        %v969 = vpop.f32.mrf.mxu0
        %970 = vdwg.mxu0
        %v971 = vsel %vm593, %v966, -inf
        %972 = vmax.xlane.f32.xlu0 %v971
        %v973 = vpop.xlane.xlu0 %972
        %v974 = vsub.f32 %v966, %v973
        %v975 = vmul.f32 %v974, 1.442695
        %v976 = vpow.pop %v975
        %v977 = vsel %vm593, %v976, 0.0
        %978 = vadd.xlane.f32.xlu0 %v977
        %v979 = vpop.xlane.xlu0 %978
        %v980 = vrcp.pop %v979
        %v981 = vmul.f32 %v976, %v980
        %v982 = vpack.c.bf16 %v981, %v981
        %983 = vrot.lane.b32.xlu0 %v589, 40
        %v984 = vpop.permute.xlu0 %983
        %v986 = vsel %vm593, %v982, 0
        %v989 = vsel %vm657, %v984, 0
        %991 = vmatprep.subr.bf16.mxu0 0
        %992 = vmatpush1.bf16.msra.mxu0 0
        %993 = vmatprep.subr.bf16.mxu0 0
        %994 = vmatpush1.bf16.msra.mxu0 0
        %995 = vmatprep.subr.bf16.mxu0 0
        %996 = vmatpush1.bf16.msra.mxu0 0
        %997 = vmatprep.subr.bf16.mxu0 0
        %998 = vmatpush1.bf16.msra.mxu0 0
        %999 = vmatprep.subr.bf16.mxu0 0
        %1000 = vmatpush1.bf16.msra.mxu0 0
        %1001 = vmatprep.subr.bf16.mxu0 0
        %1002 = vmatpush1.bf16.msra.mxu0 0
        %1003 = vmatprep.subr.bf16.mxu0 0
        %1004 = vmatpush1.bf16.msra.mxu0 0
        %1005 = vmatprep.subr.bf16.mxu0 0
        %1006 = vmatpush1.bf16.msra.mxu0 %v989
        %1007 = vmatprep.subr.bf16.mxu0 0
        %1008 = vmatpush2.bf16.msra.mxu0 0
        %1009 = vmatprep.subr.bf16.mxu0 0
        %1010 = vmatpush2.bf16.msra.mxu0 0
        %1011 = vmatprep.subr.bf16.mxu0 0
        %1012 = vmatpush2.bf16.msra.mxu0 0
        %1013 = vmatprep.subr.bf16.mxu0 0
        %1014 = vmatpush2.bf16.msra.mxu0 0
        %1015 = vmatprep.subr.bf16.mxu0 0
        %1016 = vmatpush2.bf16.msra.mxu0 0
        %1017 = vmatprep.subr.bf16.mxu0 0
        %1018 = vmatpush2.bf16.msra.mxu0 0
        %1019 = vmatprep.subr.bf16.mxu0 0
        %1020 = vmatpush2.bf16.msra.mxu0 0
        %1021 = vmatprep.subr.bf16.mxu0 0
        %1022 = vmatpush2.bf16.msra.mxu0 0
        %1023 = vmatprep.mubr.bf16.mxu0 0
        %1024 = vmatmul.mubr.bf16.gmra.mxu0 %v986
        %v1025 = vpop.f32.mrf.mxu0
        %v1026 = vadd.f32 0.0, %v1025
        %v1027 = vpop.f32.mrf.mxu0
        %v1028 = vpop.f32.mrf.mxu0
        %v1029 = vpop.f32.mrf.mxu0
        %1030 = vdwg.mxu0
        %1032 = vrot.lane.b32.xlu0 %v806, 8
        %v1033 = vpop.permute.xlu0 %1032
        %1036 = vrot.lane.b32.xlu0 %v916, 16
        %v1037 = vpop.permute.xlu0 %1036
        %1040 = vrot.lane.b32.xlu0 %v1026, 24
        %v1041 = vpop.permute.xlu0 %1040
        %v1043 = vsel %vm593, %v696, %v1033
        %vm1044 = vcmask 130048
        %v1045 = vsel %vm1044, %v1043, %v1037
        %vm1046 = vcmask 195584
        %v1047 = vsel %vm1046, %v1045, %v1041
        %v1048 = vpack.c.bf16 %v1047, %v1047
        %v1049 = vld [vmem:[%s5] sm:$0xf]
        %v1050 = vld [vmem:[%s5 + $0x4] sm:$0xf]
        %v1051 = vld [vmem:[%s5 + $0x8] sm:$0xf]
        %v1052 = vld [vmem:[%s5 + $0xc] sm:$0xf]
        %v1057 = vunpack.c.l.b16 %v1049
        %v1058 = vunpack.c.l.b16 %v1050
        %v1059 = vunpack.c.l.b16 %v1051
        %v1060 = vunpack.c.l.b16 %v1052
        %v1061 = vpack.c.b16 %v1058, %v1057
        %v1062 = vpack.c.b16 %v1060, %v1059
        %v1066 = vsel %vm493, %v1048, 0
        %1068 = vmatprep.subr.bf16.mxu0 0
        %1069 = vmatpush1.bf16.msra.mxu0 0
        %1070 = vmatprep.subr.bf16.mxu0 0
        %1071 = vmatpush1.bf16.msra.mxu0 0
        %1072 = vmatprep.subr.bf16.mxu0 0
        %1073 = vmatpush1.bf16.msra.mxu0 0
        %1074 = vmatprep.subr.bf16.mxu0 0
        %1075 = vmatpush1.bf16.msra.mxu0 0
        %1076 = vmatprep.subr.bf16.mxu0 0
        %1077 = vmatpush1.bf16.msra.mxu0 0
        %1078 = vmatprep.subr.bf16.mxu0 0
        %1079 = vmatpush1.bf16.msra.mxu0 0
        %1080 = vmatprep.subr.bf16.mxu0 0
        %1081 = vmatpush1.bf16.msra.mxu0 %v1062
        %1082 = vmatprep.subr.bf16.mxu0 0
        %1083 = vmatpush1.bf16.msra.mxu0 %v1061
        %1084 = vmatprep.subr.bf16.mxu0 0
        %1085 = vmatpush2.bf16.msra.mxu0 0
        %1086 = vmatprep.subr.bf16.mxu0 0
        %1087 = vmatpush2.bf16.msra.mxu0 0
        %1088 = vmatprep.subr.bf16.mxu0 0
        %1089 = vmatpush2.bf16.msra.mxu0 0
        %1090 = vmatprep.subr.bf16.mxu0 0
        %1091 = vmatpush2.bf16.msra.mxu0 0
        %1092 = vmatprep.subr.bf16.mxu0 0
        %1093 = vmatpush2.bf16.msra.mxu0 0
        %1094 = vmatprep.subr.bf16.mxu0 0
        %1095 = vmatpush2.bf16.msra.mxu0 0
        %1096 = vmatprep.subr.bf16.mxu0 0
        %1097 = vmatpush2.bf16.msra.mxu0 0
        %1098 = vmatprep.subr.bf16.mxu0 0
        %1099 = vmatpush2.bf16.msra.mxu0 0
        %1100 = vmatprep.mubr.bf16.mxu0 0
        %1101 = vmatmul.mubr.bf16.gmra.mxu0 %v1066
        %v1102 = vpop.f32.mrf.mxu0
        %v1103 = vadd.f32 0.0, %v1102
        %v1104 = vpop.f32.mrf.mxu0
        %v1105 = vpop.f32.mrf.mxu0
        %v1106 = vpop.f32.mrf.mxu0
        %1107 = vdwg.mxu0
        %v1108 = vadd.f32 %v490, %v1103
        %v1109 = vld [vmem:[%s6] sm:$0x1]
        %v1111 = vlaneseq
        %v1112 = vshrl.u32 %v1111, 7
        %v1113 = vsub.s32 0, %v1112
        %v1114 = vrot.slane %v1109, %v1113
        %v1116 = vadd.f32 %v1108, %v1114
        %v1117 = vld [vmem:[#allocation2] sm:$0x1]
        %v1118 = vld [vmem:[#allocation5] sm:$0x1]
        %v1119 = vsel %vm493, %v1116, 0.0
        %1120 = vadd.xlane.f32.xlu0 %v1119
        %v1121 = vpop.xlane.xlu0 %1120
        %v1122 = vmul.f32 %v1121, %v497
        %v1123 = vsub.f32 %v1116, %v1122
        %v1124 = vmul.f32 %v1123, %v1123
        %v1125 = vsel %vm493, %v1124, 0.0
        %1126 = vadd.xlane.f32.xlu0 %v1125
        %v1127 = vpop.xlane.xlu0 %1126
        %v1128 = vmul.f32 %v1127, %v497
        %v1129 = vadd.f32 %v1128, 1e-05
        %v1130 = vrsqrt.pop %v1129
        %v1131 = vmul.f32 %v1123, %v1130
        %v1133 = vlaneseq
        %v1134 = vshrl.u32 %v1133, 7
        %v1135 = vsub.s32 0, %v1134
        %v1136 = vrot.slane %v1117, %v1135
        %v1138 = vmul.f32 %v1131, %v1136
        %v1140 = vlaneseq
        %v1141 = vshrl.u32 %v1140, 7
        %v1142 = vsub.s32 0, %v1141
        %v1143 = vrot.slane %v1118, %v1142
        %v1145 = vadd.f32 %v1138, %v1143
        %v1146 = vpack.c.bf16 %v1145, %v1145
        %v1147 = vld [vmem:[#allocation7] sm:$0xf]
        %v1148 = vld [vmem:[#allocation7 + $0x4] sm:$0xf]
        %v1149 = vld [vmem:[#allocation7 + $0x8] sm:$0xf]
        %v1150 = vld [vmem:[#allocation7 + $0xc] sm:$0xf]
        %v1151 = vld [vmem:[#allocation8] sm:$0x1]
        %v1153 = vlaneseq
        %v1154 = vshrl.u32 %v1153, 7
        %v1155 = vsub.s32 0, %v1154
        %v1156 = vrot.slane %v1151, %v1155
        %v1162 = vunpack.c.l.b16 %v1147
        %v1163 = vunpack.c.l.b16 %v1148
        %v1164 = vunpack.c.l.b16 %v1149
        %v1165 = vunpack.c.l.b16 %v1150
        %v1166 = vpack.c.b16 %v1163, %v1162
        %v1167 = vpack.c.b16 %v1165, %v1164
        %v1171 = vsel %vm493, %v1146, 0
        %1173 = vmatprep.subr.bf16.mxu0 0
        %1174 = vmatpush1.bf16.msra.mxu0 0
        %1175 = vmatprep.subr.bf16.mxu0 0
        %1176 = vmatpush1.bf16.msra.mxu0 0
        %1177 = vmatprep.subr.bf16.mxu0 0
        %1178 = vmatpush1.bf16.msra.mxu0 0
        %1179 = vmatprep.subr.bf16.mxu0 0
        %1180 = vmatpush1.bf16.msra.mxu0 0
        %1181 = vmatprep.subr.bf16.mxu0 0
        %1182 = vmatpush1.bf16.msra.mxu0 0
        %1183 = vmatprep.subr.bf16.mxu0 0
        %1184 = vmatpush1.bf16.msra.mxu0 0
        %1185 = vmatprep.subr.bf16.mxu0 0
        %1186 = vmatpush1.bf16.msra.mxu0 %v1167
        %1187 = vmatprep.subr.bf16.mxu0 0
        %1188 = vmatpush1.bf16.msra.mxu0 %v1166
        %1189 = vmatprep.subr.bf16.mxu0 0
        %1190 = vmatpush2.bf16.msra.mxu0 0
        %1191 = vmatprep.subr.bf16.mxu0 0
        %1192 = vmatpush2.bf16.msra.mxu0 0
        %1193 = vmatprep.subr.bf16.mxu0 0
        %1194 = vmatpush2.bf16.msra.mxu0 0
        %1195 = vmatprep.subr.bf16.mxu0 0
        %1196 = vmatpush2.bf16.msra.mxu0 0
        %1197 = vmatprep.subr.bf16.mxu0 0
        %1198 = vmatpush2.bf16.msra.mxu0 0
        %1199 = vmatprep.subr.bf16.mxu0 0
        %1200 = vmatpush2.bf16.msra.mxu0 0
        %1201 = vmatprep.subr.bf16.mxu0 0
        %1202 = vmatpush2.bf16.msra.mxu0 0
        %1203 = vmatprep.subr.bf16.mxu0 0
        %1204 = vmatpush2.bf16.msra.mxu0 0
        %1205 = vmatprep.mubr.bf16.mxu0 0
        %1206 = vmatmul.mubr.bf16.gmra.mxu0 %v1171
        %v1207 = vpop.f32.mrf.mxu0
        %v1208 = vadd.f32 %v1156, %v1207
        %v1209 = vpop.f32.mrf.mxu0
        %v1210 = vpop.f32.mrf.mxu0
        %v1211 = vpop.f32.mrf.mxu0
        %1212 = vdwg.mxu0
        %v1213 = vmax.f32 %v1208, 0.0
        %v1214 = vpack.c.bf16 %v1213, %v1213
        %v1215 = vld [vmem:[%s11] sm:$0xf]
        %v1216 = vld [vmem:[%s11 + $0x4] sm:$0xf]
        %v1217 = vld [vmem:[%s11 + $0x8] sm:$0xf]
        %v1218 = vld [vmem:[%s11 + $0xc] sm:$0xf]
        %v1219 = vld [vmem:[%s11 + $0x10] sm:$0xf]
        %v1220 = vld [vmem:[%s11 + $0x14] sm:$0xf]
        %v1221 = vld [vmem:[%s11 + $0x18] sm:$0xf]
        %v1222 = vld [vmem:[%s11 + $0x1c] sm:$0xf]
        %v1231 = vunpack.c.l.b16 %v1215
        %v1232 = vunpack.c.l.b16 %v1216
        %v1233 = vunpack.c.l.b16 %v1217
        %v1234 = vunpack.c.l.b16 %v1218
        %v1235 = vunpack.c.l.b16 %v1219
        %v1236 = vunpack.c.l.b16 %v1220
        %v1237 = vunpack.c.l.b16 %v1221
        %v1238 = vunpack.c.l.b16 %v1222
        %v1239 = vpack.c.b16 %v1232, %v1231
        %v1240 = vpack.c.b16 %v1234, %v1233
        %v1241 = vpack.c.b16 %v1236, %v1235
        %v1242 = vpack.c.b16 %v1238, %v1237
        %vm1247 = vcmask 523264
        %v1249 = vsel %vm1247, %v1214, 0
        %1251 = vmatprep.subr.bf16.mxu0 0
        %1252 = vmatpush1.bf16.msra.mxu0 0
        %1253 = vmatprep.subr.bf16.mxu0 0
        %1254 = vmatpush1.bf16.msra.mxu0 0
        %1255 = vmatprep.subr.bf16.mxu0 0
        %1256 = vmatpush1.bf16.msra.mxu0 0
        %1257 = vmatprep.subr.bf16.mxu0 0
        %1258 = vmatpush1.bf16.msra.mxu0 0
        %1259 = vmatprep.subr.bf16.mxu0 0
        %1260 = vmatpush1.bf16.msra.mxu0 %v1242
        %1261 = vmatprep.subr.bf16.mxu0 0
        %1262 = vmatpush1.bf16.msra.mxu0 %v1241
        %1263 = vmatprep.subr.bf16.mxu0 0
        %1264 = vmatpush1.bf16.msra.mxu0 %v1240
        %1265 = vmatprep.subr.bf16.mxu0 0
        %1266 = vmatpush1.bf16.msra.mxu0 %v1239
        %1267 = vmatprep.subr.bf16.mxu0 0
        %1268 = vmatpush2.bf16.msra.mxu0 0
        %1269 = vmatprep.subr.bf16.mxu0 0
        %1270 = vmatpush2.bf16.msra.mxu0 0
        %1271 = vmatprep.subr.bf16.mxu0 0
        %1272 = vmatpush2.bf16.msra.mxu0 0
        %1273 = vmatprep.subr.bf16.mxu0 0
        %1274 = vmatpush2.bf16.msra.mxu0 0
        %1275 = vmatprep.subr.bf16.mxu0 0
        %1276 = vmatpush2.bf16.msra.mxu0 0
        %1277 = vmatprep.subr.bf16.mxu0 0
        %1278 = vmatpush2.bf16.msra.mxu0 0
        %1279 = vmatprep.subr.bf16.mxu0 0
        %1280 = vmatpush2.bf16.msra.mxu0 0
        %1281 = vmatprep.subr.bf16.mxu0 0
        %1282 = vmatpush2.bf16.msra.mxu0 0
        %1283 = vmatprep.mubr.bf16.mxu0 0
        %1284 = vmatmul.mubr.bf16.gmra.mxu0 %v1249
        %v1285 = vpop.f32.mrf.mxu0
        %v1286 = vadd.f32 0.0, %v1285
        %v1287 = vpop.f32.mrf.mxu0
        %v1288 = vpop.f32.mrf.mxu0
        %v1289 = vpop.f32.mrf.mxu0
        %1290 = vdwg.mxu0
        %v1291 = vadd.f32 %v1116, %v1286
        %v1292 = vld [vmem:[%s12] sm:$0x1]
        %v1294 = vlaneseq
        %v1295 = vshrl.u32 %v1294, 7
        %v1296 = vsub.s32 0, %v1295
        %v1297 = vrot.slane %v1292, %v1296
        %v1299 = vadd.f32 %v1291, %v1297
        %1300 = vst.msk [vmem:[%s484] sm:$0xff] %vm493, %v1299
        %s1301 = sand.u32 %s316, 1
        %s1302 = scalar_lea.sflag [#allocation4], %s1301
        %s1303 = sand.u32 %s316, 1
        %s1304 = smul.addr %s1303, 8
        %s1305 = scalar_lea.vmem [#allocation10], %s1304
        // Predicated region
        $region89: #{tpu_custom_call.1} parent=71 // pred_check
          %p1306 = pneg %p326
        $region90: #{tpu_custom_call.1} parent=71 // pred_check_branch
          %1308 = sbr.rel (%p1306) target = $region92
        $region91: #{tpu_custom_call.1} parent=71 // pred_region
          %s1310 = ssub.s32 128, 128
          %1311 = vsyncadd %s1302, %s1310
          %s1312 = smul.addr %s30, 128
          %s1313 = scalar_lea.hbm %s13, %s1312
          %s1315 = sshll.u32 %s1305, 4
          %s1316 = int_to_ptr.vmem [resolvable:$true] %s1315
          %1318 = dma.vmem_to_hbm [thread:$0]  %s1316, 128, %s1313, %s1302
        $region92: #{tpu_custom_call.1} parent=71 // pred_fallthru
          _
      $region72: #{tpu_custom_call.1} parent=5 // pred_fallthru
        _
      %p1319 = scmp.le.s32.totalorder 2, %s25
      // Predicated region
      $region93: #{tpu_custom_call.1} parent=5 // pred_check
        %p1320 = pneg %p1319
      $region94: #{tpu_custom_call.1} parent=5 // pred_check_branch
        %1322 = sbr.rel (%p1320) target = $region96
      $region95: #{tpu_custom_call.1} parent=5 // pred_region
        %s1323 = ssub.s32 %s25, 2
        // Predicated region
        $region97: #{tpu_custom_call.1} parent=95 // pred_check
          %p1324 = pneg %p332
        $region98: #{tpu_custom_call.1} parent=95 // pred_check_branch
          %1326 = sbr.rel (%p1324) target = $region100
        $region99: #{tpu_custom_call.1} parent=95 // pred_region
          %s1327 = sand.u32 %s317, 1
          %s1328 = scalar_lea.sflag [#allocation4], %s1327
          %s1329 = sand.u32 %s317, 1
          %s1330 = smul.addr %s1329, 8
          %s1331 = scalar_lea.vmem [#allocation10], %s1330
          %1332 = dma.done %s1328, 128
        $region100: #{tpu_custom_call.1} parent=95 // pred_fallthru
          _
      $region96: #{tpu_custom_call.1} parent=5 // pred_fallthru
        _
    $region6: #{tpu_custom_call.1} parent=1 // loop_footer
      %s29 = sadd.s32 1, %s25
    $region7: #{tpu_custom_call.1} parent=1 // loop_footer_branch
      %24 = sbr.rel target = $region3
    $region8: #{tpu_custom_call.1} parent=1 // loop_exit
      _
    %1333 = vsyncpa [#allocation3], 1
    %s1334 = scalar_lea.sflag [#allocation3], 1
    %1335 = vsyncpa %s1334, 1
    %1336 = vsyncpa [#allocation6], 1
    %1337 = vsyncpa [#allocation9], 1
    %1338 = vsyncpa [#allocation4], 1
    %s1339 = scalar_lea.sflag [#allocation4], 1
    %1340 = vsyncpa %s1339, 1

</llo_original>
